<compile_context>
chip_gen: v5e
topology: v5e:2x2
jax: 0.10.0
libtpu: 0.0.40
codegen_flags: <defaults>
</compile_context>

<pallas_src>
import functools

import jax
import jax.numpy as jnp
from jax import lax
from jax.experimental import pallas as pl
from jax.experimental.pallas import tpu as pltpu


def _round_up(a, b):
    return (a + b - 1) // b * b


def _convt_tap_kernel(x_ref, w_ref, mask_ref, y_ref, ps_ref, *, K, Wp):
    """Transposed conv for one image via K*K tap accumulation (no im2col).

    x_ref:    (C_in_pad, L_in_pad)    bf16  dilated+padded input, spatial flattened
    w_ref:    (K*K, C_out, C_in_pad)  bf16  flipped weights, one slab per tap
    mask_ref: (1, L_out_pad)          f32   1.0 on real output pixels, else 0.0
    y_ref:    (C_out, L_out_pad)      f32   conv output (pre-BN), garbage lanes zeroed
    ps_ref:   (C_out, 2)              f32   per-image [sum, sum-of-squares] over valid pixels
    """
    c_out, L = y_ref.shape
    acc = jnp.zeros((c_out, L), jnp.float32)
    for kh in range(K):
        for kw in range(K):
            t = kh * K + kw
            shift = kh * Wp + kw
            w_t = w_ref[t]                        # (C_out, C_in_pad) bf16
            x_t = x_ref[:, shift:shift + L]       # (C_in_pad, L) bf16 shifted window
            acc = acc + jnp.dot(w_t, x_t, preferred_element_type=jnp.float32)
    y = acc * mask_ref[...]                       # zero the wrap/padding lanes
    y_ref[...] = y
    ps_ref[:, 0:1] = jnp.sum(y, axis=1, keepdims=True)
    ps_ref[:, 1:2] = jnp.sum(y * y, axis=1, keepdims=True)


def _bn_act_kernel(y_ref, sc_ref, o_ref, *, negative_slope):
    """Per-channel affine (folded BatchNorm) + ReLU/LeakyReLU, lane-dense."""
    y = y_ref[...] * sc_ref[:, 0:1] + sc_ref[:, 1:2]
    if negative_slope is None:
        y = jnp.maximum(y, 0.0)
    else:
        y = jnp.where(y > 0, y, jnp.float32(negative_slope) * y)
    o_ref[...] = y


def conv2d_transpose_bn_relu(x_nchw, w_t, bias, gamma, beta, *,
                             stride, padding, output_padding,
                             eps=1e-5, negative_slope=None):
    """x_nchw: (N, C_in, H, W); w_t: PyTorch ConvTranspose2d weight (C_in, C_out, K, K).

    `bias` is accepted for API parity but unused: a per-channel constant is
    cancelled exactly by the batch-statistic BatchNorm that follows.
    """
    del bias
    N, C_in, H, W = x_nchw.shape
    C_in_w, C_out, K, _ = w_t.shape
    assert C_in == C_in_w
    plo = K - 1 - padding
    assert plo >= 0, "kernel assumes padding <= kernel_size - 1"

    H_out = (H - 1) * stride - 2 * padding + K + output_padding
    W_out = (W - 1) * stride - 2 * padding + K + output_padding
    Hp, Wp = H_out + K - 1, W_out + K - 1            # dilated + padded extents
    Hd, Wd = (H - 1) * stride + 1, (W - 1) * stride + 1

    KK = K * K
    C_in_pad = _round_up(C_in, 8)
    L_out_pad = _round_up(H_out * Wp, 128)           # lane-dense flat output length
    shift_max = (K - 1) * Wp + (K - 1)
    L_in_pad = _round_up(L_out_pad + shift_max, 128)

    # ---------------- glue: dilate + pad + flatten (channel-major) ----------------
    # TODO(synk): for very large feature maps, tile the flattened spatial axis with
    # halo DMA (one image no longer fits VMEM) and fold the dilation scatter into
    # the kernel's DMA pattern instead of this wrapper-side scatter.
    xp = jnp.zeros((N, C_in, Hp, Wp), jnp.float32)
    xp = xp.at[:, :, plo:plo + Hd:stride, plo:plo + Wd:stride].set(
        x_nchw.astype(jnp.float32))
    xf = jnp.zeros((N, C_in_pad, L_in_pad), jnp.bfloat16)
    xf = xf.at[:, :C_in, :Hp * Wp].set(
        xp.reshape(N, C_in, Hp * Wp).astype(jnp.bfloat16))

    # Flipped weights: one (C_out, C_in_pad) slab per tap, bf16 for the MXU.
    w2 = jnp.transpose(w_t[:, :, ::-1, ::-1], (2, 3, 1, 0)).reshape(KK, C_out, C_in)
    w2p = jnp.zeros((KK, C_out, C_in_pad), jnp.bfloat16)
    w2p = w2p.at[:, :, :C_in].set(w2.astype(jnp.bfloat16))

    # Validity mask over the padded flat output grid (drops the K-1 wrap columns
    # per row and the tail alignment padding).
    lidx = jnp.arange(L_out_pad)
    mask = (((lidx % Wp) < W_out) & (lidx < H_out * Wp)).astype(jnp.float32)[None, :]

    flops = 2 * N * KK * C_in_pad * C_out * L_out_pad
    bytes_accessed = (N * C_in_pad * L_in_pad * 2 + KK * C_out * C_in_pad * 2
                      + L_out_pad * 4 + N * C_out * L_out_pad * 4 + N * C_out * 2 * 4)

    # -------- phase 1: transposed conv + per-image BN partial sums --------
    conv_flat, psums = pl.pallas_call(
        functools.partial(_convt_tap_kernel, K=K, Wp=Wp),
        out_shape=(jax.ShapeDtypeStruct((N, C_out, L_out_pad), jnp.float32),
                   jax.ShapeDtypeStruct((N, C_out, 2), jnp.float32)),
        grid=(N,),
        in_specs=[pl.BlockSpec((None, C_in_pad, L_in_pad), lambda n: (n, 0, 0)),
                  pl.BlockSpec((KK, C_out, C_in_pad), lambda n: (0, 0, 0)),
                  pl.BlockSpec((1, L_out_pad), lambda n: (0, 0))],
        out_specs=(pl.BlockSpec((None, C_out, L_out_pad), lambda n: (n, 0, 0)),
                   pl.BlockSpec((None, C_out, 2), lambda n: (n, 0, 0))),
        compiler_params=pltpu.CompilerParams(
            dimension_semantics=("parallel",),
            vmem_limit_bytes=48 * 1024 * 1024),
        cost_estimate=pl.CostEstimate(flops=flops, transcendentals=0,
                                      bytes_accessed=bytes_accessed),
    )(xf, w2p, mask)

    # ---- BatchNorm2d batch statistics (training mode, biased variance) ----
    tot = jnp.sum(psums, axis=0)                     # (C_out, 2)
    cnt = jnp.float32(N * H_out * W_out)
    mean = tot[:, 0] / cnt
    var = jnp.maximum(tot[:, 1] / cnt - mean * mean, 0.0)
    scale = gamma.astype(jnp.float32) * lax.rsqrt(var + eps)
    shift = beta.astype(jnp.float32) - mean * scale
    sc = jnp.stack([scale, shift], axis=1)           # (C_out, 2)

    # -------- phase 2: normalize + activation (lane-dense elementwise) --------
    out_flat = pl.pallas_call(
        functools.partial(_bn_act_kernel, negative_slope=negative_slope),
        out_shape=jax.ShapeDtypeStruct((N, C_out, L_out_pad), jnp.float32),
        grid=(N,),
        in_specs=[pl.BlockSpec((None, C_out, L_out_pad), lambda n: (n, 0, 0)),
                  pl.BlockSpec((C_out, 2), lambda n: (0, 0))],
        out_specs=pl.BlockSpec((None, C_out, L_out_pad), lambda n: (n, 0, 0)),
        compiler_params=pltpu.CompilerParams(dimension_semantics=("parallel",)),
    )(conv_flat, sc)

    # C-major flat layout -> NCHW with a cheap width slice; no transpose needed.
    out = out_flat[:, :, :H_out * Wp].reshape(N, C_out, H_out, Wp)[:, :, :, :W_out]
    return out


def _reference(x, w_t, bias, gamma, beta, *, stride, padding, output_padding,
               eps=1e-5, negative_slope=None):
    """Pure-JAX reference (XLA conv) for the correctness check."""
    C_in, C_out, K, _ = w_t.shape
    w_conv = jnp.transpose(w_t[:, :, ::-1, ::-1], (1, 0, 2, 3))   # (O, I, K, K)
    plo = K - 1 - padding
    phi = plo + output_padding
    y = lax.conv_general_dilated(
        x, w_conv, window_strides=(1, 1),
        padding=[(plo, phi), (plo, phi)],
        lhs_dilation=(stride, stride),
        dimension_numbers=('NCHW', 'OIHW', 'NCHW'))
    y = y + bias[None, :, None, None]
    mean = jnp.mean(y, axis=(0, 2, 3), keepdims=True)
    var = jnp.mean((y - mean) ** 2, axis=(0, 2, 3), keepdims=True)
    y = (y - mean) / jnp.sqrt(var + eps)
    y = y * gamma[None, :, None, None] + beta[None, :, None, None]
    if negative_slope is None:
        return jnp.maximum(y, 0.0)
    return jnp.where(y > 0, y, negative_slope * y)


if __name__ == "__main__":
    # Module config: Conv2dTranspose(4, 8, kernel_size=4, stride=2, padding=1,
    #                                output_padding=0, normalize=True, leakyRelu=None)
    N, C_in, H, W = 2, 4, 16, 16
    C_out, K, stride, padding, out_pad = 8, 4, 2, 1, 0

    key = jax.random.PRNGKey(0)
    k1, k2, k3, k4, k5 = jax.random.split(key, 5)
    x = jax.random.normal(k1, (N, C_in, H, W), jnp.float32)
    w_t = 0.1 * jax.random.normal(k2, (C_in, C_out, K, K), jnp.float32)   # ConvT weight
    bias = 0.1 * jax.random.normal(k3, (C_out,), jnp.float32)             # ConvT bias
    gamma = 1.0 + 0.1 * jax.random.normal(k4, (C_out,), jnp.float32)      # BN weight
    beta = 0.1 * jax.random.normal(k5, (C_out,), jnp.float32)             # BN bias

    fwd = jax.jit(functools.partial(conv2d_transpose_bn_relu,
                                    stride=stride, padding=padding,
                                    output_padding=out_pad))
    out = jax.block_until_ready(fwd(x, w_t, bias, gamma, beta))

    H_out = (H - 1) * stride - 2 * padding + K + out_pad
    W_out = (W - 1) * stride - 2 * padding + K + out_pad
    assert out.shape == (N, C_out, H_out, W_out), out.shape

    # Reference on bf16-rounded operands (kernel feeds the MXU bf16, accumulates f32).
    x_q = x.astype(jnp.bfloat16).astype(jnp.float32)
    w_q = w_t.astype(jnp.bfloat16).astype(jnp.float32)
    ref = _reference(x_q, w_q, bias, gamma, beta,
                     stride=stride, padding=padding, output_padding=out_pad)
    err = float(jnp.max(jnp.abs(out - ref)))
    assert err < 2e-3, f"max abs error {err}"

    print("KERNEL_OK")
</pallas_src>

<mosaic_0001>
module attributes {stable_mosaic.version = 11 : i64} {
  func.func @_convt_tap_kernel(%arg0: i32, %arg1: memref<1x8x1280xbf16, #tpu.memory_space<vmem>>, %arg2: memref<16x8x8xbf16, #tpu.memory_space<vmem>>, %arg3: memref<1x1152xf32, #tpu.memory_space<vmem>>, %arg4: memref<1x8x1152xf32, #tpu.memory_space<vmem>>, %arg5: memref<1x8x2xf32, #tpu.memory_space<vmem>>) attributes {dimension_semantics = [#tpu.dimension_semantics<parallel>], iteration_bounds = array<i64: 2>, scalar_prefetch = 0 : i64, scratch_operands = 0 : i64, tpu.core_type = #tpu.core_type<tc>, window_params = [{transform_indices = @transform_0, window_bounds = array<i64: 1, 8, 1280>}, {pipeline_mode = #tpu.pipeline_mode<synchronous>, transform_indices = @transform_1, window_bounds = array<i64: 16, 8, 8>}, {pipeline_mode = #tpu.pipeline_mode<synchronous>, transform_indices = @transform_2, window_bounds = array<i64: 1, 1152>}, {transform_indices = @transform_3, window_bounds = array<i64: 1, 8, 1152>}, {transform_indices = @transform_4, window_bounds = array<i64: 1, 8, 2>}]} {
    %cst = arith.constant 0.000000e+00 : f32
    %0 = vector.broadcast %cst : f32 to vector<8x1152xf32>
    %c0 = arith.constant 0 : index
    %c0_0 = arith.constant 0 : index
    %c0_1 = arith.constant 0 : index
    %1 = vector.load %arg2[%c0, %c0_0, %c0_1] : memref<16x8x8xbf16, #tpu.memory_space<vmem>>, vector<1x8x8xbf16>
    %2 = vector.shape_cast %1 : vector<1x8x8xbf16> to vector<8x8xbf16>
    %c0_2 = arith.constant 0 : index
    %c0_3 = arith.constant 0 : index
    %c0_4 = arith.constant 0 : index
    %3 = vector.load %arg1[%c0_2, %c0_3, %c0_4] : memref<1x8x1280xbf16, #tpu.memory_space<vmem>>, vector<1x8x1152xbf16>
    %4 = vector.shape_cast %3 : vector<1x8x1152xbf16> to vector<8x1152xbf16>
    %cst_5 = arith.constant dense<0.000000e+00> : vector<8x1152xf32>
    %5 = tpu.matmul %2, %4, %cst_5 {dimension_numbers = #tpu.dot_dimension_numbers<[1], [0], [0], [1], [0, 0, 1, 1], [], []>} : vector<8x8xbf16>, vector<8x1152xbf16>, vector<8x1152xf32> -> vector<8x1152xf32>
    %6 = arith.addf %0, %5 : vector<8x1152xf32>
    %c1 = arith.constant 1 : index
    %c0_6 = arith.constant 0 : index
    %c0_7 = arith.constant 0 : index
    %7 = vector.load %arg2[%c1, %c0_6, %c0_7] : memref<16x8x8xbf16, #tpu.memory_space<vmem>>, vector<1x8x8xbf16>
    %8 = vector.shape_cast %7 : vector<1x8x8xbf16> to vector<8x8xbf16>
    %c0_8 = arith.constant 0 : index
    %c0_9 = arith.constant 0 : index
    %c1_10 = arith.constant 1 : index
    %9 = vector.load %arg1[%c0_8, %c0_9, %c1_10] : memref<1x8x1280xbf16, #tpu.memory_space<vmem>>, vector<1x8x1152xbf16>
    %10 = vector.shape_cast %9 : vector<1x8x1152xbf16> to vector<8x1152xbf16>
    %cst_11 = arith.constant dense<0.000000e+00> : vector<8x1152xf32>
    %11 = tpu.matmul %8, %10, %cst_11 {dimension_numbers = #tpu.dot_dimension_numbers<[1], [0], [0], [1], [0, 0, 1, 1], [], []>} : vector<8x8xbf16>, vector<8x1152xbf16>, vector<8x1152xf32> -> vector<8x1152xf32>
    %12 = arith.addf %6, %11 : vector<8x1152xf32>
    %c2 = arith.constant 2 : index
    %c0_12 = arith.constant 0 : index
    %c0_13 = arith.constant 0 : index
    %13 = vector.load %arg2[%c2, %c0_12, %c0_13] : memref<16x8x8xbf16, #tpu.memory_space<vmem>>, vector<1x8x8xbf16>
    %14 = vector.shape_cast %13 : vector<1x8x8xbf16> to vector<8x8xbf16>
    %c0_14 = arith.constant 0 : index
    %c0_15 = arith.constant 0 : index
    %c2_16 = arith.constant 2 : index
    %15 = vector.load %arg1[%c0_14, %c0_15, %c2_16] : memref<1x8x1280xbf16, #tpu.memory_space<vmem>>, vector<1x8x1152xbf16>
    %16 = vector.shape_cast %15 : vector<1x8x1152xbf16> to vector<8x1152xbf16>
    %cst_17 = arith.constant dense<0.000000e+00> : vector<8x1152xf32>
    %17 = tpu.matmul %14, %16, %cst_17 {dimension_numbers = #tpu.dot_dimension_numbers<[1], [0], [0], [1], [0, 0, 1, 1], [], []>} : vector<8x8xbf16>, vector<8x1152xbf16>, vector<8x1152xf32> -> vector<8x1152xf32>
    %18 = arith.addf %12, %17 : vector<8x1152xf32>
    %c3 = arith.constant 3 : index
    %c0_18 = arith.constant 0 : index
    %c0_19 = arith.constant 0 : index
    %19 = vector.load %arg2[%c3, %c0_18, %c0_19] : memref<16x8x8xbf16, #tpu.memory_space<vmem>>, vector<1x8x8xbf16>
    %20 = vector.shape_cast %19 : vector<1x8x8xbf16> to vector<8x8xbf16>
    %c0_20 = arith.constant 0 : index
    %c0_21 = arith.constant 0 : index
    %c3_22 = arith.constant 3 : index
    %21 = vector.load %arg1[%c0_20, %c0_21, %c3_22] : memref<1x8x1280xbf16, #tpu.memory_space<vmem>>, vector<1x8x1152xbf16>
    %22 = vector.shape_cast %21 : vector<1x8x1152xbf16> to vector<8x1152xbf16>
    %cst_23 = arith.constant dense<0.000000e+00> : vector<8x1152xf32>
    %23 = tpu.matmul %20, %22, %cst_23 {dimension_numbers = #tpu.dot_dimension_numbers<[1], [0], [0], [1], [0, 0, 1, 1], [], []>} : vector<8x8xbf16>, vector<8x1152xbf16>, vector<8x1152xf32> -> vector<8x1152xf32>
    %24 = arith.addf %18, %23 : vector<8x1152xf32>
    %c4 = arith.constant 4 : index
    %c0_24 = arith.constant 0 : index
    %c0_25 = arith.constant 0 : index
    %25 = vector.load %arg2[%c4, %c0_24, %c0_25] : memref<16x8x8xbf16, #tpu.memory_space<vmem>>, vector<1x8x8xbf16>
    %26 = vector.shape_cast %25 : vector<1x8x8xbf16> to vector<8x8xbf16>
    %c0_26 = arith.constant 0 : index
    %c0_27 = arith.constant 0 : index
    %c35 = arith.constant 35 : index
    %27 = vector.load %arg1[%c0_26, %c0_27, %c35] : memref<1x8x1280xbf16, #tpu.memory_space<vmem>>, vector<1x8x1152xbf16>
    %28 = vector.shape_cast %27 : vector<1x8x1152xbf16> to vector<8x1152xbf16>
    %cst_28 = arith.constant dense<0.000000e+00> : vector<8x1152xf32>
    %29 = tpu.matmul %26, %28, %cst_28 {dimension_numbers = #tpu.dot_dimension_numbers<[1], [0], [0], [1], [0, 0, 1, 1], [], []>} : vector<8x8xbf16>, vector<8x1152xbf16>, vector<8x1152xf32> -> vector<8x1152xf32>
    %30 = arith.addf %24, %29 : vector<8x1152xf32>
    %c5 = arith.constant 5 : index
    %c0_29 = arith.constant 0 : index
    %c0_30 = arith.constant 0 : index
    %31 = vector.load %arg2[%c5, %c0_29, %c0_30] : memref<16x8x8xbf16, #tpu.memory_space<vmem>>, vector<1x8x8xbf16>
    %32 = vector.shape_cast %31 : vector<1x8x8xbf16> to vector<8x8xbf16>
    %c0_31 = arith.constant 0 : index
    %c0_32 = arith.constant 0 : index
    %c36 = arith.constant 36 : index
    %33 = vector.load %arg1[%c0_31, %c0_32, %c36] : memref<1x8x1280xbf16, #tpu.memory_space<vmem>>, vector<1x8x1152xbf16>
    %34 = vector.shape_cast %33 : vector<1x8x1152xbf16> to vector<8x1152xbf16>
    %cst_33 = arith.constant dense<0.000000e+00> : vector<8x1152xf32>
    %35 = tpu.matmul %32, %34, %cst_33 {dimension_numbers = #tpu.dot_dimension_numbers<[1], [0], [0], [1], [0, 0, 1, 1], [], []>} : vector<8x8xbf16>, vector<8x1152xbf16>, vector<8x1152xf32> -> vector<8x1152xf32>
    %36 = arith.addf %30, %35 : vector<8x1152xf32>
    %c6 = arith.constant 6 : index
    %c0_34 = arith.constant 0 : index
    %c0_35 = arith.constant 0 : index
    %37 = vector.load %arg2[%c6, %c0_34, %c0_35] : memref<16x8x8xbf16, #tpu.memory_space<vmem>>, vector<1x8x8xbf16>
    %38 = vector.shape_cast %37 : vector<1x8x8xbf16> to vector<8x8xbf16>
    %c0_36 = arith.constant 0 : index
    %c0_37 = arith.constant 0 : index
    %c37 = arith.constant 37 : index
    %39 = vector.load %arg1[%c0_36, %c0_37, %c37] : memref<1x8x1280xbf16, #tpu.memory_space<vmem>>, vector<1x8x1152xbf16>
    %40 = vector.shape_cast %39 : vector<1x8x1152xbf16> to vector<8x1152xbf16>
    %cst_38 = arith.constant dense<0.000000e+00> : vector<8x1152xf32>
    %41 = tpu.matmul %38, %40, %cst_38 {dimension_numbers = #tpu.dot_dimension_numbers<[1], [0], [0], [1], [0, 0, 1, 1], [], []>} : vector<8x8xbf16>, vector<8x1152xbf16>, vector<8x1152xf32> -> vector<8x1152xf32>
    %42 = arith.addf %36, %41 : vector<8x1152xf32>
    %c7 = arith.constant 7 : index
    %c0_39 = arith.constant 0 : index
    %c0_40 = arith.constant 0 : index
    %43 = vector.load %arg2[%c7, %c0_39, %c0_40] : memref<16x8x8xbf16, #tpu.memory_space<vmem>>, vector<1x8x8xbf16>
    %44 = vector.shape_cast %43 : vector<1x8x8xbf16> to vector<8x8xbf16>
    %c0_41 = arith.constant 0 : index
    %c0_42 = arith.constant 0 : index
    %c38 = arith.constant 38 : index
    %45 = vector.load %arg1[%c0_41, %c0_42, %c38] : memref<1x8x1280xbf16, #tpu.memory_space<vmem>>, vector<1x8x1152xbf16>
    %46 = vector.shape_cast %45 : vector<1x8x1152xbf16> to vector<8x1152xbf16>
    %cst_43 = arith.constant dense<0.000000e+00> : vector<8x1152xf32>
    %47 = tpu.matmul %44, %46, %cst_43 {dimension_numbers = #tpu.dot_dimension_numbers<[1], [0], [0], [1], [0, 0, 1, 1], [], []>} : vector<8x8xbf16>, vector<8x1152xbf16>, vector<8x1152xf32> -> vector<8x1152xf32>
    %48 = arith.addf %42, %47 : vector<8x1152xf32>
    %c8 = arith.constant 8 : index
    %c0_44 = arith.constant 0 : index
    %c0_45 = arith.constant 0 : index
    %49 = vector.load %arg2[%c8, %c0_44, %c0_45] : memref<16x8x8xbf16, #tpu.memory_space<vmem>>, vector<1x8x8xbf16>
    %50 = vector.shape_cast %49 : vector<1x8x8xbf16> to vector<8x8xbf16>
    %c0_46 = arith.constant 0 : index
    %c0_47 = arith.constant 0 : index
    %c70 = arith.constant 70 : index
    %51 = vector.load %arg1[%c0_46, %c0_47, %c70] : memref<1x8x1280xbf16, #tpu.memory_space<vmem>>, vector<1x8x1152xbf16>
    %52 = vector.shape_cast %51 : vector<1x8x1152xbf16> to vector<8x1152xbf16>
    %cst_48 = arith.constant dense<0.000000e+00> : vector<8x1152xf32>
    %53 = tpu.matmul %50, %52, %cst_48 {dimension_numbers = #tpu.dot_dimension_numbers<[1], [0], [0], [1], [0, 0, 1, 1], [], []>} : vector<8x8xbf16>, vector<8x1152xbf16>, vector<8x1152xf32> -> vector<8x1152xf32>
    %54 = arith.addf %48, %53 : vector<8x1152xf32>
    %c9 = arith.constant 9 : index
    %c0_49 = arith.constant 0 : index
    %c0_50 = arith.constant 0 : index
    %55 = vector.load %arg2[%c9, %c0_49, %c0_50] : memref<16x8x8xbf16, #tpu.memory_space<vmem>>, vector<1x8x8xbf16>
    %56 = vector.shape_cast %55 : vector<1x8x8xbf16> to vector<8x8xbf16>
    %c0_51 = arith.constant 0 : index
    %c0_52 = arith.constant 0 : index
    %c71 = arith.constant 71 : index
    %57 = vector.load %arg1[%c0_51, %c0_52, %c71] : memref<1x8x1280xbf16, #tpu.memory_space<vmem>>, vector<1x8x1152xbf16>
    %58 = vector.shape_cast %57 : vector<1x8x1152xbf16> to vector<8x1152xbf16>
    %cst_53 = arith.constant dense<0.000000e+00> : vector<8x1152xf32>
    %59 = tpu.matmul %56, %58, %cst_53 {dimension_numbers = #tpu.dot_dimension_numbers<[1], [0], [0], [1], [0, 0, 1, 1], [], []>} : vector<8x8xbf16>, vector<8x1152xbf16>, vector<8x1152xf32> -> vector<8x1152xf32>
    %60 = arith.addf %54, %59 : vector<8x1152xf32>
    %c10 = arith.constant 10 : index
    %c0_54 = arith.constant 0 : index
    %c0_55 = arith.constant 0 : index
    %61 = vector.load %arg2[%c10, %c0_54, %c0_55] : memref<16x8x8xbf16, #tpu.memory_space<vmem>>, vector<1x8x8xbf16>
    %62 = vector.shape_cast %61 : vector<1x8x8xbf16> to vector<8x8xbf16>
    %c0_56 = arith.constant 0 : index
    %c0_57 = arith.constant 0 : index
    %c72 = arith.constant 72 : index
    %63 = vector.load %arg1[%c0_56, %c0_57, %c72] : memref<1x8x1280xbf16, #tpu.memory_space<vmem>>, vector<1x8x1152xbf16>
    %64 = vector.shape_cast %63 : vector<1x8x1152xbf16> to vector<8x1152xbf16>
    %cst_58 = arith.constant dense<0.000000e+00> : vector<8x1152xf32>
    %65 = tpu.matmul %62, %64, %cst_58 {dimension_numbers = #tpu.dot_dimension_numbers<[1], [0], [0], [1], [0, 0, 1, 1], [], []>} : vector<8x8xbf16>, vector<8x1152xbf16>, vector<8x1152xf32> -> vector<8x1152xf32>
    %66 = arith.addf %60, %65 : vector<8x1152xf32>
    %c11 = arith.constant 11 : index
    %c0_59 = arith.constant 0 : index
    %c0_60 = arith.constant 0 : index
    %67 = vector.load %arg2[%c11, %c0_59, %c0_60] : memref<16x8x8xbf16, #tpu.memory_space<vmem>>, vector<1x8x8xbf16>
    %68 = vector.shape_cast %67 : vector<1x8x8xbf16> to vector<8x8xbf16>
    %c0_61 = arith.constant 0 : index
    %c0_62 = arith.constant 0 : index
    %c73 = arith.constant 73 : index
    %69 = vector.load %arg1[%c0_61, %c0_62, %c73] : memref<1x8x1280xbf16, #tpu.memory_space<vmem>>, vector<1x8x1152xbf16>
    %70 = vector.shape_cast %69 : vector<1x8x1152xbf16> to vector<8x1152xbf16>
    %cst_63 = arith.constant dense<0.000000e+00> : vector<8x1152xf32>
    %71 = tpu.matmul %68, %70, %cst_63 {dimension_numbers = #tpu.dot_dimension_numbers<[1], [0], [0], [1], [0, 0, 1, 1], [], []>} : vector<8x8xbf16>, vector<8x1152xbf16>, vector<8x1152xf32> -> vector<8x1152xf32>
    %72 = arith.addf %66, %71 : vector<8x1152xf32>
    %c12 = arith.constant 12 : index
    %c0_64 = arith.constant 0 : index
    %c0_65 = arith.constant 0 : index
    %73 = vector.load %arg2[%c12, %c0_64, %c0_65] : memref<16x8x8xbf16, #tpu.memory_space<vmem>>, vector<1x8x8xbf16>
    %74 = vector.shape_cast %73 : vector<1x8x8xbf16> to vector<8x8xbf16>
    %c0_66 = arith.constant 0 : index
    %c0_67 = arith.constant 0 : index
    %c105 = arith.constant 105 : index
    %75 = vector.load %arg1[%c0_66, %c0_67, %c105] : memref<1x8x1280xbf16, #tpu.memory_space<vmem>>, vector<1x8x1152xbf16>
    %76 = vector.shape_cast %75 : vector<1x8x1152xbf16> to vector<8x1152xbf16>
    %cst_68 = arith.constant dense<0.000000e+00> : vector<8x1152xf32>
    %77 = tpu.matmul %74, %76, %cst_68 {dimension_numbers = #tpu.dot_dimension_numbers<[1], [0], [0], [1], [0, 0, 1, 1], [], []>} : vector<8x8xbf16>, vector<8x1152xbf16>, vector<8x1152xf32> -> vector<8x1152xf32>
    %78 = arith.addf %72, %77 : vector<8x1152xf32>
    %c13 = arith.constant 13 : index
    %c0_69 = arith.constant 0 : index
    %c0_70 = arith.constant 0 : index
    %79 = vector.load %arg2[%c13, %c0_69, %c0_70] : memref<16x8x8xbf16, #tpu.memory_space<vmem>>, vector<1x8x8xbf16>
    %80 = vector.shape_cast %79 : vector<1x8x8xbf16> to vector<8x8xbf16>
    %c0_71 = arith.constant 0 : index
    %c0_72 = arith.constant 0 : index
    %c106 = arith.constant 106 : index
    %81 = vector.load %arg1[%c0_71, %c0_72, %c106] : memref<1x8x1280xbf16, #tpu.memory_space<vmem>>, vector<1x8x1152xbf16>
    %82 = vector.shape_cast %81 : vector<1x8x1152xbf16> to vector<8x1152xbf16>
    %cst_73 = arith.constant dense<0.000000e+00> : vector<8x1152xf32>
    %83 = tpu.matmul %80, %82, %cst_73 {dimension_numbers = #tpu.dot_dimension_numbers<[1], [0], [0], [1], [0, 0, 1, 1], [], []>} : vector<8x8xbf16>, vector<8x1152xbf16>, vector<8x1152xf32> -> vector<8x1152xf32>
    %84 = arith.addf %78, %83 : vector<8x1152xf32>
    %c14 = arith.constant 14 : index
    %c0_74 = arith.constant 0 : index
    %c0_75 = arith.constant 0 : index
    %85 = vector.load %arg2[%c14, %c0_74, %c0_75] : memref<16x8x8xbf16, #tpu.memory_space<vmem>>, vector<1x8x8xbf16>
    %86 = vector.shape_cast %85 : vector<1x8x8xbf16> to vector<8x8xbf16>
    %c0_76 = arith.constant 0 : index
    %c0_77 = arith.constant 0 : index
    %c107 = arith.constant 107 : index
    %87 = vector.load %arg1[%c0_76, %c0_77, %c107] : memref<1x8x1280xbf16, #tpu.memory_space<vmem>>, vector<1x8x1152xbf16>
    %88 = vector.shape_cast %87 : vector<1x8x1152xbf16> to vector<8x1152xbf16>
    %cst_78 = arith.constant dense<0.000000e+00> : vector<8x1152xf32>
    %89 = tpu.matmul %86, %88, %cst_78 {dimension_numbers = #tpu.dot_dimension_numbers<[1], [0], [0], [1], [0, 0, 1, 1], [], []>} : vector<8x8xbf16>, vector<8x1152xbf16>, vector<8x1152xf32> -> vector<8x1152xf32>
    %90 = arith.addf %84, %89 : vector<8x1152xf32>
    %c15 = arith.constant 15 : index
    %c0_79 = arith.constant 0 : index
    %c0_80 = arith.constant 0 : index
    %91 = vector.load %arg2[%c15, %c0_79, %c0_80] : memref<16x8x8xbf16, #tpu.memory_space<vmem>>, vector<1x8x8xbf16>
    %92 = vector.shape_cast %91 : vector<1x8x8xbf16> to vector<8x8xbf16>
    %c0_81 = arith.constant 0 : index
    %c0_82 = arith.constant 0 : index
    %c108 = arith.constant 108 : index
    %93 = vector.load %arg1[%c0_81, %c0_82, %c108] : memref<1x8x1280xbf16, #tpu.memory_space<vmem>>, vector<1x8x1152xbf16>
    %94 = vector.shape_cast %93 : vector<1x8x1152xbf16> to vector<8x1152xbf16>
    %cst_83 = arith.constant dense<0.000000e+00> : vector<8x1152xf32>
    %95 = tpu.matmul %92, %94, %cst_83 {dimension_numbers = #tpu.dot_dimension_numbers<[1], [0], [0], [1], [0, 0, 1, 1], [], []>} : vector<8x8xbf16>, vector<8x1152xbf16>, vector<8x1152xf32> -> vector<8x1152xf32>
    %96 = arith.addf %90, %95 : vector<8x1152xf32>
    %c0_84 = arith.constant 0 : index
    %c0_85 = arith.constant 0 : index
    %97 = vector.load %arg3[%c0_84, %c0_85] : memref<1x1152xf32, #tpu.memory_space<vmem>>, vector<1x1152xf32>
    %98 = vector.broadcast %97 : vector<1x1152xf32> to vector<8x1152xf32>
    %99 = arith.mulf %96, %98 : vector<8x1152xf32>
    %c0_86 = arith.constant 0 : index
    %c0_87 = arith.constant 0 : index
    %c0_88 = arith.constant 0 : index
    %100 = vector.load %arg4[%c0_86, %c0_87, %c0_88] : memref<1x8x1152xf32, #tpu.memory_space<vmem>>, vector<1x8x1152xf32>
    %101 = vector.shape_cast %100 : vector<1x8x1152xf32> to vector<8x1152xf32>
    %102 = vector.shape_cast %99 : vector<8x1152xf32> to vector<1x8x1152xf32>
    tpu.vector_store %arg4[%c0_86, %c0_87, %c0_88], %102 {strides = array<i32>} : memref<1x8x1152xf32, #tpu.memory_space<vmem>>, vector<1x8x1152xf32>,
    %cst_89 = arith.constant dense<0.000000e+00> : vector<8xf32>
    %103 = vector.multi_reduction <add>, %99, %cst_89 [1] : vector<8x1152xf32> to vector<8xf32>
    %104 = vector.shape_cast %103 : vector<8xf32> to vector<8x1xf32>
    %c0_90 = arith.constant 0 : index
    %c0_91 = arith.constant 0 : index
    %c0_92 = arith.constant 0 : index
    %105 = vector.load %arg5[%c0_90, %c0_91, %c0_92] : memref<1x8x2xf32, #tpu.memory_space<vmem>>, vector<1x8x1xf32>
    %106 = vector.shape_cast %105 : vector<1x8x1xf32> to vector<8x1xf32>
    %107 = vector.shape_cast %104 : vector<8x1xf32> to vector<1x8x1xf32>
    tpu.vector_store %arg5[%c0_90, %c0_91, %c0_92], %107 {strides = array<i32>} : memref<1x8x2xf32, #tpu.memory_space<vmem>>, vector<1x8x1xf32>,
    %108 = arith.mulf %99, %99 : vector<8x1152xf32>
    %cst_93 = arith.constant dense<0.000000e+00> : vector<8xf32>
    %109 = vector.multi_reduction <add>, %108, %cst_93 [1] : vector<8x1152xf32> to vector<8xf32>
    %110 = vector.shape_cast %109 : vector<8xf32> to vector<8x1xf32>
    %c0_94 = arith.constant 0 : index
    %c0_95 = arith.constant 0 : index
    %c1_96 = arith.constant 1 : index
    %111 = vector.load %arg5[%c0_94, %c0_95, %c1_96] : memref<1x8x2xf32, #tpu.memory_space<vmem>>, vector<1x8x1xf32>
    %112 = vector.shape_cast %111 : vector<1x8x1xf32> to vector<8x1xf32>
    %113 = vector.shape_cast %110 : vector<8x1xf32> to vector<1x8x1xf32>
    tpu.vector_store %arg5[%c0_94, %c0_95, %c1_96], %113 {strides = array<i32>} : memref<1x8x2xf32, #tpu.memory_space<vmem>>, vector<1x8x1xf32>,
    return
  }
  func.func @transform_0(%arg0: i32) -> (i32, i32, i32) {
    %c0_i32 = arith.constant 0 : i32
    %c0_i32_0 = arith.constant 0 : i32
    %c0_i32_1 = arith.constant 0 : i32
    return %arg0, %c0_i32, %c0_i32_0 : i32, i32, i32
  }
  func.func @transform_1(%arg0: i32) -> (i32, i32, i32) {
    %c0_i32 = arith.constant 0 : i32
    %c0_i32_0 = arith.constant 0 : i32
    %c0_i32_1 = arith.constant 0 : i32
    %c0_i32_2 = arith.constant 0 : i32
    return %c0_i32, %c0_i32_0, %c0_i32_1 : i32, i32, i32
  }
  func.func @transform_2(%arg0: i32) -> (i32, i32) {
    %c0_i32 = arith.constant 0 : i32
    %c0_i32_0 = arith.constant 0 : i32
    %c0_i32_1 = arith.constant 0 : i32
    return %c0_i32, %c0_i32_0 : i32, i32
  }
  func.func @transform_3(%arg0: i32) -> (i32, i32, i32) {
    %c0_i32 = arith.constant 0 : i32
    %c0_i32_0 = arith.constant 0 : i32
    %c0_i32_1 = arith.constant 0 : i32
    return %arg0, %c0_i32, %c0_i32_0 : i32, i32, i32
  }
  func.func @transform_4(%arg0: i32) -> (i32, i32, i32) {
    %c0_i32 = arith.constant 0 : i32
    %c0_i32_0 = arith.constant 0 : i32
    %c0_i32_1 = arith.constant 0 : i32
    return %arg0, %c0_i32, %c0_i32_0 : i32, i32, i32
  }
}

module attributes {stable_mosaic.version = 11 : i64} {
  func.func @_bn_act_kernel(%arg0: i32, %arg1: memref<1x8x1152xf32, #tpu.memory_space<vmem>>, %arg2: memref<8x2xf32, #tpu.memory_space<vmem>>, %arg3: memref<1x8x1152xf32, #tpu.memory_space<vmem>>) attributes {dimension_semantics = [#tpu.dimension_semantics<parallel>], iteration_bounds = array<i64: 2>, scalar_prefetch = 0 : i64, scratch_operands = 0 : i64, tpu.core_type = #tpu.core_type<tc>, window_params = [{transform_indices = @transform_0, window_bounds = array<i64: 1, 8, 1152>}, {pipeline_mode = #tpu.pipeline_mode<synchronous>, transform_indices = @transform_1, window_bounds = array<i64: 8, 2>}, {transform_indices = @transform_2, window_bounds = array<i64: 1, 8, 1152>}]} {
    %c0 = arith.constant 0 : index
    %c0_0 = arith.constant 0 : index
    %c0_1 = arith.constant 0 : index
    %0 = vector.load %arg1[%c0, %c0_0, %c0_1] : memref<1x8x1152xf32, #tpu.memory_space<vmem>>, vector<1x8x1152xf32>
    %1 = vector.shape_cast %0 : vector<1x8x1152xf32> to vector<8x1152xf32>
    %c0_2 = arith.constant 0 : index
    %c0_3 = arith.constant 0 : index
    %2 = vector.load %arg2[%c0_2, %c0_3] : memref<8x2xf32, #tpu.memory_space<vmem>>, vector<8x1xf32>
    %3 = vector.broadcast %2 : vector<8x1xf32> to vector<8x1152xf32>
    %4 = arith.mulf %1, %3 : vector<8x1152xf32>
    %c0_4 = arith.constant 0 : index
    %c1 = arith.constant 1 : index
    %5 = vector.load %arg2[%c0_4, %c1] : memref<8x2xf32, #tpu.memory_space<vmem>>, vector<8x1xf32>
    %6 = vector.broadcast %5 : vector<8x1xf32> to vector<8x1152xf32>
    %7 = arith.addf %4, %6 : vector<8x1152xf32>
    %cst = arith.constant 0.000000e+00 : f32
    %8 = vector.broadcast %cst : f32 to vector<8x1152xf32>
    %9 = arith.maximumf %7, %8 : vector<8x1152xf32>
    %c0_5 = arith.constant 0 : index
    %c0_6 = arith.constant 0 : index
    %c0_7 = arith.constant 0 : index
    %10 = vector.load %arg3[%c0_5, %c0_6, %c0_7] : memref<1x8x1152xf32, #tpu.memory_space<vmem>>, vector<1x8x1152xf32>
    %11 = vector.shape_cast %10 : vector<1x8x1152xf32> to vector<8x1152xf32>
    %12 = vector.shape_cast %9 : vector<8x1152xf32> to vector<1x8x1152xf32>
    tpu.vector_store %arg3[%c0_5, %c0_6, %c0_7], %12 {strides = array<i32>} : memref<1x8x1152xf32, #tpu.memory_space<vmem>>, vector<1x8x1152xf32>,
    return
  }
  func.func @transform_0(%arg0: i32) -> (i32, i32, i32) {
    %c0_i32 = arith.constant 0 : i32
    %c0_i32_0 = arith.constant 0 : i32
    %c0_i32_1 = arith.constant 0 : i32
    return %arg0, %c0_i32, %c0_i32_0 : i32, i32, i32
  }
  func.func @transform_1(%arg0: i32) -> (i32, i32) {
    %c0_i32 = arith.constant 0 : i32
    %c0_i32_0 = arith.constant 0 : i32
    %c0_i32_1 = arith.constant 0 : i32
    return %c0_i32, %c0_i32_0 : i32, i32
  }
  func.func @transform_2(%arg0: i32) -> (i32, i32, i32) {
    %c0_i32 = arith.constant 0 : i32
    %c0_i32_0 = arith.constant 0 : i32
    %c0_i32_1 = arith.constant 0 : i32
    return %arg0, %c0_i32, %c0_i32_0 : i32, i32, i32
  }
}

</mosaic_0001>

<llo_original>
// kernel: conv2d_transpose_bn_relu.3
$region0: #{conv2d_transpose_bn_relu.3}
  #allocation0 [shape = 'u32[]', space=smem, size = 0x4, offset = 0x4, fixed_abs, tag = 'smem constant byte address 0x4 - core index']
  #allocation1 [shape = 'u32[72,128]{1,0:T(1,128)}', space=vmem, size = 0x9000, scoped, tag = 'internal scratch']
  %s0 = inlined_call_operand.vmem [shape: f32[2,8,1152], index: 0, kind: input, shape index: {}]
  %s1 = inlined_call_operand.vmem [shape: f32[8,2], index: 1, kind: input, shape index: {}]
  %s2 = inlined_call_operand.vmem [shape: f32[2,8,1152], index: 2, kind: output, shape index: {}]
  %s3 = sld [smem:[#allocation0]]
  $region41: #{conv2d_transpose_bn_relu.3} parent=0
    _
  %s5 = ssub.s32 1, %s3
  %s6 = scalar_select 0, %s5, %s3
  loop: start=0, step=1, limit=4
  $region2: #{conv2d_transpose_bn_relu.3} parent=0 // loop_pre_header
    _
  $region3: #{conv2d_transpose_bn_relu.3} parent=0 // loop_header
    %s8 = sphi 0, %s12
    %p9 = scmp.ge.s32.totalorder %s8, 4
    %s18 = sphi 0, %s20
    %s21 = sphi 0, %s18
    %s22 = sphi 0, %s21
    %s38 = sphi 0, %s22
    %s42 = sphi 0, %s42
    %s44 = sphi 0, %s42
    %s45 = sphi 0, %s44
    %s59 = sphi 0, %s45
    %s65 = sphi 0, %s67
    %s68 = sphi 0, %s65
    %s69 = sphi 0, %s68
    %s85 = sphi 0, %s69
  $region4: #{conv2d_transpose_bn_relu.3} parent=0 // loop_header_branch
    %11 = sbr.rel (%p9) target = $region8
  $region5: #{conv2d_transpose_bn_relu.3} parent=0 // loop_body
    %s13 = ssub.s32 %s8, 1
    %s14 = ssub.s32 %s8, 2
    %s15 = sadd.s32 %s8, 1
    %s16 = ssub.s32 %s8, %s15
    %p17 = scmp.eq.s32.totalorder %s16, 0
    %s19 = sadd.s32 %s18, 1
    %s20 = scalar_select %p17, %s18, %s19
    %p23 = pneg %p17
    %p24 = scmp.eq.s32.totalorder %s8, 1
    %p25 = por %p23, %p24
    %p26 = scmp.ne.s32.totalorder %s18, %s21
    %p27 = scmp.eq.s32.totalorder %s8, 0
    %p28 = por %p26, %p27
    %p29 = scmp.ne.s32.totalorder %s18, %s21
    %p30 = scmp.eq.s32.totalorder %s13, 1
    %p31 = por %p29, %p30
    %p32 = scmp.ne.s32.totalorder %s21, %s22
    %p33 = scmp.eq.s32.totalorder %s13, 0
    %p34 = por %p32, %p33
    %p35 = scmp.ne.s32.totalorder %s21, %s22
    %p36 = scmp.eq.s32.totalorder %s14, 1
    %p37 = por %p35, %p36
    %p39 = scmp.ne.s32.totalorder %s22, %s38
    %p40 = scmp.eq.s32.totalorder %s14, 0
    %p41 = por %p39, %p40
    %s43 = sadd.s32 %s42, 1
    %p46 = scmp.eq.s32.totalorder %s8, 1
    %p47 = scmp.ne.s32.totalorder %s42, %s44
    %p48 = scmp.eq.s32.totalorder %s8, 0
    %p49 = por %p47, %p48
    %p50 = scmp.ne.s32.totalorder %s42, %s44
    %p51 = scmp.eq.s32.totalorder %s13, 1
    %p52 = por %p50, %p51
    %p53 = scmp.ne.s32.totalorder %s44, %s45
    %p54 = scmp.eq.s32.totalorder %s13, 0
    %p55 = por %p53, %p54
    %p56 = scmp.ne.s32.totalorder %s44, %s45
    %p57 = scmp.eq.s32.totalorder %s14, 1
    %p58 = por %p56, %p57
    %p60 = scmp.ne.s32.totalorder %s45, %s59
    %p61 = scmp.eq.s32.totalorder %s14, 0
    %p62 = por %p60, %p61
    %s63 = ssub.s32 %s8, %s15
    %p64 = scmp.eq.s32.totalorder %s63, 0
    %s66 = sadd.s32 %s65, 1
    %s67 = scalar_select %p64, %s65, %s66
    %p70 = pneg %p64
    %p71 = scmp.eq.s32.totalorder %s8, 1
    %p72 = por %p70, %p71
    %p73 = scmp.ne.s32.totalorder %s65, %s68
    %p74 = scmp.eq.s32.totalorder %s8, 0
    %p75 = por %p73, %p74
    %p76 = scmp.ne.s32.totalorder %s65, %s68
    %p77 = scmp.eq.s32.totalorder %s13, 1
    %p78 = por %p76, %p77
    %p79 = scmp.ne.s32.totalorder %s68, %s69
    %p80 = scmp.eq.s32.totalorder %s13, 0
    %p81 = por %p79, %p80
    %p82 = scmp.ne.s32.totalorder %s68, %s69
    %p83 = scmp.eq.s32.totalorder %s14, 1
    %p84 = por %p82, %p83
    %p86 = scmp.ne.s32.totalorder %s69, %s85
    %p87 = scmp.eq.s32.totalorder %s14, 0
    %p88 = por %p86, %p87
    %p89 = scmp.le.s32.totalorder 1, %s8
    %p90 = scmp.lt.s32.totalorder %s8, 3
    %p91 = pnand %p89, %p90
    %p92 = pneg %p91
    // Predicated region
    $region9: #{conv2d_transpose_bn_relu.3} parent=5 // pred_check
      _
    $region10: #{conv2d_transpose_bn_relu.3} parent=5 // pred_check_branch
      %94 = sbr.rel (%p91) target = $region12
    $region11: #{conv2d_transpose_bn_relu.3} parent=5 // pred_region
      %s95 = ssub.s32 %s8, 1
      // Predicated region
      $region13: #{conv2d_transpose_bn_relu.3} parent=11 // pred_check
        %p96 = pneg %p55
      $region14: #{conv2d_transpose_bn_relu.3} parent=11 // pred_check_branch
        %98 = sbr.rel (%p96) target = $region16
      $region15: #{conv2d_transpose_bn_relu.3} parent=11 // pred_region
        _
      $region16: #{conv2d_transpose_bn_relu.3} parent=11 // pred_fallthru
        _
    $region12: #{conv2d_transpose_bn_relu.3} parent=5 // pred_fallthru
      _
    %p99 = scmp.lt.s32.totalorder %s8, 2
    // Predicated region
    $region17: #{conv2d_transpose_bn_relu.3} parent=5 // pred_check
      %p100 = pneg %p99
    $region18: #{conv2d_transpose_bn_relu.3} parent=5 // pred_check_branch
      %102 = sbr.rel (%p100) target = $region20
    $region19: #{conv2d_transpose_bn_relu.3} parent=5 // pred_region
      // Predicated region
      $region21: #{conv2d_transpose_bn_relu.3} parent=19 // pred_check
        %p103 = pneg %p28
      $region22: #{conv2d_transpose_bn_relu.3} parent=19 // pred_check_branch
        %105 = sbr.rel (%p103) target = $region24
      $region23: #{conv2d_transpose_bn_relu.3} parent=19 // pred_region
        %p106 = scmp.lt.s32.totalorder %s8, 1
        %s107 = scalar_select %p106, %s8, 1
        %s108 = smul.addr %s107, 9
        %s109 = smul.addr %s108, 8
        %s110 = scalar_lea.vmem %s0, %s109
      $region24: #{conv2d_transpose_bn_relu.3} parent=19 // pred_fallthru
        _
    $region20: #{conv2d_transpose_bn_relu.3} parent=5 // pred_fallthru
      _
    %p111 = scmp.le.s32.totalorder 1, %s8
    %p112 = scmp.lt.s32.totalorder %s8, 3
    %p113 = pnand %p111, %p112
    %p114 = pneg %p113
    // Predicated region
    $region25: #{conv2d_transpose_bn_relu.3} parent=5 // pred_check
      _
    $region26: #{conv2d_transpose_bn_relu.3} parent=5 // pred_check_branch
      %116 = sbr.rel (%p113) target = $region28
    $region27: #{conv2d_transpose_bn_relu.3} parent=5 // pred_region
      %s117 = ssub.s32 %s8, 1
      %p118 = scmp.lt.s32.totalorder %s13, 1
      %s119 = scalar_select %p118, %s13, 1
      %s120 = smul.addr %s119, 9
      %s121 = smul.addr %s120, 8
      %s122 = scalar_lea.vmem %s0, %s121
      %p123 = pneg %p34
      %p124 = pneg %p31
      %p125 = pneg %p55
      %p126 = pneg %p52
      %p127 = pneg %p81
      %p128 = pneg %p78
      %p129 = scmp.lt.s32.totalorder %s13, 1
      %s130 = scalar_select %p129, %s13, 1
      %s131 = smul.addr %s130, 9
      %s132 = smul.addr %s131, 8
      %s133 = scalar_lea.vmem %s2, %s132
      %p134 = scmp.lt.s32.totalorder %s13, 1
      %s135 = scalar_select %p134, %s13, 1
      %s136 = smul.addr %s135, 9
      %s137 = smul.addr %s136, 8
      %s138 = scalar_lea.vmem %s0, %s137
      %p139 = scmp.lt.s32.totalorder %s13, 1
      %s140 = scalar_select %p139, %s13, 1
      %s141 = smul.addr %s140, 9
      %s142 = smul.addr %s141, 8
      %s143 = scalar_lea.vmem %s2, %s142
      %v144 = vld [vmem:[%s138] sm:$0xff]
      %v145 = vld [vmem:[%s138 + $0x8] sm:$0xff]
      %v146 = vld [vmem:[%s138 + $0x10] sm:$0xff]
      %v147 = vld [vmem:[%s138 + $0x18] sm:$0xff]
      %v148 = vld [vmem:[%s138 + $0x20] sm:$0xff]
      %v149 = vld [vmem:[%s138 + $0x28] sm:$0xff]
      %v150 = vld [vmem:[%s138 + $0x30] sm:$0xff]
      %v151 = vld [vmem:[%s138 + $0x38] sm:$0xff]
      %v152 = vld [vmem:[%s138 + $0x40] sm:$0xff]
      %v153 = vld [vmem:[%s1] sm:$0xff]
      %155 = vset.pattern.permute.xlu0 0
      %156 = vperm.xlu0 %155, %v153
      %v157 = vpop.permute.xlu0 %156
      %v159 = vmul.f32 %v144, %v157
      %v160 = vmul.f32 %v145, %v157
      %v161 = vmul.f32 %v146, %v157
      %v162 = vmul.f32 %v147, %v157
      %v163 = vmul.f32 %v148, %v157
      %v164 = vmul.f32 %v149, %v157
      %v165 = vmul.f32 %v150, %v157
      %v166 = vmul.f32 %v151, %v157
      %v167 = vmul.f32 %v152, %v157
      %168 = vset.pattern.permute.xlu0 1
      %169 = vperm.xlu0 %168, %v153
      %v170 = vpop.permute.xlu0 %169
      %v172 = vadd.f32 %v159, %v170
      %v173 = vadd.f32 %v160, %v170
      %v174 = vadd.f32 %v161, %v170
      %v175 = vadd.f32 %v162, %v170
      %v176 = vadd.f32 %v163, %v170
      %v177 = vadd.f32 %v164, %v170
      %v178 = vadd.f32 %v165, %v170
      %v179 = vadd.f32 %v166, %v170
      %v180 = vadd.f32 %v167, %v170
      %v181 = vmax.f32 %v172, 0.0
      %v182 = vmax.f32 %v173, 0.0
      %v183 = vmax.f32 %v174, 0.0
      %v184 = vmax.f32 %v175, 0.0
      %v185 = vmax.f32 %v176, 0.0
      %v186 = vmax.f32 %v177, 0.0
      %v187 = vmax.f32 %v178, 0.0
      %v188 = vmax.f32 %v179, 0.0
      %v189 = vmax.f32 %v180, 0.0
      %190 = vst [vmem:[%s143] sm:$0xff] %v181
      %191 = vst [vmem:[%s143 + $0x8] sm:$0xff] %v182
      %192 = vst [vmem:[%s143 + $0x10] sm:$0xff] %v183
      %193 = vst [vmem:[%s143 + $0x18] sm:$0xff] %v184
      %194 = vst [vmem:[%s143 + $0x20] sm:$0xff] %v185
      %195 = vst [vmem:[%s143 + $0x28] sm:$0xff] %v186
      %196 = vst [vmem:[%s143 + $0x30] sm:$0xff] %v187
      %197 = vst [vmem:[%s143 + $0x38] sm:$0xff] %v188
      %198 = vst [vmem:[%s143 + $0x40] sm:$0xff] %v189
      %p199 = scmp.lt.s32.totalorder %s13, 1
      %s200 = scalar_select %p199, %s13, 1
      %s201 = smul.addr %s200, 9
      %s202 = smul.addr %s201, 8
      %s203 = scalar_lea.vmem %s2, %s202
      // Predicated region
      $region29: #{conv2d_transpose_bn_relu.3} parent=27 // pred_check
        %p204 = pneg %p78
      $region30: #{conv2d_transpose_bn_relu.3} parent=27 // pred_check_branch
        %206 = sbr.rel (%p204) target = $region32
      $region31: #{conv2d_transpose_bn_relu.3} parent=27 // pred_region
        _
      $region32: #{conv2d_transpose_bn_relu.3} parent=27 // pred_fallthru
        _
    $region28: #{conv2d_transpose_bn_relu.3} parent=5 // pred_fallthru
      _
    %p207 = scmp.le.s32.totalorder 2, %s8
    // Predicated region
    $region33: #{conv2d_transpose_bn_relu.3} parent=5 // pred_check
      %p208 = pneg %p207
    $region34: #{conv2d_transpose_bn_relu.3} parent=5 // pred_check_branch
      %210 = sbr.rel (%p208) target = $region36
    $region35: #{conv2d_transpose_bn_relu.3} parent=5 // pred_region
      %s211 = ssub.s32 %s8, 2
      // Predicated region
      $region37: #{conv2d_transpose_bn_relu.3} parent=35 // pred_check
        %p212 = pneg %p84
      $region38: #{conv2d_transpose_bn_relu.3} parent=35 // pred_check_branch
        %214 = sbr.rel (%p212) target = $region40
      $region39: #{conv2d_transpose_bn_relu.3} parent=35 // pred_region
        %p215 = scmp.lt.s32.totalorder %s14, 1
        %s216 = scalar_select %p215, %s14, 1
        %s217 = smul.addr %s216, 9
        %s218 = smul.addr %s217, 8
        %s219 = scalar_lea.vmem %s2, %s218
      $region40: #{conv2d_transpose_bn_relu.3} parent=35 // pred_fallthru
        _
    $region36: #{conv2d_transpose_bn_relu.3} parent=5 // pred_fallthru
      _
  $region6: #{conv2d_transpose_bn_relu.3} parent=0 // loop_footer
    %s12 = sadd.s32 1, %s8
  $region7: #{conv2d_transpose_bn_relu.3} parent=0 // loop_footer_branch
    %7 = sbr.rel target = $region3
  $region8: #{conv2d_transpose_bn_relu.3} parent=0 // loop_exit
    _

// kernel: conv2d_transpose_bn_relu.2
$region0: #{conv2d_transpose_bn_relu.2}
  #allocation0 [shape = 'u32[]', space=smem, size = 0x4, offset = 0x4, fixed_abs, tag = 'smem constant byte address 0x4 - core index']
  #allocation1 [shape = 'u32[72,128]{1,0:T(1,128)}', space=vmem, size = 0x9000, scoped, tag = 'internal scratch']
  %s0 = inlined_call_operand.vmem [shape: bf16[2,8,1280], index: 0, kind: input, shape index: {}]
  %s1 = inlined_call_operand.vmem [shape: bf16[16,8,8], index: 1, kind: input, shape index: {}]
  %s2 = inlined_call_operand.vmem [shape: f32[1,1152], index: 2, kind: input, shape index: {}]
  %s3 = inlined_call_operand.vmem [shape: f32[2,8,1152], index: 3, kind: output, shape index: {0}]
  %s4 = inlined_call_operand.vmem [shape: f32[2,8,2], index: 4, kind: output, shape index: {1}]
  %5 = xla_tuple %s3, %s4
  %s6 = sld [smem:[#allocation0]]
  $region53: #{conv2d_transpose_bn_relu.2} parent=0
    _
  %s8 = ssub.s32 1, %s6
  %s9 = scalar_select 0, %s8, %s6
  loop: start=0, step=1, limit=4
  $region2: #{conv2d_transpose_bn_relu.2} parent=0 // loop_pre_header
    _
  $region3: #{conv2d_transpose_bn_relu.2} parent=0 // loop_header
    %s11 = sphi 0, %s15
    %p12 = scmp.ge.s32.totalorder %s11, 4
    %s21 = sphi 0, %s23
    %s24 = sphi 0, %s21
    %s25 = sphi 0, %s24
    %s41 = sphi 0, %s25
    %s45 = sphi 0, %s45
    %s47 = sphi 0, %s45
    %s48 = sphi 0, %s47
    %s62 = sphi 0, %s48
    %s66 = sphi 0, %s66
    %s68 = sphi 0, %s66
    %s69 = sphi 0, %s68
    %s83 = sphi 0, %s69
    %s89 = sphi 0, %s91
    %s92 = sphi 0, %s89
    %s93 = sphi 0, %s92
    %s109 = sphi 0, %s93
    %s115 = sphi 0, %s117
    %s118 = sphi 0, %s115
    %s119 = sphi 0, %s118
    %s135 = sphi 0, %s119
  $region4: #{conv2d_transpose_bn_relu.2} parent=0 // loop_header_branch
    %14 = sbr.rel (%p12) target = $region8
  $region5: #{conv2d_transpose_bn_relu.2} parent=0 // loop_body
    %s16 = ssub.s32 %s11, 1
    %s17 = ssub.s32 %s11, 2
    %s18 = sadd.s32 %s11, 1
    %s19 = ssub.s32 %s11, %s18
    %p20 = scmp.eq.s32.totalorder %s19, 0
    %s22 = sadd.s32 %s21, 1
    %s23 = scalar_select %p20, %s21, %s22
    %p26 = pneg %p20
    %p27 = scmp.eq.s32.totalorder %s11, 1
    %p28 = por %p26, %p27
    %p29 = scmp.ne.s32.totalorder %s21, %s24
    %p30 = scmp.eq.s32.totalorder %s11, 0
    %p31 = por %p29, %p30
    %p32 = scmp.ne.s32.totalorder %s21, %s24
    %p33 = scmp.eq.s32.totalorder %s16, 1
    %p34 = por %p32, %p33
    %p35 = scmp.ne.s32.totalorder %s24, %s25
    %p36 = scmp.eq.s32.totalorder %s16, 0
    %p37 = por %p35, %p36
    %p38 = scmp.ne.s32.totalorder %s24, %s25
    %p39 = scmp.eq.s32.totalorder %s17, 1
    %p40 = por %p38, %p39
    %p42 = scmp.ne.s32.totalorder %s25, %s41
    %p43 = scmp.eq.s32.totalorder %s17, 0
    %p44 = por %p42, %p43
    %s46 = sadd.s32 %s45, 1
    %p49 = scmp.eq.s32.totalorder %s11, 1
    %p50 = scmp.ne.s32.totalorder %s45, %s47
    %p51 = scmp.eq.s32.totalorder %s11, 0
    %p52 = por %p50, %p51
    %p53 = scmp.ne.s32.totalorder %s45, %s47
    %p54 = scmp.eq.s32.totalorder %s16, 1
    %p55 = por %p53, %p54
    %p56 = scmp.ne.s32.totalorder %s47, %s48
    %p57 = scmp.eq.s32.totalorder %s16, 0
    %p58 = por %p56, %p57
    %p59 = scmp.ne.s32.totalorder %s47, %s48
    %p60 = scmp.eq.s32.totalorder %s17, 1
    %p61 = por %p59, %p60
    %p63 = scmp.ne.s32.totalorder %s48, %s62
    %p64 = scmp.eq.s32.totalorder %s17, 0
    %p65 = por %p63, %p64
    %s67 = sadd.s32 %s66, 1
    %p70 = scmp.eq.s32.totalorder %s11, 1
    %p71 = scmp.ne.s32.totalorder %s66, %s68
    %p72 = scmp.eq.s32.totalorder %s11, 0
    %p73 = por %p71, %p72
    %p74 = scmp.ne.s32.totalorder %s66, %s68
    %p75 = scmp.eq.s32.totalorder %s16, 1
    %p76 = por %p74, %p75
    %p77 = scmp.ne.s32.totalorder %s68, %s69
    %p78 = scmp.eq.s32.totalorder %s16, 0
    %p79 = por %p77, %p78
    %p80 = scmp.ne.s32.totalorder %s68, %s69
    %p81 = scmp.eq.s32.totalorder %s17, 1
    %p82 = por %p80, %p81
    %p84 = scmp.ne.s32.totalorder %s69, %s83
    %p85 = scmp.eq.s32.totalorder %s17, 0
    %p86 = por %p84, %p85
    %s87 = ssub.s32 %s11, %s18
    %p88 = scmp.eq.s32.totalorder %s87, 0
    %s90 = sadd.s32 %s89, 1
    %s91 = scalar_select %p88, %s89, %s90
    %p94 = pneg %p88
    %p95 = scmp.eq.s32.totalorder %s11, 1
    %p96 = por %p94, %p95
    %p97 = scmp.ne.s32.totalorder %s89, %s92
    %p98 = scmp.eq.s32.totalorder %s11, 0
    %p99 = por %p97, %p98
    %p100 = scmp.ne.s32.totalorder %s89, %s92
    %p101 = scmp.eq.s32.totalorder %s16, 1
    %p102 = por %p100, %p101
    %p103 = scmp.ne.s32.totalorder %s92, %s93
    %p104 = scmp.eq.s32.totalorder %s16, 0
    %p105 = por %p103, %p104
    %p106 = scmp.ne.s32.totalorder %s92, %s93
    %p107 = scmp.eq.s32.totalorder %s17, 1
    %p108 = por %p106, %p107
    %p110 = scmp.ne.s32.totalorder %s93, %s109
    %p111 = scmp.eq.s32.totalorder %s17, 0
    %p112 = por %p110, %p111
    %s113 = ssub.s32 %s11, %s18
    %p114 = scmp.eq.s32.totalorder %s113, 0
    %s116 = sadd.s32 %s115, 1
    %s117 = scalar_select %p114, %s115, %s116
    %p120 = pneg %p114
    %p121 = scmp.eq.s32.totalorder %s11, 1
    %p122 = por %p120, %p121
    %p123 = scmp.ne.s32.totalorder %s115, %s118
    %p124 = scmp.eq.s32.totalorder %s11, 0
    %p125 = por %p123, %p124
    %p126 = scmp.ne.s32.totalorder %s115, %s118
    %p127 = scmp.eq.s32.totalorder %s16, 1
    %p128 = por %p126, %p127
    %p129 = scmp.ne.s32.totalorder %s118, %s119
    %p130 = scmp.eq.s32.totalorder %s16, 0
    %p131 = por %p129, %p130
    %p132 = scmp.ne.s32.totalorder %s118, %s119
    %p133 = scmp.eq.s32.totalorder %s17, 1
    %p134 = por %p132, %p133
    %p136 = scmp.ne.s32.totalorder %s119, %s135
    %p137 = scmp.eq.s32.totalorder %s17, 0
    %p138 = por %p136, %p137
    %p139 = scmp.le.s32.totalorder 1, %s11
    %p140 = scmp.lt.s32.totalorder %s11, 3
    %p141 = pnand %p139, %p140
    %p142 = pneg %p141
    // Predicated region
    $region9: #{conv2d_transpose_bn_relu.2} parent=5 // pred_check
      _
    $region10: #{conv2d_transpose_bn_relu.2} parent=5 // pred_check_branch
      %144 = sbr.rel (%p141) target = $region12
    $region11: #{conv2d_transpose_bn_relu.2} parent=5 // pred_region
      %s145 = ssub.s32 %s11, 1
      // Predicated region
      $region13: #{conv2d_transpose_bn_relu.2} parent=11 // pred_check
        %p146 = pneg %p58
      $region14: #{conv2d_transpose_bn_relu.2} parent=11 // pred_check_branch
        %148 = sbr.rel (%p146) target = $region16
      $region15: #{conv2d_transpose_bn_relu.2} parent=11 // pred_region
        _
      $region16: #{conv2d_transpose_bn_relu.2} parent=11 // pred_fallthru
        _
      // Predicated region
      $region17: #{conv2d_transpose_bn_relu.2} parent=11 // pred_check
        %p149 = pneg %p79
      $region18: #{conv2d_transpose_bn_relu.2} parent=11 // pred_check_branch
        %151 = sbr.rel (%p149) target = $region20
      $region19: #{conv2d_transpose_bn_relu.2} parent=11 // pred_region
        _
      $region20: #{conv2d_transpose_bn_relu.2} parent=11 // pred_fallthru
        _
    $region12: #{conv2d_transpose_bn_relu.2} parent=5 // pred_fallthru
      _
    %p152 = scmp.lt.s32.totalorder %s11, 2
    // Predicated region
    $region21: #{conv2d_transpose_bn_relu.2} parent=5 // pred_check
      %p153 = pneg %p152
    $region22: #{conv2d_transpose_bn_relu.2} parent=5 // pred_check_branch
      %155 = sbr.rel (%p153) target = $region24
    $region23: #{conv2d_transpose_bn_relu.2} parent=5 // pred_region
      // Predicated region
      $region25: #{conv2d_transpose_bn_relu.2} parent=23 // pred_check
        %p156 = pneg %p31
      $region26: #{conv2d_transpose_bn_relu.2} parent=23 // pred_check_branch
        %158 = sbr.rel (%p156) target = $region28
      $region27: #{conv2d_transpose_bn_relu.2} parent=23 // pred_region
        %p159 = scmp.lt.s32.totalorder %s11, 1
        %s160 = scalar_select %p159, %s11, 1
        %s161 = smul.addr %s160, 10
        %s162 = smul.addr %s161, 4
        %s163 = scalar_lea.vmem %s0, %s162
      $region28: #{conv2d_transpose_bn_relu.2} parent=23 // pred_fallthru
        _
    $region24: #{conv2d_transpose_bn_relu.2} parent=5 // pred_fallthru
      _
    %p164 = scmp.le.s32.totalorder 1, %s11
    %p165 = scmp.lt.s32.totalorder %s11, 3
    %p166 = pnand %p164, %p165
    %p167 = pneg %p166
    // Predicated region
    $region29: #{conv2d_transpose_bn_relu.2} parent=5 // pred_check
      _
    $region30: #{conv2d_transpose_bn_relu.2} parent=5 // pred_check_branch
      %169 = sbr.rel (%p166) target = $region32
    $region31: #{conv2d_transpose_bn_relu.2} parent=5 // pred_region
      %s170 = ssub.s32 %s11, 1
      %p171 = scmp.lt.s32.totalorder %s16, 1
      %s172 = scalar_select %p171, %s16, 1
      %s173 = smul.addr %s172, 10
      %s174 = smul.addr %s173, 4
      %s175 = scalar_lea.vmem %s0, %s174
      %p176 = pneg %p37
      %p177 = pneg %p34
      %p178 = pneg %p58
      %p179 = pneg %p55
      %p180 = pneg %p79
      %p181 = pneg %p76
      %p182 = pneg %p105
      %p183 = pneg %p102
      %p184 = scmp.lt.s32.totalorder %s16, 1
      %s185 = scalar_select %p184, %s16, 1
      %s186 = smul.addr %s185, 9
      %s187 = smul.addr %s186, 8
      %s188 = scalar_lea.vmem %s3, %s187
      %p189 = pneg %p131
      %p190 = pneg %p128
      %p191 = scmp.lt.s32.totalorder %s16, 1
      %s192 = scalar_select %p191, %s16, 1
      %s193 = smul.addr %s192, 8
      %s194 = scalar_lea.vmem %s4, %s193
      %p195 = scmp.lt.s32.totalorder %s16, 1
      %s196 = scalar_select %p195, %s16, 1
      %s197 = smul.addr %s196, 10
      %s198 = smul.addr %s197, 4
      %s199 = scalar_lea.vmem %s0, %s198
      %p200 = scmp.lt.s32.totalorder %s16, 1
      %s201 = scalar_select %p200, %s16, 1
      %s202 = smul.addr %s201, 9
      %s203 = smul.addr %s202, 8
      %s204 = scalar_lea.vmem %s3, %s203
      %p205 = scmp.lt.s32.totalorder %s16, 1
      %s206 = scalar_select %p205, %s16, 1
      %s207 = smul.addr %s206, 8
      %s208 = scalar_lea.vmem %s4, %s207
      %v210 = vld [vmem:[%s1] sm:$0xf]
      %v211 = vld [vmem:[%s199] sm:$0xff]
      %v212 = vld [vmem:[%s199 + $0x8] sm:$0xff]
      %v213 = vld [vmem:[%s199 + $0x10] sm:$0xff]
      %v214 = vld [vmem:[%s199 + $0x18] sm:$0xff]
      %v215 = vld [vmem:[%s199 + $0x20] sm:$0xf]
      %s216 = scalar_lea.vmem %s1, 4
      %v217 = vld [vmem:[%s216] sm:$0xf]
      %v218 = vld [vmem:[%s199] sm:$0xff]
      %v219 = vld [vmem:[%s199 + $0x8] sm:$0xff]
      %v220 = vld [vmem:[%s199 + $0x10] sm:$0xff]
      %v221 = vld [vmem:[%s199 + $0x18] sm:$0xff]
      %v222 = vld [vmem:[%s199 + $0x20] sm:$0xff]
      %v228 = vunpack.c.l.b16 %v218
      %v229 = vunpack.c.h.b16 %v218
      %v230 = vunpack.c.l.b16 %v219
      %v231 = vunpack.c.h.b16 %v219
      %v232 = vunpack.c.l.b16 %v220
      %v233 = vunpack.c.h.b16 %v220
      %v234 = vunpack.c.l.b16 %v221
      %v235 = vunpack.c.h.b16 %v221
      %v236 = vunpack.c.l.b16 %v222
      %v237 = vunpack.c.h.b16 %v222
      %v238 = vpack.c.b16 %v228, %v228
      %v239 = vpack.c.b16 %v229, %v229
      %v240 = vpack.c.b16 %v230, %v230
      %v241 = vpack.c.b16 %v231, %v231
      %v242 = vpack.c.b16 %v232, %v232
      %v243 = vpack.c.b16 %v233, %v233
      %v244 = vpack.c.b16 %v234, %v234
      %v245 = vpack.c.b16 %v235, %v235
      %v246 = vpack.c.b16 %v236, %v236
      %v247 = vpack.c.b16 %v237, %v237
      %248 = vrot.lane.b32.xlu0 %v238, 127
      %v249 = vpop.permute.xlu0 %248
      %250 = vrot.lane.b32.xlu0 %v239, 127
      %v251 = vpop.permute.xlu0 %250
      %252 = vrot.lane.b32.xlu0 %v240, 127
      %v253 = vpop.permute.xlu0 %252
      %254 = vrot.lane.b32.xlu0 %v241, 127
      %v255 = vpop.permute.xlu0 %254
      %256 = vrot.lane.b32.xlu0 %v242, 127
      %v257 = vpop.permute.xlu0 %256
      %258 = vrot.lane.b32.xlu0 %v243, 127
      %v259 = vpop.permute.xlu0 %258
      %260 = vrot.lane.b32.xlu0 %v244, 127
      %v261 = vpop.permute.xlu0 %260
      %262 = vrot.lane.b32.xlu0 %v245, 127
      %v263 = vpop.permute.xlu0 %262
      %264 = vrot.lane.b32.xlu0 %v246, 127
      %v265 = vpop.permute.xlu0 %264
      %266 = vrot.lane.b32.xlu0 %v247, 127
      %v267 = vpop.permute.xlu0 %266
      %vm268 = vcmask 1039360
      %v269 = vsel %vm268, %v249, %v251
      %v270 = vsel %vm268, %v251, %v253
      %v271 = vsel %vm268, %v253, %v255
      %v272 = vsel %vm268, %v255, %v257
      %v273 = vsel %vm268, %v257, %v259
      %v274 = vsel %vm268, %v259, %v261
      %v275 = vsel %vm268, %v261, %v263
      %v276 = vsel %vm268, %v263, %v265
      %v277 = vsel %vm268, %v265, %v267
      %vm278 = vcmask 64512
      %v280 = vsel %vm278, %v217, 0
      %vm282 = vcmask 1043456
      %v284 = vsel %vm282, %v269, 0
      %v287 = vsel %vm282, %v270, 0
      %v290 = vsel %vm282, %v271, 0
      %v293 = vsel %vm282, %v272, 0
      %v296 = vsel %vm282, %v273, 0
      %v299 = vsel %vm282, %v274, 0
      %v302 = vsel %vm282, %v275, 0
      %v305 = vsel %vm282, %v276, 0
      %v308 = vsel %vm282, %v277, 0
      %310 = vmatpush.bf16.msra.mxu0 0
      %311 = vmatpush.bf16.msra.mxu0 0
      %312 = vmatpush.bf16.msra.mxu0 0
      %313 = vmatpush.bf16.msra.mxu0 0
      %314 = vmatpush.bf16.msra.mxu0 0
      %315 = vmatpush.bf16.msra.mxu0 0
      %316 = vmatpush.bf16.msra.mxu0 0
      %317 = vmatpush.bf16.msra.mxu0 %v284
      %318 = vmatmul.bf16.gmra.mxu0 %v280
      %v319 = vpop.f32.mrf.mxu0
      %v320 = vadd.f32 0.0, %v319
      %v321 = vpop.f32.mrf.mxu0
      %322 = vdwg.mxu0
      %323 = vmatpush.bf16.msra.mxu0 0
      %324 = vmatpush.bf16.msra.mxu0 0
      %325 = vmatpush.bf16.msra.mxu0 0
      %326 = vmatpush.bf16.msra.mxu0 0
      %327 = vmatpush.bf16.msra.mxu0 0
      %328 = vmatpush.bf16.msra.mxu0 0
      %329 = vmatpush.bf16.msra.mxu0 0
      %330 = vmatpush.bf16.msra.mxu0 %v287
      %331 = vmatmul.bf16.gmra.mxu0 %v280
      %v332 = vpop.f32.mrf.mxu0
      %v333 = vadd.f32 0.0, %v332
      %v334 = vpop.f32.mrf.mxu0
      %335 = vdwg.mxu0
      %336 = vmatpush.bf16.msra.mxu0 0
      %337 = vmatpush.bf16.msra.mxu0 0
      %338 = vmatpush.bf16.msra.mxu0 0
      %339 = vmatpush.bf16.msra.mxu0 0
      %340 = vmatpush.bf16.msra.mxu0 0
      %341 = vmatpush.bf16.msra.mxu0 0
      %342 = vmatpush.bf16.msra.mxu0 0
      %343 = vmatpush.bf16.msra.mxu0 %v290
      %344 = vmatmul.bf16.gmra.mxu0 %v280
      %v345 = vpop.f32.mrf.mxu0
      %v346 = vadd.f32 0.0, %v345
      %v347 = vpop.f32.mrf.mxu0
      %348 = vdwg.mxu0
      %349 = vmatpush.bf16.msra.mxu0 0
      %350 = vmatpush.bf16.msra.mxu0 0
      %351 = vmatpush.bf16.msra.mxu0 0
      %352 = vmatpush.bf16.msra.mxu0 0
      %353 = vmatpush.bf16.msra.mxu0 0
      %354 = vmatpush.bf16.msra.mxu0 0
      %355 = vmatpush.bf16.msra.mxu0 0
      %356 = vmatpush.bf16.msra.mxu0 %v293
      %357 = vmatmul.bf16.gmra.mxu0 %v280
      %v358 = vpop.f32.mrf.mxu0
      %v359 = vadd.f32 0.0, %v358
      %v360 = vpop.f32.mrf.mxu0
      %361 = vdwg.mxu0
      %362 = vmatpush.bf16.msra.mxu0 0
      %363 = vmatpush.bf16.msra.mxu0 0
      %364 = vmatpush.bf16.msra.mxu0 0
      %365 = vmatpush.bf16.msra.mxu0 0
      %366 = vmatpush.bf16.msra.mxu0 0
      %367 = vmatpush.bf16.msra.mxu0 0
      %368 = vmatpush.bf16.msra.mxu0 0
      %369 = vmatpush.bf16.msra.mxu0 %v296
      %370 = vmatmul.bf16.gmra.mxu0 %v280
      %v371 = vpop.f32.mrf.mxu0
      %v372 = vadd.f32 0.0, %v371
      %v373 = vpop.f32.mrf.mxu0
      %374 = vdwg.mxu0
      %375 = vmatpush.bf16.msra.mxu0 0
      %376 = vmatpush.bf16.msra.mxu0 0
      %377 = vmatpush.bf16.msra.mxu0 0
      %378 = vmatpush.bf16.msra.mxu0 0
      %379 = vmatpush.bf16.msra.mxu0 0
      %380 = vmatpush.bf16.msra.mxu0 0
      %381 = vmatpush.bf16.msra.mxu0 0
      %382 = vmatpush.bf16.msra.mxu0 %v299
      %383 = vmatmul.bf16.gmra.mxu0 %v280
      %v384 = vpop.f32.mrf.mxu0
      %v385 = vadd.f32 0.0, %v384
      %v386 = vpop.f32.mrf.mxu0
      %387 = vdwg.mxu0
      %388 = vmatpush.bf16.msra.mxu0 0
      %389 = vmatpush.bf16.msra.mxu0 0
      %390 = vmatpush.bf16.msra.mxu0 0
      %391 = vmatpush.bf16.msra.mxu0 0
      %392 = vmatpush.bf16.msra.mxu0 0
      %393 = vmatpush.bf16.msra.mxu0 0
      %394 = vmatpush.bf16.msra.mxu0 0
      %395 = vmatpush.bf16.msra.mxu0 %v302
      %396 = vmatmul.bf16.gmra.mxu0 %v280
      %v397 = vpop.f32.mrf.mxu0
      %v398 = vadd.f32 0.0, %v397
      %v399 = vpop.f32.mrf.mxu0
      %400 = vdwg.mxu0
      %401 = vmatpush.bf16.msra.mxu0 0
      %402 = vmatpush.bf16.msra.mxu0 0
      %403 = vmatpush.bf16.msra.mxu0 0
      %404 = vmatpush.bf16.msra.mxu0 0
      %405 = vmatpush.bf16.msra.mxu0 0
      %406 = vmatpush.bf16.msra.mxu0 0
      %407 = vmatpush.bf16.msra.mxu0 0
      %408 = vmatpush.bf16.msra.mxu0 %v305
      %409 = vmatmul.bf16.gmra.mxu0 %v280
      %v410 = vpop.f32.mrf.mxu0
      %v411 = vadd.f32 0.0, %v410
      %v412 = vpop.f32.mrf.mxu0
      %413 = vdwg.mxu0
      %414 = vmatpush.bf16.msra.mxu0 0
      %415 = vmatpush.bf16.msra.mxu0 0
      %416 = vmatpush.bf16.msra.mxu0 0
      %417 = vmatpush.bf16.msra.mxu0 0
      %418 = vmatpush.bf16.msra.mxu0 0
      %419 = vmatpush.bf16.msra.mxu0 0
      %420 = vmatpush.bf16.msra.mxu0 0
      %421 = vmatpush.bf16.msra.mxu0 %v308
      %422 = vmatmul.bf16.gmra.mxu0 %v280
      %v423 = vpop.f32.mrf.mxu0
      %v424 = vadd.f32 0.0, %v423
      %v425 = vpop.f32.mrf.mxu0
      %426 = vdwg.mxu0
      %v432 = vunpack.c.l.b16 %v211
      %v433 = vunpack.c.h.b16 %v211
      %v434 = vunpack.c.l.b16 %v212
      %v435 = vunpack.c.h.b16 %v212
      %v436 = vunpack.c.l.b16 %v213
      %v437 = vunpack.c.h.b16 %v213
      %v438 = vunpack.c.l.b16 %v214
      %v439 = vunpack.c.h.b16 %v214
      %v440 = vunpack.c.l.b16 %v215
      %v441 = vpack.c.b16 %v432, %v432
      %v442 = vpack.c.b16 %v433, %v433
      %v443 = vpack.c.b16 %v434, %v434
      %v444 = vpack.c.b16 %v435, %v435
      %v445 = vpack.c.b16 %v436, %v436
      %v446 = vpack.c.b16 %v437, %v437
      %v447 = vpack.c.b16 %v438, %v438
      %v448 = vpack.c.b16 %v439, %v439
      %v449 = vpack.c.b16 %v440, %v440
      %v451 = vsel %vm278, %v210, 0
      %v454 = vsel %vm282, %v441, 0
      %v457 = vsel %vm282, %v442, 0
      %v460 = vsel %vm282, %v443, 0
      %v463 = vsel %vm282, %v444, 0
      %v466 = vsel %vm282, %v445, 0
      %v469 = vsel %vm282, %v446, 0
      %v472 = vsel %vm282, %v447, 0
      %v475 = vsel %vm282, %v448, 0
      %v478 = vsel %vm282, %v449, 0
      %480 = vmatpush.bf16.msra.mxu0 0
      %481 = vmatpush.bf16.msra.mxu0 0
      %482 = vmatpush.bf16.msra.mxu0 0
      %483 = vmatpush.bf16.msra.mxu0 0
      %484 = vmatpush.bf16.msra.mxu0 0
      %485 = vmatpush.bf16.msra.mxu0 0
      %486 = vmatpush.bf16.msra.mxu0 0
      %487 = vmatpush.bf16.msra.mxu0 %v454
      %488 = vmatmul.bf16.gmra.mxu0 %v451
      %v489 = vpop.f32.mrf.mxu0
      %v490 = vadd.f32 %v320, %v489
      %v491 = vpop.f32.mrf.mxu0
      %492 = vdwg.mxu0
      %493 = vmatpush.bf16.msra.mxu0 0
      %494 = vmatpush.bf16.msra.mxu0 0
      %495 = vmatpush.bf16.msra.mxu0 0
      %496 = vmatpush.bf16.msra.mxu0 0
      %497 = vmatpush.bf16.msra.mxu0 0
      %498 = vmatpush.bf16.msra.mxu0 0
      %499 = vmatpush.bf16.msra.mxu0 0
      %500 = vmatpush.bf16.msra.mxu0 %v457
      %501 = vmatmul.bf16.gmra.mxu0 %v451
      %v502 = vpop.f32.mrf.mxu0
      %v503 = vadd.f32 %v333, %v502
      %v504 = vpop.f32.mrf.mxu0
      %505 = vdwg.mxu0
      %506 = vmatpush.bf16.msra.mxu0 0
      %507 = vmatpush.bf16.msra.mxu0 0
      %508 = vmatpush.bf16.msra.mxu0 0
      %509 = vmatpush.bf16.msra.mxu0 0
      %510 = vmatpush.bf16.msra.mxu0 0
      %511 = vmatpush.bf16.msra.mxu0 0
      %512 = vmatpush.bf16.msra.mxu0 0
      %513 = vmatpush.bf16.msra.mxu0 %v460
      %514 = vmatmul.bf16.gmra.mxu0 %v451
      %v515 = vpop.f32.mrf.mxu0
      %v516 = vadd.f32 %v346, %v515
      %v517 = vpop.f32.mrf.mxu0
      %518 = vdwg.mxu0
      %519 = vmatpush.bf16.msra.mxu0 0
      %520 = vmatpush.bf16.msra.mxu0 0
      %521 = vmatpush.bf16.msra.mxu0 0
      %522 = vmatpush.bf16.msra.mxu0 0
      %523 = vmatpush.bf16.msra.mxu0 0
      %524 = vmatpush.bf16.msra.mxu0 0
      %525 = vmatpush.bf16.msra.mxu0 0
      %526 = vmatpush.bf16.msra.mxu0 %v463
      %527 = vmatmul.bf16.gmra.mxu0 %v451
      %v528 = vpop.f32.mrf.mxu0
      %v529 = vadd.f32 %v359, %v528
      %v530 = vpop.f32.mrf.mxu0
      %531 = vdwg.mxu0
      %532 = vmatpush.bf16.msra.mxu0 0
      %533 = vmatpush.bf16.msra.mxu0 0
      %534 = vmatpush.bf16.msra.mxu0 0
      %535 = vmatpush.bf16.msra.mxu0 0
      %536 = vmatpush.bf16.msra.mxu0 0
      %537 = vmatpush.bf16.msra.mxu0 0
      %538 = vmatpush.bf16.msra.mxu0 0
      %539 = vmatpush.bf16.msra.mxu0 %v466
      %540 = vmatmul.bf16.gmra.mxu0 %v451
      %v541 = vpop.f32.mrf.mxu0
      %v542 = vadd.f32 %v372, %v541
      %v543 = vpop.f32.mrf.mxu0
      %544 = vdwg.mxu0
      %545 = vmatpush.bf16.msra.mxu0 0
      %546 = vmatpush.bf16.msra.mxu0 0
      %547 = vmatpush.bf16.msra.mxu0 0
      %548 = vmatpush.bf16.msra.mxu0 0
      %549 = vmatpush.bf16.msra.mxu0 0
      %550 = vmatpush.bf16.msra.mxu0 0
      %551 = vmatpush.bf16.msra.mxu0 0
      %552 = vmatpush.bf16.msra.mxu0 %v469
      %553 = vmatmul.bf16.gmra.mxu0 %v451
      %v554 = vpop.f32.mrf.mxu0
      %v555 = vadd.f32 %v385, %v554
      %v556 = vpop.f32.mrf.mxu0
      %557 = vdwg.mxu0
      %558 = vmatpush.bf16.msra.mxu0 0
      %559 = vmatpush.bf16.msra.mxu0 0
      %560 = vmatpush.bf16.msra.mxu0 0
      %561 = vmatpush.bf16.msra.mxu0 0
      %562 = vmatpush.bf16.msra.mxu0 0
      %563 = vmatpush.bf16.msra.mxu0 0
      %564 = vmatpush.bf16.msra.mxu0 0
      %565 = vmatpush.bf16.msra.mxu0 %v472
      %566 = vmatmul.bf16.gmra.mxu0 %v451
      %v567 = vpop.f32.mrf.mxu0
      %v568 = vadd.f32 %v398, %v567
      %v569 = vpop.f32.mrf.mxu0
      %570 = vdwg.mxu0
      %571 = vmatpush.bf16.msra.mxu0 0
      %572 = vmatpush.bf16.msra.mxu0 0
      %573 = vmatpush.bf16.msra.mxu0 0
      %574 = vmatpush.bf16.msra.mxu0 0
      %575 = vmatpush.bf16.msra.mxu0 0
      %576 = vmatpush.bf16.msra.mxu0 0
      %577 = vmatpush.bf16.msra.mxu0 0
      %578 = vmatpush.bf16.msra.mxu0 %v475
      %579 = vmatmul.bf16.gmra.mxu0 %v451
      %v580 = vpop.f32.mrf.mxu0
      %v581 = vadd.f32 %v411, %v580
      %v582 = vpop.f32.mrf.mxu0
      %583 = vdwg.mxu0
      %584 = vmatpush.bf16.msra.mxu0 0
      %585 = vmatpush.bf16.msra.mxu0 0
      %586 = vmatpush.bf16.msra.mxu0 0
      %587 = vmatpush.bf16.msra.mxu0 0
      %588 = vmatpush.bf16.msra.mxu0 0
      %589 = vmatpush.bf16.msra.mxu0 0
      %590 = vmatpush.bf16.msra.mxu0 0
      %591 = vmatpush.bf16.msra.mxu0 %v478
      %592 = vmatmul.bf16.gmra.mxu0 %v451
      %v593 = vpop.f32.mrf.mxu0
      %v594 = vadd.f32 %v424, %v593
      %v595 = vpop.f32.mrf.mxu0
      %596 = vdwg.mxu0
      %s597 = scalar_lea.vmem %s1, 8
      %v598 = vld [vmem:[%s597] sm:$0xf]
      %599 = vrot.lane.b32.xlu0 %v238, 126
      %v600 = vpop.permute.xlu0 %599
      %601 = vrot.lane.b32.xlu0 %v239, 126
      %v602 = vpop.permute.xlu0 %601
      %603 = vrot.lane.b32.xlu0 %v240, 126
      %v604 = vpop.permute.xlu0 %603
      %605 = vrot.lane.b32.xlu0 %v241, 126
      %v606 = vpop.permute.xlu0 %605
      %607 = vrot.lane.b32.xlu0 %v242, 126
      %v608 = vpop.permute.xlu0 %607
      %609 = vrot.lane.b32.xlu0 %v243, 126
      %v610 = vpop.permute.xlu0 %609
      %611 = vrot.lane.b32.xlu0 %v244, 126
      %v612 = vpop.permute.xlu0 %611
      %613 = vrot.lane.b32.xlu0 %v245, 126
      %v614 = vpop.permute.xlu0 %613
      %615 = vrot.lane.b32.xlu0 %v246, 126
      %v616 = vpop.permute.xlu0 %615
      %617 = vrot.lane.b32.xlu0 %v247, 126
      %v618 = vpop.permute.xlu0 %617
      %vm619 = vcmask 1031168
      %v620 = vsel %vm619, %v600, %v602
      %v621 = vsel %vm619, %v602, %v604
      %v622 = vsel %vm619, %v604, %v606
      %v623 = vsel %vm619, %v606, %v608
      %v624 = vsel %vm619, %v608, %v610
      %v625 = vsel %vm619, %v610, %v612
      %v626 = vsel %vm619, %v612, %v614
      %v627 = vsel %vm619, %v614, %v616
      %v628 = vsel %vm619, %v616, %v618
      %v630 = vsel %vm278, %v598, 0
      %v633 = vsel %vm282, %v620, 0
      %v636 = vsel %vm282, %v621, 0
      %v639 = vsel %vm282, %v622, 0
      %v642 = vsel %vm282, %v623, 0
      %v645 = vsel %vm282, %v624, 0
      %v648 = vsel %vm282, %v625, 0
      %v651 = vsel %vm282, %v626, 0
      %v654 = vsel %vm282, %v627, 0
      %v657 = vsel %vm282, %v628, 0
      %659 = vmatpush.bf16.msra.mxu0 0
      %660 = vmatpush.bf16.msra.mxu0 0
      %661 = vmatpush.bf16.msra.mxu0 0
      %662 = vmatpush.bf16.msra.mxu0 0
      %663 = vmatpush.bf16.msra.mxu0 0
      %664 = vmatpush.bf16.msra.mxu0 0
      %665 = vmatpush.bf16.msra.mxu0 0
      %666 = vmatpush.bf16.msra.mxu0 %v633
      %667 = vmatmul.bf16.gmra.mxu0 %v630
      %v668 = vpop.f32.mrf.mxu0
      %v669 = vadd.f32 0.0, %v668
      %v670 = vpop.f32.mrf.mxu0
      %671 = vdwg.mxu0
      %672 = vmatpush.bf16.msra.mxu0 0
      %673 = vmatpush.bf16.msra.mxu0 0
      %674 = vmatpush.bf16.msra.mxu0 0
      %675 = vmatpush.bf16.msra.mxu0 0
      %676 = vmatpush.bf16.msra.mxu0 0
      %677 = vmatpush.bf16.msra.mxu0 0
      %678 = vmatpush.bf16.msra.mxu0 0
      %679 = vmatpush.bf16.msra.mxu0 %v636
      %680 = vmatmul.bf16.gmra.mxu0 %v630
      %v681 = vpop.f32.mrf.mxu0
      %v682 = vadd.f32 0.0, %v681
      %v683 = vpop.f32.mrf.mxu0
      %684 = vdwg.mxu0
      %685 = vmatpush.bf16.msra.mxu0 0
      %686 = vmatpush.bf16.msra.mxu0 0
      %687 = vmatpush.bf16.msra.mxu0 0
      %688 = vmatpush.bf16.msra.mxu0 0
      %689 = vmatpush.bf16.msra.mxu0 0
      %690 = vmatpush.bf16.msra.mxu0 0
      %691 = vmatpush.bf16.msra.mxu0 0
      %692 = vmatpush.bf16.msra.mxu0 %v639
      %693 = vmatmul.bf16.gmra.mxu0 %v630
      %v694 = vpop.f32.mrf.mxu0
      %v695 = vadd.f32 0.0, %v694
      %v696 = vpop.f32.mrf.mxu0
      %697 = vdwg.mxu0
      %698 = vmatpush.bf16.msra.mxu0 0
      %699 = vmatpush.bf16.msra.mxu0 0
      %700 = vmatpush.bf16.msra.mxu0 0
      %701 = vmatpush.bf16.msra.mxu0 0
      %702 = vmatpush.bf16.msra.mxu0 0
      %703 = vmatpush.bf16.msra.mxu0 0
      %704 = vmatpush.bf16.msra.mxu0 0
      %705 = vmatpush.bf16.msra.mxu0 %v642
      %706 = vmatmul.bf16.gmra.mxu0 %v630
      %v707 = vpop.f32.mrf.mxu0
      %v708 = vadd.f32 0.0, %v707
      %v709 = vpop.f32.mrf.mxu0
      %710 = vdwg.mxu0
      %711 = vmatpush.bf16.msra.mxu0 0
      %712 = vmatpush.bf16.msra.mxu0 0
      %713 = vmatpush.bf16.msra.mxu0 0
      %714 = vmatpush.bf16.msra.mxu0 0
      %715 = vmatpush.bf16.msra.mxu0 0
      %716 = vmatpush.bf16.msra.mxu0 0
      %717 = vmatpush.bf16.msra.mxu0 0
      %718 = vmatpush.bf16.msra.mxu0 %v645
      %719 = vmatmul.bf16.gmra.mxu0 %v630
      %v720 = vpop.f32.mrf.mxu0
      %v721 = vadd.f32 0.0, %v720
      %v722 = vpop.f32.mrf.mxu0
      %723 = vdwg.mxu0
      %724 = vmatpush.bf16.msra.mxu0 0
      %725 = vmatpush.bf16.msra.mxu0 0
      %726 = vmatpush.bf16.msra.mxu0 0
      %727 = vmatpush.bf16.msra.mxu0 0
      %728 = vmatpush.bf16.msra.mxu0 0
      %729 = vmatpush.bf16.msra.mxu0 0
      %730 = vmatpush.bf16.msra.mxu0 0
      %731 = vmatpush.bf16.msra.mxu0 %v648
      %732 = vmatmul.bf16.gmra.mxu0 %v630
      %v733 = vpop.f32.mrf.mxu0
      %v734 = vadd.f32 0.0, %v733
      %v735 = vpop.f32.mrf.mxu0
      %736 = vdwg.mxu0
      %737 = vmatpush.bf16.msra.mxu0 0
      %738 = vmatpush.bf16.msra.mxu0 0
      %739 = vmatpush.bf16.msra.mxu0 0
      %740 = vmatpush.bf16.msra.mxu0 0
      %741 = vmatpush.bf16.msra.mxu0 0
      %742 = vmatpush.bf16.msra.mxu0 0
      %743 = vmatpush.bf16.msra.mxu0 0
      %744 = vmatpush.bf16.msra.mxu0 %v651
      %745 = vmatmul.bf16.gmra.mxu0 %v630
      %v746 = vpop.f32.mrf.mxu0
      %v747 = vadd.f32 0.0, %v746
      %v748 = vpop.f32.mrf.mxu0
      %749 = vdwg.mxu0
      %750 = vmatpush.bf16.msra.mxu0 0
      %751 = vmatpush.bf16.msra.mxu0 0
      %752 = vmatpush.bf16.msra.mxu0 0
      %753 = vmatpush.bf16.msra.mxu0 0
      %754 = vmatpush.bf16.msra.mxu0 0
      %755 = vmatpush.bf16.msra.mxu0 0
      %756 = vmatpush.bf16.msra.mxu0 0
      %757 = vmatpush.bf16.msra.mxu0 %v654
      %758 = vmatmul.bf16.gmra.mxu0 %v630
      %v759 = vpop.f32.mrf.mxu0
      %v760 = vadd.f32 0.0, %v759
      %v761 = vpop.f32.mrf.mxu0
      %762 = vdwg.mxu0
      %763 = vmatpush.bf16.msra.mxu0 0
      %764 = vmatpush.bf16.msra.mxu0 0
      %765 = vmatpush.bf16.msra.mxu0 0
      %766 = vmatpush.bf16.msra.mxu0 0
      %767 = vmatpush.bf16.msra.mxu0 0
      %768 = vmatpush.bf16.msra.mxu0 0
      %769 = vmatpush.bf16.msra.mxu0 0
      %770 = vmatpush.bf16.msra.mxu0 %v657
      %771 = vmatmul.bf16.gmra.mxu0 %v630
      %v772 = vpop.f32.mrf.mxu0
      %v773 = vadd.f32 0.0, %v772
      %v774 = vpop.f32.mrf.mxu0
      %775 = vdwg.mxu0
      %v776 = vadd.f32 %v490, %v669
      %v777 = vadd.f32 %v503, %v682
      %v778 = vadd.f32 %v516, %v695
      %v779 = vadd.f32 %v529, %v708
      %v780 = vadd.f32 %v542, %v721
      %v781 = vadd.f32 %v555, %v734
      %v782 = vadd.f32 %v568, %v747
      %v783 = vadd.f32 %v581, %v760
      %v784 = vadd.f32 %v594, %v773
      %s785 = scalar_lea.vmem %s1, 12
      %v786 = vld [vmem:[%s785] sm:$0xf]
      %787 = vrot.lane.b32.xlu0 %v238, 125
      %v788 = vpop.permute.xlu0 %787
      %789 = vrot.lane.b32.xlu0 %v239, 125
      %v790 = vpop.permute.xlu0 %789
      %791 = vrot.lane.b32.xlu0 %v240, 125
      %v792 = vpop.permute.xlu0 %791
      %793 = vrot.lane.b32.xlu0 %v241, 125
      %v794 = vpop.permute.xlu0 %793
      %795 = vrot.lane.b32.xlu0 %v242, 125
      %v796 = vpop.permute.xlu0 %795
      %797 = vrot.lane.b32.xlu0 %v243, 125
      %v798 = vpop.permute.xlu0 %797
      %799 = vrot.lane.b32.xlu0 %v244, 125
      %v800 = vpop.permute.xlu0 %799
      %801 = vrot.lane.b32.xlu0 %v245, 125
      %v802 = vpop.permute.xlu0 %801
      %803 = vrot.lane.b32.xlu0 %v246, 125
      %v804 = vpop.permute.xlu0 %803
      %805 = vrot.lane.b32.xlu0 %v247, 125
      %v806 = vpop.permute.xlu0 %805
      %vm807 = vcmask 1022976
      %v808 = vsel %vm807, %v788, %v790
      %v809 = vsel %vm807, %v790, %v792
      %v810 = vsel %vm807, %v792, %v794
      %v811 = vsel %vm807, %v794, %v796
      %v812 = vsel %vm807, %v796, %v798
      %v813 = vsel %vm807, %v798, %v800
      %v814 = vsel %vm807, %v800, %v802
      %v815 = vsel %vm807, %v802, %v804
      %v816 = vsel %vm807, %v804, %v806
      %v818 = vsel %vm278, %v786, 0
      %v821 = vsel %vm282, %v808, 0
      %v824 = vsel %vm282, %v809, 0
      %v827 = vsel %vm282, %v810, 0
      %v830 = vsel %vm282, %v811, 0
      %v833 = vsel %vm282, %v812, 0
      %v836 = vsel %vm282, %v813, 0
      %v839 = vsel %vm282, %v814, 0
      %v842 = vsel %vm282, %v815, 0
      %v845 = vsel %vm282, %v816, 0
      %847 = vmatpush.bf16.msra.mxu0 0
      %848 = vmatpush.bf16.msra.mxu0 0
      %849 = vmatpush.bf16.msra.mxu0 0
      %850 = vmatpush.bf16.msra.mxu0 0
      %851 = vmatpush.bf16.msra.mxu0 0
      %852 = vmatpush.bf16.msra.mxu0 0
      %853 = vmatpush.bf16.msra.mxu0 0
      %854 = vmatpush.bf16.msra.mxu0 %v821
      %855 = vmatmul.bf16.gmra.mxu0 %v818
      %v856 = vpop.f32.mrf.mxu0
      %v857 = vadd.f32 0.0, %v856
      %v858 = vpop.f32.mrf.mxu0
      %859 = vdwg.mxu0
      %860 = vmatpush.bf16.msra.mxu0 0
      %861 = vmatpush.bf16.msra.mxu0 0
      %862 = vmatpush.bf16.msra.mxu0 0
      %863 = vmatpush.bf16.msra.mxu0 0
      %864 = vmatpush.bf16.msra.mxu0 0
      %865 = vmatpush.bf16.msra.mxu0 0
      %866 = vmatpush.bf16.msra.mxu0 0
      %867 = vmatpush.bf16.msra.mxu0 %v824
      %868 = vmatmul.bf16.gmra.mxu0 %v818
      %v869 = vpop.f32.mrf.mxu0
      %v870 = vadd.f32 0.0, %v869
      %v871 = vpop.f32.mrf.mxu0
      %872 = vdwg.mxu0
      %873 = vmatpush.bf16.msra.mxu0 0
      %874 = vmatpush.bf16.msra.mxu0 0
      %875 = vmatpush.bf16.msra.mxu0 0
      %876 = vmatpush.bf16.msra.mxu0 0
      %877 = vmatpush.bf16.msra.mxu0 0
      %878 = vmatpush.bf16.msra.mxu0 0
      %879 = vmatpush.bf16.msra.mxu0 0
      %880 = vmatpush.bf16.msra.mxu0 %v827
      %881 = vmatmul.bf16.gmra.mxu0 %v818
      %v882 = vpop.f32.mrf.mxu0
      %v883 = vadd.f32 0.0, %v882
      %v884 = vpop.f32.mrf.mxu0
      %885 = vdwg.mxu0
      %886 = vmatpush.bf16.msra.mxu0 0
      %887 = vmatpush.bf16.msra.mxu0 0
      %888 = vmatpush.bf16.msra.mxu0 0
      %889 = vmatpush.bf16.msra.mxu0 0
      %890 = vmatpush.bf16.msra.mxu0 0
      %891 = vmatpush.bf16.msra.mxu0 0
      %892 = vmatpush.bf16.msra.mxu0 0
      %893 = vmatpush.bf16.msra.mxu0 %v830
      %894 = vmatmul.bf16.gmra.mxu0 %v818
      %v895 = vpop.f32.mrf.mxu0
      %v896 = vadd.f32 0.0, %v895
      %v897 = vpop.f32.mrf.mxu0
      %898 = vdwg.mxu0
      %899 = vmatpush.bf16.msra.mxu0 0
      %900 = vmatpush.bf16.msra.mxu0 0
      %901 = vmatpush.bf16.msra.mxu0 0
      %902 = vmatpush.bf16.msra.mxu0 0
      %903 = vmatpush.bf16.msra.mxu0 0
      %904 = vmatpush.bf16.msra.mxu0 0
      %905 = vmatpush.bf16.msra.mxu0 0
      %906 = vmatpush.bf16.msra.mxu0 %v833
      %907 = vmatmul.bf16.gmra.mxu0 %v818
      %v908 = vpop.f32.mrf.mxu0
      %v909 = vadd.f32 0.0, %v908
      %v910 = vpop.f32.mrf.mxu0
      %911 = vdwg.mxu0
      %912 = vmatpush.bf16.msra.mxu0 0
      %913 = vmatpush.bf16.msra.mxu0 0
      %914 = vmatpush.bf16.msra.mxu0 0
      %915 = vmatpush.bf16.msra.mxu0 0
      %916 = vmatpush.bf16.msra.mxu0 0
      %917 = vmatpush.bf16.msra.mxu0 0
      %918 = vmatpush.bf16.msra.mxu0 0
      %919 = vmatpush.bf16.msra.mxu0 %v836
      %920 = vmatmul.bf16.gmra.mxu0 %v818
      %v921 = vpop.f32.mrf.mxu0
      %v922 = vadd.f32 0.0, %v921
      %v923 = vpop.f32.mrf.mxu0
      %924 = vdwg.mxu0
      %925 = vmatpush.bf16.msra.mxu0 0
      %926 = vmatpush.bf16.msra.mxu0 0
      %927 = vmatpush.bf16.msra.mxu0 0
      %928 = vmatpush.bf16.msra.mxu0 0
      %929 = vmatpush.bf16.msra.mxu0 0
      %930 = vmatpush.bf16.msra.mxu0 0
      %931 = vmatpush.bf16.msra.mxu0 0
      %932 = vmatpush.bf16.msra.mxu0 %v839
      %933 = vmatmul.bf16.gmra.mxu0 %v818
      %v934 = vpop.f32.mrf.mxu0
      %v935 = vadd.f32 0.0, %v934
      %v936 = vpop.f32.mrf.mxu0
      %937 = vdwg.mxu0
      %938 = vmatpush.bf16.msra.mxu0 0
      %939 = vmatpush.bf16.msra.mxu0 0
      %940 = vmatpush.bf16.msra.mxu0 0
      %941 = vmatpush.bf16.msra.mxu0 0
      %942 = vmatpush.bf16.msra.mxu0 0
      %943 = vmatpush.bf16.msra.mxu0 0
      %944 = vmatpush.bf16.msra.mxu0 0
      %945 = vmatpush.bf16.msra.mxu0 %v842
      %946 = vmatmul.bf16.gmra.mxu0 %v818
      %v947 = vpop.f32.mrf.mxu0
      %v948 = vadd.f32 0.0, %v947
      %v949 = vpop.f32.mrf.mxu0
      %950 = vdwg.mxu0
      %951 = vmatpush.bf16.msra.mxu0 0
      %952 = vmatpush.bf16.msra.mxu0 0
      %953 = vmatpush.bf16.msra.mxu0 0
      %954 = vmatpush.bf16.msra.mxu0 0
      %955 = vmatpush.bf16.msra.mxu0 0
      %956 = vmatpush.bf16.msra.mxu0 0
      %957 = vmatpush.bf16.msra.mxu0 0
      %958 = vmatpush.bf16.msra.mxu0 %v845
      %959 = vmatmul.bf16.gmra.mxu0 %v818
      %v960 = vpop.f32.mrf.mxu0
      %v961 = vadd.f32 0.0, %v960
      %v962 = vpop.f32.mrf.mxu0
      %963 = vdwg.mxu0
      %v964 = vadd.f32 %v776, %v857
      %v965 = vadd.f32 %v777, %v870
      %v966 = vadd.f32 %v778, %v883
      %v967 = vadd.f32 %v779, %v896
      %v968 = vadd.f32 %v780, %v909
      %v969 = vadd.f32 %v781, %v922
      %v970 = vadd.f32 %v782, %v935
      %v971 = vadd.f32 %v783, %v948
      %v972 = vadd.f32 %v784, %v961
      %s973 = scalar_lea.vmem %s1, 16
      %v974 = vld [vmem:[%s973] sm:$0xf]
      %975 = vrot.lane.b32.xlu0 %v238, 93
      %v976 = vpop.permute.xlu0 %975
      %977 = vrot.lane.b32.xlu0 %v239, 93
      %v978 = vpop.permute.xlu0 %977
      %979 = vrot.lane.b32.xlu0 %v240, 93
      %v980 = vpop.permute.xlu0 %979
      %981 = vrot.lane.b32.xlu0 %v241, 93
      %v982 = vpop.permute.xlu0 %981
      %983 = vrot.lane.b32.xlu0 %v242, 93
      %v984 = vpop.permute.xlu0 %983
      %985 = vrot.lane.b32.xlu0 %v243, 93
      %v986 = vpop.permute.xlu0 %985
      %987 = vrot.lane.b32.xlu0 %v244, 93
      %v988 = vpop.permute.xlu0 %987
      %989 = vrot.lane.b32.xlu0 %v245, 93
      %v990 = vpop.permute.xlu0 %989
      %991 = vrot.lane.b32.xlu0 %v246, 93
      %v992 = vpop.permute.xlu0 %991
      %993 = vrot.lane.b32.xlu0 %v247, 93
      %v994 = vpop.permute.xlu0 %993
      %vm995 = vcmask 760832
      %v996 = vsel %vm995, %v976, %v978
      %v997 = vsel %vm995, %v978, %v980
      %v998 = vsel %vm995, %v980, %v982
      %v999 = vsel %vm995, %v982, %v984
      %v1000 = vsel %vm995, %v984, %v986
      %v1001 = vsel %vm995, %v986, %v988
      %v1002 = vsel %vm995, %v988, %v990
      %v1003 = vsel %vm995, %v990, %v992
      %v1004 = vsel %vm995, %v992, %v994
      %v1006 = vsel %vm278, %v974, 0
      %v1009 = vsel %vm282, %v996, 0
      %v1012 = vsel %vm282, %v997, 0
      %v1015 = vsel %vm282, %v998, 0
      %v1018 = vsel %vm282, %v999, 0
      %v1021 = vsel %vm282, %v1000, 0
      %v1024 = vsel %vm282, %v1001, 0
      %v1027 = vsel %vm282, %v1002, 0
      %v1030 = vsel %vm282, %v1003, 0
      %v1033 = vsel %vm282, %v1004, 0
      %1035 = vmatpush.bf16.msra.mxu0 0
      %1036 = vmatpush.bf16.msra.mxu0 0
      %1037 = vmatpush.bf16.msra.mxu0 0
      %1038 = vmatpush.bf16.msra.mxu0 0
      %1039 = vmatpush.bf16.msra.mxu0 0
      %1040 = vmatpush.bf16.msra.mxu0 0
      %1041 = vmatpush.bf16.msra.mxu0 0
      %1042 = vmatpush.bf16.msra.mxu0 %v1009
      %1043 = vmatmul.bf16.gmra.mxu0 %v1006
      %v1044 = vpop.f32.mrf.mxu0
      %v1045 = vadd.f32 0.0, %v1044
      %v1046 = vpop.f32.mrf.mxu0
      %1047 = vdwg.mxu0
      %1048 = vmatpush.bf16.msra.mxu0 0
      %1049 = vmatpush.bf16.msra.mxu0 0
      %1050 = vmatpush.bf16.msra.mxu0 0
      %1051 = vmatpush.bf16.msra.mxu0 0
      %1052 = vmatpush.bf16.msra.mxu0 0
      %1053 = vmatpush.bf16.msra.mxu0 0
      %1054 = vmatpush.bf16.msra.mxu0 0
      %1055 = vmatpush.bf16.msra.mxu0 %v1012
      %1056 = vmatmul.bf16.gmra.mxu0 %v1006
      %v1057 = vpop.f32.mrf.mxu0
      %v1058 = vadd.f32 0.0, %v1057
      %v1059 = vpop.f32.mrf.mxu0
      %1060 = vdwg.mxu0
      %1061 = vmatpush.bf16.msra.mxu0 0
      %1062 = vmatpush.bf16.msra.mxu0 0
      %1063 = vmatpush.bf16.msra.mxu0 0
      %1064 = vmatpush.bf16.msra.mxu0 0
      %1065 = vmatpush.bf16.msra.mxu0 0
      %1066 = vmatpush.bf16.msra.mxu0 0
      %1067 = vmatpush.bf16.msra.mxu0 0
      %1068 = vmatpush.bf16.msra.mxu0 %v1015
      %1069 = vmatmul.bf16.gmra.mxu0 %v1006
      %v1070 = vpop.f32.mrf.mxu0
      %v1071 = vadd.f32 0.0, %v1070
      %v1072 = vpop.f32.mrf.mxu0
      %1073 = vdwg.mxu0
      %1074 = vmatpush.bf16.msra.mxu0 0
      %1075 = vmatpush.bf16.msra.mxu0 0
      %1076 = vmatpush.bf16.msra.mxu0 0
      %1077 = vmatpush.bf16.msra.mxu0 0
      %1078 = vmatpush.bf16.msra.mxu0 0
      %1079 = vmatpush.bf16.msra.mxu0 0
      %1080 = vmatpush.bf16.msra.mxu0 0
      %1081 = vmatpush.bf16.msra.mxu0 %v1018
      %1082 = vmatmul.bf16.gmra.mxu0 %v1006
      %v1083 = vpop.f32.mrf.mxu0
      %v1084 = vadd.f32 0.0, %v1083
      %v1085 = vpop.f32.mrf.mxu0
      %1086 = vdwg.mxu0
      %1087 = vmatpush.bf16.msra.mxu0 0
      %1088 = vmatpush.bf16.msra.mxu0 0
      %1089 = vmatpush.bf16.msra.mxu0 0
      %1090 = vmatpush.bf16.msra.mxu0 0
      %1091 = vmatpush.bf16.msra.mxu0 0
      %1092 = vmatpush.bf16.msra.mxu0 0
      %1093 = vmatpush.bf16.msra.mxu0 0
      %1094 = vmatpush.bf16.msra.mxu0 %v1021
      %1095 = vmatmul.bf16.gmra.mxu0 %v1006
      %v1096 = vpop.f32.mrf.mxu0
      %v1097 = vadd.f32 0.0, %v1096
      %v1098 = vpop.f32.mrf.mxu0
      %1099 = vdwg.mxu0
      %1100 = vmatpush.bf16.msra.mxu0 0
      %1101 = vmatpush.bf16.msra.mxu0 0
      %1102 = vmatpush.bf16.msra.mxu0 0
      %1103 = vmatpush.bf16.msra.mxu0 0
      %1104 = vmatpush.bf16.msra.mxu0 0
      %1105 = vmatpush.bf16.msra.mxu0 0
      %1106 = vmatpush.bf16.msra.mxu0 0
      %1107 = vmatpush.bf16.msra.mxu0 %v1024
      %1108 = vmatmul.bf16.gmra.mxu0 %v1006
      %v1109 = vpop.f32.mrf.mxu0
      %v1110 = vadd.f32 0.0, %v1109
      %v1111 = vpop.f32.mrf.mxu0
      %1112 = vdwg.mxu0
      %1113 = vmatpush.bf16.msra.mxu0 0
      %1114 = vmatpush.bf16.msra.mxu0 0
      %1115 = vmatpush.bf16.msra.mxu0 0
      %1116 = vmatpush.bf16.msra.mxu0 0
      %1117 = vmatpush.bf16.msra.mxu0 0
      %1118 = vmatpush.bf16.msra.mxu0 0
      %1119 = vmatpush.bf16.msra.mxu0 0
      %1120 = vmatpush.bf16.msra.mxu0 %v1027
      %1121 = vmatmul.bf16.gmra.mxu0 %v1006
      %v1122 = vpop.f32.mrf.mxu0
      %v1123 = vadd.f32 0.0, %v1122
      %v1124 = vpop.f32.mrf.mxu0
      %1125 = vdwg.mxu0
      %1126 = vmatpush.bf16.msra.mxu0 0
      %1127 = vmatpush.bf16.msra.mxu0 0
      %1128 = vmatpush.bf16.msra.mxu0 0
      %1129 = vmatpush.bf16.msra.mxu0 0
      %1130 = vmatpush.bf16.msra.mxu0 0
      %1131 = vmatpush.bf16.msra.mxu0 0
      %1132 = vmatpush.bf16.msra.mxu0 0
      %1133 = vmatpush.bf16.msra.mxu0 %v1030
      %1134 = vmatmul.bf16.gmra.mxu0 %v1006
      %v1135 = vpop.f32.mrf.mxu0
      %v1136 = vadd.f32 0.0, %v1135
      %v1137 = vpop.f32.mrf.mxu0
      %1138 = vdwg.mxu0
      %1139 = vmatpush.bf16.msra.mxu0 0
      %1140 = vmatpush.bf16.msra.mxu0 0
      %1141 = vmatpush.bf16.msra.mxu0 0
      %1142 = vmatpush.bf16.msra.mxu0 0
      %1143 = vmatpush.bf16.msra.mxu0 0
      %1144 = vmatpush.bf16.msra.mxu0 0
      %1145 = vmatpush.bf16.msra.mxu0 0
      %1146 = vmatpush.bf16.msra.mxu0 %v1033
      %1147 = vmatmul.bf16.gmra.mxu0 %v1006
      %v1148 = vpop.f32.mrf.mxu0
      %v1149 = vadd.f32 0.0, %v1148
      %v1150 = vpop.f32.mrf.mxu0
      %1151 = vdwg.mxu0
      %v1152 = vadd.f32 %v964, %v1045
      %v1153 = vadd.f32 %v965, %v1058
      %v1154 = vadd.f32 %v966, %v1071
      %v1155 = vadd.f32 %v967, %v1084
      %v1156 = vadd.f32 %v968, %v1097
      %v1157 = vadd.f32 %v969, %v1110
      %v1158 = vadd.f32 %v970, %v1123
      %v1159 = vadd.f32 %v971, %v1136
      %v1160 = vadd.f32 %v972, %v1149
      %s1161 = scalar_lea.vmem %s1, 20
      %v1162 = vld [vmem:[%s1161] sm:$0xf]
      %1163 = vrot.lane.b32.xlu0 %v238, 92
      %v1164 = vpop.permute.xlu0 %1163
      %1165 = vrot.lane.b32.xlu0 %v239, 92
      %v1166 = vpop.permute.xlu0 %1165
      %1167 = vrot.lane.b32.xlu0 %v240, 92
      %v1168 = vpop.permute.xlu0 %1167
      %1169 = vrot.lane.b32.xlu0 %v241, 92
      %v1170 = vpop.permute.xlu0 %1169
      %1171 = vrot.lane.b32.xlu0 %v242, 92
      %v1172 = vpop.permute.xlu0 %1171
      %1173 = vrot.lane.b32.xlu0 %v243, 92
      %v1174 = vpop.permute.xlu0 %1173
      %1175 = vrot.lane.b32.xlu0 %v244, 92
      %v1176 = vpop.permute.xlu0 %1175
      %1177 = vrot.lane.b32.xlu0 %v245, 92
      %v1178 = vpop.permute.xlu0 %1177
      %1179 = vrot.lane.b32.xlu0 %v246, 92
      %v1180 = vpop.permute.xlu0 %1179
      %1181 = vrot.lane.b32.xlu0 %v247, 92
      %v1182 = vpop.permute.xlu0 %1181
      %vm1183 = vcmask 752640
      %v1184 = vsel %vm1183, %v1164, %v1166
      %v1185 = vsel %vm1183, %v1166, %v1168
      %v1186 = vsel %vm1183, %v1168, %v1170
      %v1187 = vsel %vm1183, %v1170, %v1172
      %v1188 = vsel %vm1183, %v1172, %v1174
      %v1189 = vsel %vm1183, %v1174, %v1176
      %v1190 = vsel %vm1183, %v1176, %v1178
      %v1191 = vsel %vm1183, %v1178, %v1180
      %v1192 = vsel %vm1183, %v1180, %v1182
      %v1194 = vsel %vm278, %v1162, 0
      %v1197 = vsel %vm282, %v1184, 0
      %v1200 = vsel %vm282, %v1185, 0
      %v1203 = vsel %vm282, %v1186, 0
      %v1206 = vsel %vm282, %v1187, 0
      %v1209 = vsel %vm282, %v1188, 0
      %v1212 = vsel %vm282, %v1189, 0
      %v1215 = vsel %vm282, %v1190, 0
      %v1218 = vsel %vm282, %v1191, 0
      %v1221 = vsel %vm282, %v1192, 0
      %1223 = vmatpush.bf16.msra.mxu0 0
      %1224 = vmatpush.bf16.msra.mxu0 0
      %1225 = vmatpush.bf16.msra.mxu0 0
      %1226 = vmatpush.bf16.msra.mxu0 0
      %1227 = vmatpush.bf16.msra.mxu0 0
      %1228 = vmatpush.bf16.msra.mxu0 0
      %1229 = vmatpush.bf16.msra.mxu0 0
      %1230 = vmatpush.bf16.msra.mxu0 %v1197
      %1231 = vmatmul.bf16.gmra.mxu0 %v1194
      %v1232 = vpop.f32.mrf.mxu0
      %v1233 = vadd.f32 0.0, %v1232
      %v1234 = vpop.f32.mrf.mxu0
      %1235 = vdwg.mxu0
      %1236 = vmatpush.bf16.msra.mxu0 0
      %1237 = vmatpush.bf16.msra.mxu0 0
      %1238 = vmatpush.bf16.msra.mxu0 0
      %1239 = vmatpush.bf16.msra.mxu0 0
      %1240 = vmatpush.bf16.msra.mxu0 0
      %1241 = vmatpush.bf16.msra.mxu0 0
      %1242 = vmatpush.bf16.msra.mxu0 0
      %1243 = vmatpush.bf16.msra.mxu0 %v1200
      %1244 = vmatmul.bf16.gmra.mxu0 %v1194
      %v1245 = vpop.f32.mrf.mxu0
      %v1246 = vadd.f32 0.0, %v1245
      %v1247 = vpop.f32.mrf.mxu0
      %1248 = vdwg.mxu0
      %1249 = vmatpush.bf16.msra.mxu0 0
      %1250 = vmatpush.bf16.msra.mxu0 0
      %1251 = vmatpush.bf16.msra.mxu0 0
      %1252 = vmatpush.bf16.msra.mxu0 0
      %1253 = vmatpush.bf16.msra.mxu0 0
      %1254 = vmatpush.bf16.msra.mxu0 0
      %1255 = vmatpush.bf16.msra.mxu0 0
      %1256 = vmatpush.bf16.msra.mxu0 %v1203
      %1257 = vmatmul.bf16.gmra.mxu0 %v1194
      %v1258 = vpop.f32.mrf.mxu0
      %v1259 = vadd.f32 0.0, %v1258
      %v1260 = vpop.f32.mrf.mxu0
      %1261 = vdwg.mxu0
      %1262 = vmatpush.bf16.msra.mxu0 0
      %1263 = vmatpush.bf16.msra.mxu0 0
      %1264 = vmatpush.bf16.msra.mxu0 0
      %1265 = vmatpush.bf16.msra.mxu0 0
      %1266 = vmatpush.bf16.msra.mxu0 0
      %1267 = vmatpush.bf16.msra.mxu0 0
      %1268 = vmatpush.bf16.msra.mxu0 0
      %1269 = vmatpush.bf16.msra.mxu0 %v1206
      %1270 = vmatmul.bf16.gmra.mxu0 %v1194
      %v1271 = vpop.f32.mrf.mxu0
      %v1272 = vadd.f32 0.0, %v1271
      %v1273 = vpop.f32.mrf.mxu0
      %1274 = vdwg.mxu0
      %1275 = vmatpush.bf16.msra.mxu0 0
      %1276 = vmatpush.bf16.msra.mxu0 0
      %1277 = vmatpush.bf16.msra.mxu0 0
      %1278 = vmatpush.bf16.msra.mxu0 0
      %1279 = vmatpush.bf16.msra.mxu0 0
      %1280 = vmatpush.bf16.msra.mxu0 0
      %1281 = vmatpush.bf16.msra.mxu0 0
      %1282 = vmatpush.bf16.msra.mxu0 %v1209
      %1283 = vmatmul.bf16.gmra.mxu0 %v1194
      %v1284 = vpop.f32.mrf.mxu0
      %v1285 = vadd.f32 0.0, %v1284
      %v1286 = vpop.f32.mrf.mxu0
      %1287 = vdwg.mxu0
      %1288 = vmatpush.bf16.msra.mxu0 0
      %1289 = vmatpush.bf16.msra.mxu0 0
      %1290 = vmatpush.bf16.msra.mxu0 0
      %1291 = vmatpush.bf16.msra.mxu0 0
      %1292 = vmatpush.bf16.msra.mxu0 0
      %1293 = vmatpush.bf16.msra.mxu0 0
      %1294 = vmatpush.bf16.msra.mxu0 0
      %1295 = vmatpush.bf16.msra.mxu0 %v1212
      %1296 = vmatmul.bf16.gmra.mxu0 %v1194
      %v1297 = vpop.f32.mrf.mxu0
      %v1298 = vadd.f32 0.0, %v1297
      %v1299 = vpop.f32.mrf.mxu0
      %1300 = vdwg.mxu0
      %1301 = vmatpush.bf16.msra.mxu0 0
      %1302 = vmatpush.bf16.msra.mxu0 0
      %1303 = vmatpush.bf16.msra.mxu0 0
      %1304 = vmatpush.bf16.msra.mxu0 0
      %1305 = vmatpush.bf16.msra.mxu0 0
      %1306 = vmatpush.bf16.msra.mxu0 0
      %1307 = vmatpush.bf16.msra.mxu0 0
      %1308 = vmatpush.bf16.msra.mxu0 %v1215
      %1309 = vmatmul.bf16.gmra.mxu0 %v1194
      %v1310 = vpop.f32.mrf.mxu0
      %v1311 = vadd.f32 0.0, %v1310
      %v1312 = vpop.f32.mrf.mxu0
      %1313 = vdwg.mxu0
      %1314 = vmatpush.bf16.msra.mxu0 0
      %1315 = vmatpush.bf16.msra.mxu0 0
      %1316 = vmatpush.bf16.msra.mxu0 0
      %1317 = vmatpush.bf16.msra.mxu0 0
      %1318 = vmatpush.bf16.msra.mxu0 0
      %1319 = vmatpush.bf16.msra.mxu0 0
      %1320 = vmatpush.bf16.msra.mxu0 0
      %1321 = vmatpush.bf16.msra.mxu0 %v1218
      %1322 = vmatmul.bf16.gmra.mxu0 %v1194
      %v1323 = vpop.f32.mrf.mxu0
      %v1324 = vadd.f32 0.0, %v1323
      %v1325 = vpop.f32.mrf.mxu0
      %1326 = vdwg.mxu0
      %1327 = vmatpush.bf16.msra.mxu0 0
      %1328 = vmatpush.bf16.msra.mxu0 0
      %1329 = vmatpush.bf16.msra.mxu0 0
      %1330 = vmatpush.bf16.msra.mxu0 0
      %1331 = vmatpush.bf16.msra.mxu0 0
      %1332 = vmatpush.bf16.msra.mxu0 0
      %1333 = vmatpush.bf16.msra.mxu0 0
      %1334 = vmatpush.bf16.msra.mxu0 %v1221
      %1335 = vmatmul.bf16.gmra.mxu0 %v1194
      %v1336 = vpop.f32.mrf.mxu0
      %v1337 = vadd.f32 0.0, %v1336
      %v1338 = vpop.f32.mrf.mxu0
      %1339 = vdwg.mxu0
      %v1340 = vadd.f32 %v1152, %v1233
      %v1341 = vadd.f32 %v1153, %v1246
      %v1342 = vadd.f32 %v1154, %v1259
      %v1343 = vadd.f32 %v1155, %v1272
      %v1344 = vadd.f32 %v1156, %v1285
      %v1345 = vadd.f32 %v1157, %v1298
      %v1346 = vadd.f32 %v1158, %v1311
      %v1347 = vadd.f32 %v1159, %v1324
      %v1348 = vadd.f32 %v1160, %v1337
      %s1349 = scalar_lea.vmem %s1, 24
      %v1350 = vld [vmem:[%s1349] sm:$0xf]
      %1351 = vrot.lane.b32.xlu0 %v238, 91
      %v1352 = vpop.permute.xlu0 %1351
      %1353 = vrot.lane.b32.xlu0 %v239, 91
      %v1354 = vpop.permute.xlu0 %1353
      %1355 = vrot.lane.b32.xlu0 %v240, 91
      %v1356 = vpop.permute.xlu0 %1355
      %1357 = vrot.lane.b32.xlu0 %v241, 91
      %v1358 = vpop.permute.xlu0 %1357
      %1359 = vrot.lane.b32.xlu0 %v242, 91
      %v1360 = vpop.permute.xlu0 %1359
      %1361 = vrot.lane.b32.xlu0 %v243, 91
      %v1362 = vpop.permute.xlu0 %1361
      %1363 = vrot.lane.b32.xlu0 %v244, 91
      %v1364 = vpop.permute.xlu0 %1363
      %1365 = vrot.lane.b32.xlu0 %v245, 91
      %v1366 = vpop.permute.xlu0 %1365
      %1367 = vrot.lane.b32.xlu0 %v246, 91
      %v1368 = vpop.permute.xlu0 %1367
      %1369 = vrot.lane.b32.xlu0 %v247, 91
      %v1370 = vpop.permute.xlu0 %1369
      %vm1371 = vcmask 744448
      %v1372 = vsel %vm1371, %v1352, %v1354
      %v1373 = vsel %vm1371, %v1354, %v1356
      %v1374 = vsel %vm1371, %v1356, %v1358
      %v1375 = vsel %vm1371, %v1358, %v1360
      %v1376 = vsel %vm1371, %v1360, %v1362
      %v1377 = vsel %vm1371, %v1362, %v1364
      %v1378 = vsel %vm1371, %v1364, %v1366
      %v1379 = vsel %vm1371, %v1366, %v1368
      %v1380 = vsel %vm1371, %v1368, %v1370
      %v1382 = vsel %vm278, %v1350, 0
      %v1385 = vsel %vm282, %v1372, 0
      %v1388 = vsel %vm282, %v1373, 0
      %v1391 = vsel %vm282, %v1374, 0
      %v1394 = vsel %vm282, %v1375, 0
      %v1397 = vsel %vm282, %v1376, 0
      %v1400 = vsel %vm282, %v1377, 0
      %v1403 = vsel %vm282, %v1378, 0
      %v1406 = vsel %vm282, %v1379, 0
      %v1409 = vsel %vm282, %v1380, 0
      %1411 = vmatpush.bf16.msra.mxu0 0
      %1412 = vmatpush.bf16.msra.mxu0 0
      %1413 = vmatpush.bf16.msra.mxu0 0
      %1414 = vmatpush.bf16.msra.mxu0 0
      %1415 = vmatpush.bf16.msra.mxu0 0
      %1416 = vmatpush.bf16.msra.mxu0 0
      %1417 = vmatpush.bf16.msra.mxu0 0
      %1418 = vmatpush.bf16.msra.mxu0 %v1385
      %1419 = vmatmul.bf16.gmra.mxu0 %v1382
      %v1420 = vpop.f32.mrf.mxu0
      %v1421 = vadd.f32 0.0, %v1420
      %v1422 = vpop.f32.mrf.mxu0
      %1423 = vdwg.mxu0
      %1424 = vmatpush.bf16.msra.mxu0 0
      %1425 = vmatpush.bf16.msra.mxu0 0
      %1426 = vmatpush.bf16.msra.mxu0 0
      %1427 = vmatpush.bf16.msra.mxu0 0
      %1428 = vmatpush.bf16.msra.mxu0 0
      %1429 = vmatpush.bf16.msra.mxu0 0
      %1430 = vmatpush.bf16.msra.mxu0 0
      %1431 = vmatpush.bf16.msra.mxu0 %v1388
      %1432 = vmatmul.bf16.gmra.mxu0 %v1382
      %v1433 = vpop.f32.mrf.mxu0
      %v1434 = vadd.f32 0.0, %v1433
      %v1435 = vpop.f32.mrf.mxu0
      %1436 = vdwg.mxu0
      %1437 = vmatpush.bf16.msra.mxu0 0
      %1438 = vmatpush.bf16.msra.mxu0 0
      %1439 = vmatpush.bf16.msra.mxu0 0
      %1440 = vmatpush.bf16.msra.mxu0 0
      %1441 = vmatpush.bf16.msra.mxu0 0
      %1442 = vmatpush.bf16.msra.mxu0 0
      %1443 = vmatpush.bf16.msra.mxu0 0
      %1444 = vmatpush.bf16.msra.mxu0 %v1391
      %1445 = vmatmul.bf16.gmra.mxu0 %v1382
      %v1446 = vpop.f32.mrf.mxu0
      %v1447 = vadd.f32 0.0, %v1446
      %v1448 = vpop.f32.mrf.mxu0
      %1449 = vdwg.mxu0
      %1450 = vmatpush.bf16.msra.mxu0 0
      %1451 = vmatpush.bf16.msra.mxu0 0
      %1452 = vmatpush.bf16.msra.mxu0 0
      %1453 = vmatpush.bf16.msra.mxu0 0
      %1454 = vmatpush.bf16.msra.mxu0 0
      %1455 = vmatpush.bf16.msra.mxu0 0
      %1456 = vmatpush.bf16.msra.mxu0 0
      %1457 = vmatpush.bf16.msra.mxu0 %v1394
      %1458 = vmatmul.bf16.gmra.mxu0 %v1382
      %v1459 = vpop.f32.mrf.mxu0
      %v1460 = vadd.f32 0.0, %v1459
      %v1461 = vpop.f32.mrf.mxu0
      %1462 = vdwg.mxu0
      %1463 = vmatpush.bf16.msra.mxu0 0
      %1464 = vmatpush.bf16.msra.mxu0 0
      %1465 = vmatpush.bf16.msra.mxu0 0
      %1466 = vmatpush.bf16.msra.mxu0 0
      %1467 = vmatpush.bf16.msra.mxu0 0
      %1468 = vmatpush.bf16.msra.mxu0 0
      %1469 = vmatpush.bf16.msra.mxu0 0
      %1470 = vmatpush.bf16.msra.mxu0 %v1397
      %1471 = vmatmul.bf16.gmra.mxu0 %v1382
      %v1472 = vpop.f32.mrf.mxu0
      %v1473 = vadd.f32 0.0, %v1472
      %v1474 = vpop.f32.mrf.mxu0
      %1475 = vdwg.mxu0
      %1476 = vmatpush.bf16.msra.mxu0 0
      %1477 = vmatpush.bf16.msra.mxu0 0
      %1478 = vmatpush.bf16.msra.mxu0 0
      %1479 = vmatpush.bf16.msra.mxu0 0
      %1480 = vmatpush.bf16.msra.mxu0 0
      %1481 = vmatpush.bf16.msra.mxu0 0
      %1482 = vmatpush.bf16.msra.mxu0 0
      %1483 = vmatpush.bf16.msra.mxu0 %v1400
      %1484 = vmatmul.bf16.gmra.mxu0 %v1382
      %v1485 = vpop.f32.mrf.mxu0
      %v1486 = vadd.f32 0.0, %v1485
      %v1487 = vpop.f32.mrf.mxu0
      %1488 = vdwg.mxu0
      %1489 = vmatpush.bf16.msra.mxu0 0
      %1490 = vmatpush.bf16.msra.mxu0 0
      %1491 = vmatpush.bf16.msra.mxu0 0
      %1492 = vmatpush.bf16.msra.mxu0 0
      %1493 = vmatpush.bf16.msra.mxu0 0
      %1494 = vmatpush.bf16.msra.mxu0 0
      %1495 = vmatpush.bf16.msra.mxu0 0
      %1496 = vmatpush.bf16.msra.mxu0 %v1403
      %1497 = vmatmul.bf16.gmra.mxu0 %v1382
      %v1498 = vpop.f32.mrf.mxu0
      %v1499 = vadd.f32 0.0, %v1498
      %v1500 = vpop.f32.mrf.mxu0
      %1501 = vdwg.mxu0
      %1502 = vmatpush.bf16.msra.mxu0 0
      %1503 = vmatpush.bf16.msra.mxu0 0
      %1504 = vmatpush.bf16.msra.mxu0 0
      %1505 = vmatpush.bf16.msra.mxu0 0
      %1506 = vmatpush.bf16.msra.mxu0 0
      %1507 = vmatpush.bf16.msra.mxu0 0
      %1508 = vmatpush.bf16.msra.mxu0 0
      %1509 = vmatpush.bf16.msra.mxu0 %v1406
      %1510 = vmatmul.bf16.gmra.mxu0 %v1382
      %v1511 = vpop.f32.mrf.mxu0
      %v1512 = vadd.f32 0.0, %v1511
      %v1513 = vpop.f32.mrf.mxu0
      %1514 = vdwg.mxu0
      %1515 = vmatpush.bf16.msra.mxu0 0
      %1516 = vmatpush.bf16.msra.mxu0 0
      %1517 = vmatpush.bf16.msra.mxu0 0
      %1518 = vmatpush.bf16.msra.mxu0 0
      %1519 = vmatpush.bf16.msra.mxu0 0
      %1520 = vmatpush.bf16.msra.mxu0 0
      %1521 = vmatpush.bf16.msra.mxu0 0
      %1522 = vmatpush.bf16.msra.mxu0 %v1409
      %1523 = vmatmul.bf16.gmra.mxu0 %v1382
      %v1524 = vpop.f32.mrf.mxu0
      %v1525 = vadd.f32 0.0, %v1524
      %v1526 = vpop.f32.mrf.mxu0
      %1527 = vdwg.mxu0
      %v1528 = vadd.f32 %v1340, %v1421
      %v1529 = vadd.f32 %v1341, %v1434
      %v1530 = vadd.f32 %v1342, %v1447
      %v1531 = vadd.f32 %v1343, %v1460
      %v1532 = vadd.f32 %v1344, %v1473
      %v1533 = vadd.f32 %v1345, %v1486
      %v1534 = vadd.f32 %v1346, %v1499
      %v1535 = vadd.f32 %v1347, %v1512
      %v1536 = vadd.f32 %v1348, %v1525
      %s1537 = scalar_lea.vmem %s1, 28
      %v1538 = vld [vmem:[%s1537] sm:$0xf]
      %1539 = vrot.lane.b32.xlu0 %v238, 90
      %v1540 = vpop.permute.xlu0 %1539
      %1541 = vrot.lane.b32.xlu0 %v239, 90
      %v1542 = vpop.permute.xlu0 %1541
      %1543 = vrot.lane.b32.xlu0 %v240, 90
      %v1544 = vpop.permute.xlu0 %1543
      %1545 = vrot.lane.b32.xlu0 %v241, 90
      %v1546 = vpop.permute.xlu0 %1545
      %1547 = vrot.lane.b32.xlu0 %v242, 90
      %v1548 = vpop.permute.xlu0 %1547
      %1549 = vrot.lane.b32.xlu0 %v243, 90
      %v1550 = vpop.permute.xlu0 %1549
      %1551 = vrot.lane.b32.xlu0 %v244, 90
      %v1552 = vpop.permute.xlu0 %1551
      %1553 = vrot.lane.b32.xlu0 %v245, 90
      %v1554 = vpop.permute.xlu0 %1553
      %1555 = vrot.lane.b32.xlu0 %v246, 90
      %v1556 = vpop.permute.xlu0 %1555
      %1557 = vrot.lane.b32.xlu0 %v247, 90
      %v1558 = vpop.permute.xlu0 %1557
      %vm1559 = vcmask 736256
      %v1560 = vsel %vm1559, %v1540, %v1542
      %v1561 = vsel %vm1559, %v1542, %v1544
      %v1562 = vsel %vm1559, %v1544, %v1546
      %v1563 = vsel %vm1559, %v1546, %v1548
      %v1564 = vsel %vm1559, %v1548, %v1550
      %v1565 = vsel %vm1559, %v1550, %v1552
      %v1566 = vsel %vm1559, %v1552, %v1554
      %v1567 = vsel %vm1559, %v1554, %v1556
      %v1568 = vsel %vm1559, %v1556, %v1558
      %v1570 = vsel %vm278, %v1538, 0
      %v1573 = vsel %vm282, %v1560, 0
      %v1576 = vsel %vm282, %v1561, 0
      %v1579 = vsel %vm282, %v1562, 0
      %v1582 = vsel %vm282, %v1563, 0
      %v1585 = vsel %vm282, %v1564, 0
      %v1588 = vsel %vm282, %v1565, 0
      %v1591 = vsel %vm282, %v1566, 0
      %v1594 = vsel %vm282, %v1567, 0
      %v1597 = vsel %vm282, %v1568, 0
      %1599 = vmatpush.bf16.msra.mxu0 0
      %1600 = vmatpush.bf16.msra.mxu0 0
      %1601 = vmatpush.bf16.msra.mxu0 0
      %1602 = vmatpush.bf16.msra.mxu0 0
      %1603 = vmatpush.bf16.msra.mxu0 0
      %1604 = vmatpush.bf16.msra.mxu0 0
      %1605 = vmatpush.bf16.msra.mxu0 0
      %1606 = vmatpush.bf16.msra.mxu0 %v1573
      %1607 = vmatmul.bf16.gmra.mxu0 %v1570
      %v1608 = vpop.f32.mrf.mxu0
      %v1609 = vadd.f32 0.0, %v1608
      %v1610 = vpop.f32.mrf.mxu0
      %1611 = vdwg.mxu0
      %1612 = vmatpush.bf16.msra.mxu0 0
      %1613 = vmatpush.bf16.msra.mxu0 0
      %1614 = vmatpush.bf16.msra.mxu0 0
      %1615 = vmatpush.bf16.msra.mxu0 0
      %1616 = vmatpush.bf16.msra.mxu0 0
      %1617 = vmatpush.bf16.msra.mxu0 0
      %1618 = vmatpush.bf16.msra.mxu0 0
      %1619 = vmatpush.bf16.msra.mxu0 %v1576
      %1620 = vmatmul.bf16.gmra.mxu0 %v1570
      %v1621 = vpop.f32.mrf.mxu0
      %v1622 = vadd.f32 0.0, %v1621
      %v1623 = vpop.f32.mrf.mxu0
      %1624 = vdwg.mxu0
      %1625 = vmatpush.bf16.msra.mxu0 0
      %1626 = vmatpush.bf16.msra.mxu0 0
      %1627 = vmatpush.bf16.msra.mxu0 0
      %1628 = vmatpush.bf16.msra.mxu0 0
      %1629 = vmatpush.bf16.msra.mxu0 0
      %1630 = vmatpush.bf16.msra.mxu0 0
      %1631 = vmatpush.bf16.msra.mxu0 0
      %1632 = vmatpush.bf16.msra.mxu0 %v1579
      %1633 = vmatmul.bf16.gmra.mxu0 %v1570
      %v1634 = vpop.f32.mrf.mxu0
      %v1635 = vadd.f32 0.0, %v1634
      %v1636 = vpop.f32.mrf.mxu0
      %1637 = vdwg.mxu0
      %1638 = vmatpush.bf16.msra.mxu0 0
      %1639 = vmatpush.bf16.msra.mxu0 0
      %1640 = vmatpush.bf16.msra.mxu0 0
      %1641 = vmatpush.bf16.msra.mxu0 0
      %1642 = vmatpush.bf16.msra.mxu0 0
      %1643 = vmatpush.bf16.msra.mxu0 0
      %1644 = vmatpush.bf16.msra.mxu0 0
      %1645 = vmatpush.bf16.msra.mxu0 %v1582
      %1646 = vmatmul.bf16.gmra.mxu0 %v1570
      %v1647 = vpop.f32.mrf.mxu0
      %v1648 = vadd.f32 0.0, %v1647
      %v1649 = vpop.f32.mrf.mxu0
      %1650 = vdwg.mxu0
      %1651 = vmatpush.bf16.msra.mxu0 0
      %1652 = vmatpush.bf16.msra.mxu0 0
      %1653 = vmatpush.bf16.msra.mxu0 0
      %1654 = vmatpush.bf16.msra.mxu0 0
      %1655 = vmatpush.bf16.msra.mxu0 0
      %1656 = vmatpush.bf16.msra.mxu0 0
      %1657 = vmatpush.bf16.msra.mxu0 0
      %1658 = vmatpush.bf16.msra.mxu0 %v1585
      %1659 = vmatmul.bf16.gmra.mxu0 %v1570
      %v1660 = vpop.f32.mrf.mxu0
      %v1661 = vadd.f32 0.0, %v1660
      %v1662 = vpop.f32.mrf.mxu0
      %1663 = vdwg.mxu0
      %1664 = vmatpush.bf16.msra.mxu0 0
      %1665 = vmatpush.bf16.msra.mxu0 0
      %1666 = vmatpush.bf16.msra.mxu0 0
      %1667 = vmatpush.bf16.msra.mxu0 0
      %1668 = vmatpush.bf16.msra.mxu0 0
      %1669 = vmatpush.bf16.msra.mxu0 0
      %1670 = vmatpush.bf16.msra.mxu0 0
      %1671 = vmatpush.bf16.msra.mxu0 %v1588
      %1672 = vmatmul.bf16.gmra.mxu0 %v1570
      %v1673 = vpop.f32.mrf.mxu0
      %v1674 = vadd.f32 0.0, %v1673
      %v1675 = vpop.f32.mrf.mxu0
      %1676 = vdwg.mxu0
      %1677 = vmatpush.bf16.msra.mxu0 0
      %1678 = vmatpush.bf16.msra.mxu0 0
      %1679 = vmatpush.bf16.msra.mxu0 0
      %1680 = vmatpush.bf16.msra.mxu0 0
      %1681 = vmatpush.bf16.msra.mxu0 0
      %1682 = vmatpush.bf16.msra.mxu0 0
      %1683 = vmatpush.bf16.msra.mxu0 0
      %1684 = vmatpush.bf16.msra.mxu0 %v1591
      %1685 = vmatmul.bf16.gmra.mxu0 %v1570
      %v1686 = vpop.f32.mrf.mxu0
      %v1687 = vadd.f32 0.0, %v1686
      %v1688 = vpop.f32.mrf.mxu0
      %1689 = vdwg.mxu0
      %1690 = vmatpush.bf16.msra.mxu0 0
      %1691 = vmatpush.bf16.msra.mxu0 0
      %1692 = vmatpush.bf16.msra.mxu0 0
      %1693 = vmatpush.bf16.msra.mxu0 0
      %1694 = vmatpush.bf16.msra.mxu0 0
      %1695 = vmatpush.bf16.msra.mxu0 0
      %1696 = vmatpush.bf16.msra.mxu0 0
      %1697 = vmatpush.bf16.msra.mxu0 %v1594
      %1698 = vmatmul.bf16.gmra.mxu0 %v1570
      %v1699 = vpop.f32.mrf.mxu0
      %v1700 = vadd.f32 0.0, %v1699
      %v1701 = vpop.f32.mrf.mxu0
      %1702 = vdwg.mxu0
      %1703 = vmatpush.bf16.msra.mxu0 0
      %1704 = vmatpush.bf16.msra.mxu0 0
      %1705 = vmatpush.bf16.msra.mxu0 0
      %1706 = vmatpush.bf16.msra.mxu0 0
      %1707 = vmatpush.bf16.msra.mxu0 0
      %1708 = vmatpush.bf16.msra.mxu0 0
      %1709 = vmatpush.bf16.msra.mxu0 0
      %1710 = vmatpush.bf16.msra.mxu0 %v1597
      %1711 = vmatmul.bf16.gmra.mxu0 %v1570
      %v1712 = vpop.f32.mrf.mxu0
      %v1713 = vadd.f32 0.0, %v1712
      %v1714 = vpop.f32.mrf.mxu0
      %1715 = vdwg.mxu0
      %v1716 = vadd.f32 %v1528, %v1609
      %v1717 = vadd.f32 %v1529, %v1622
      %v1718 = vadd.f32 %v1530, %v1635
      %v1719 = vadd.f32 %v1531, %v1648
      %v1720 = vadd.f32 %v1532, %v1661
      %v1721 = vadd.f32 %v1533, %v1674
      %v1722 = vadd.f32 %v1534, %v1687
      %v1723 = vadd.f32 %v1535, %v1700
      %v1724 = vadd.f32 %v1536, %v1713
      %s1725 = scalar_lea.vmem %s1, 32
      %v1726 = vld [vmem:[%s1725] sm:$0xf]
      %1727 = vrot.lane.b32.xlu0 %v238, 58
      %v1728 = vpop.permute.xlu0 %1727
      %1729 = vrot.lane.b32.xlu0 %v239, 58
      %v1730 = vpop.permute.xlu0 %1729
      %1731 = vrot.lane.b32.xlu0 %v240, 58
      %v1732 = vpop.permute.xlu0 %1731
      %1733 = vrot.lane.b32.xlu0 %v241, 58
      %v1734 = vpop.permute.xlu0 %1733
      %1735 = vrot.lane.b32.xlu0 %v242, 58
      %v1736 = vpop.permute.xlu0 %1735
      %1737 = vrot.lane.b32.xlu0 %v243, 58
      %v1738 = vpop.permute.xlu0 %1737
      %1739 = vrot.lane.b32.xlu0 %v244, 58
      %v1740 = vpop.permute.xlu0 %1739
      %1741 = vrot.lane.b32.xlu0 %v245, 58
      %v1742 = vpop.permute.xlu0 %1741
      %1743 = vrot.lane.b32.xlu0 %v246, 58
      %v1744 = vpop.permute.xlu0 %1743
      %1745 = vrot.lane.b32.xlu0 %v247, 58
      %v1746 = vpop.permute.xlu0 %1745
      %vm1747 = vcmask 474112
      %v1748 = vsel %vm1747, %v1728, %v1730
      %v1749 = vsel %vm1747, %v1730, %v1732
      %v1750 = vsel %vm1747, %v1732, %v1734
      %v1751 = vsel %vm1747, %v1734, %v1736
      %v1752 = vsel %vm1747, %v1736, %v1738
      %v1753 = vsel %vm1747, %v1738, %v1740
      %v1754 = vsel %vm1747, %v1740, %v1742
      %v1755 = vsel %vm1747, %v1742, %v1744
      %v1756 = vsel %vm1747, %v1744, %v1746
      %v1758 = vsel %vm278, %v1726, 0
      %v1761 = vsel %vm282, %v1748, 0
      %v1764 = vsel %vm282, %v1749, 0
      %v1767 = vsel %vm282, %v1750, 0
      %v1770 = vsel %vm282, %v1751, 0
      %v1773 = vsel %vm282, %v1752, 0
      %v1776 = vsel %vm282, %v1753, 0
      %v1779 = vsel %vm282, %v1754, 0
      %v1782 = vsel %vm282, %v1755, 0
      %v1785 = vsel %vm282, %v1756, 0
      %1787 = vmatpush.bf16.msra.mxu0 0
      %1788 = vmatpush.bf16.msra.mxu0 0
      %1789 = vmatpush.bf16.msra.mxu0 0
      %1790 = vmatpush.bf16.msra.mxu0 0
      %1791 = vmatpush.bf16.msra.mxu0 0
      %1792 = vmatpush.bf16.msra.mxu0 0
      %1793 = vmatpush.bf16.msra.mxu0 0
      %1794 = vmatpush.bf16.msra.mxu0 %v1761
      %1795 = vmatmul.bf16.gmra.mxu0 %v1758
      %v1796 = vpop.f32.mrf.mxu0
      %v1797 = vadd.f32 0.0, %v1796
      %v1798 = vpop.f32.mrf.mxu0
      %1799 = vdwg.mxu0
      %1800 = vmatpush.bf16.msra.mxu0 0
      %1801 = vmatpush.bf16.msra.mxu0 0
      %1802 = vmatpush.bf16.msra.mxu0 0
      %1803 = vmatpush.bf16.msra.mxu0 0
      %1804 = vmatpush.bf16.msra.mxu0 0
      %1805 = vmatpush.bf16.msra.mxu0 0
      %1806 = vmatpush.bf16.msra.mxu0 0
      %1807 = vmatpush.bf16.msra.mxu0 %v1764
      %1808 = vmatmul.bf16.gmra.mxu0 %v1758
      %v1809 = vpop.f32.mrf.mxu0
      %v1810 = vadd.f32 0.0, %v1809
      %v1811 = vpop.f32.mrf.mxu0
      %1812 = vdwg.mxu0
      %1813 = vmatpush.bf16.msra.mxu0 0
      %1814 = vmatpush.bf16.msra.mxu0 0
      %1815 = vmatpush.bf16.msra.mxu0 0
      %1816 = vmatpush.bf16.msra.mxu0 0
      %1817 = vmatpush.bf16.msra.mxu0 0
      %1818 = vmatpush.bf16.msra.mxu0 0
      %1819 = vmatpush.bf16.msra.mxu0 0
      %1820 = vmatpush.bf16.msra.mxu0 %v1767
      %1821 = vmatmul.bf16.gmra.mxu0 %v1758
      %v1822 = vpop.f32.mrf.mxu0
      %v1823 = vadd.f32 0.0, %v1822
      %v1824 = vpop.f32.mrf.mxu0
      %1825 = vdwg.mxu0
      %1826 = vmatpush.bf16.msra.mxu0 0
      %1827 = vmatpush.bf16.msra.mxu0 0
      %1828 = vmatpush.bf16.msra.mxu0 0
      %1829 = vmatpush.bf16.msra.mxu0 0
      %1830 = vmatpush.bf16.msra.mxu0 0
      %1831 = vmatpush.bf16.msra.mxu0 0
      %1832 = vmatpush.bf16.msra.mxu0 0
      %1833 = vmatpush.bf16.msra.mxu0 %v1770
      %1834 = vmatmul.bf16.gmra.mxu0 %v1758
      %v1835 = vpop.f32.mrf.mxu0
      %v1836 = vadd.f32 0.0, %v1835
      %v1837 = vpop.f32.mrf.mxu0
      %1838 = vdwg.mxu0
      %1839 = vmatpush.bf16.msra.mxu0 0
      %1840 = vmatpush.bf16.msra.mxu0 0
      %1841 = vmatpush.bf16.msra.mxu0 0
      %1842 = vmatpush.bf16.msra.mxu0 0
      %1843 = vmatpush.bf16.msra.mxu0 0
      %1844 = vmatpush.bf16.msra.mxu0 0
      %1845 = vmatpush.bf16.msra.mxu0 0
      %1846 = vmatpush.bf16.msra.mxu0 %v1773
      %1847 = vmatmul.bf16.gmra.mxu0 %v1758
      %v1848 = vpop.f32.mrf.mxu0
      %v1849 = vadd.f32 0.0, %v1848
      %v1850 = vpop.f32.mrf.mxu0
      %1851 = vdwg.mxu0
      %1852 = vmatpush.bf16.msra.mxu0 0
      %1853 = vmatpush.bf16.msra.mxu0 0
      %1854 = vmatpush.bf16.msra.mxu0 0
      %1855 = vmatpush.bf16.msra.mxu0 0
      %1856 = vmatpush.bf16.msra.mxu0 0
      %1857 = vmatpush.bf16.msra.mxu0 0
      %1858 = vmatpush.bf16.msra.mxu0 0
      %1859 = vmatpush.bf16.msra.mxu0 %v1776
      %1860 = vmatmul.bf16.gmra.mxu0 %v1758
      %v1861 = vpop.f32.mrf.mxu0
      %v1862 = vadd.f32 0.0, %v1861
      %v1863 = vpop.f32.mrf.mxu0
      %1864 = vdwg.mxu0
      %1865 = vmatpush.bf16.msra.mxu0 0
      %1866 = vmatpush.bf16.msra.mxu0 0
      %1867 = vmatpush.bf16.msra.mxu0 0
      %1868 = vmatpush.bf16.msra.mxu0 0
      %1869 = vmatpush.bf16.msra.mxu0 0
      %1870 = vmatpush.bf16.msra.mxu0 0
      %1871 = vmatpush.bf16.msra.mxu0 0
      %1872 = vmatpush.bf16.msra.mxu0 %v1779
      %1873 = vmatmul.bf16.gmra.mxu0 %v1758
      %v1874 = vpop.f32.mrf.mxu0
      %v1875 = vadd.f32 0.0, %v1874
      %v1876 = vpop.f32.mrf.mxu0
      %1877 = vdwg.mxu0
      %1878 = vmatpush.bf16.msra.mxu0 0
      %1879 = vmatpush.bf16.msra.mxu0 0
      %1880 = vmatpush.bf16.msra.mxu0 0
      %1881 = vmatpush.bf16.msra.mxu0 0
      %1882 = vmatpush.bf16.msra.mxu0 0
      %1883 = vmatpush.bf16.msra.mxu0 0
      %1884 = vmatpush.bf16.msra.mxu0 0
      %1885 = vmatpush.bf16.msra.mxu0 %v1782
      %1886 = vmatmul.bf16.gmra.mxu0 %v1758
      %v1887 = vpop.f32.mrf.mxu0
      %v1888 = vadd.f32 0.0, %v1887
      %v1889 = vpop.f32.mrf.mxu0
      %1890 = vdwg.mxu0
      %1891 = vmatpush.bf16.msra.mxu0 0
      %1892 = vmatpush.bf16.msra.mxu0 0
      %1893 = vmatpush.bf16.msra.mxu0 0
      %1894 = vmatpush.bf16.msra.mxu0 0
      %1895 = vmatpush.bf16.msra.mxu0 0
      %1896 = vmatpush.bf16.msra.mxu0 0
      %1897 = vmatpush.bf16.msra.mxu0 0
      %1898 = vmatpush.bf16.msra.mxu0 %v1785
      %1899 = vmatmul.bf16.gmra.mxu0 %v1758
      %v1900 = vpop.f32.mrf.mxu0
      %v1901 = vadd.f32 0.0, %v1900
      %v1902 = vpop.f32.mrf.mxu0
      %1903 = vdwg.mxu0
      %v1904 = vadd.f32 %v1716, %v1797
      %v1905 = vadd.f32 %v1717, %v1810
      %v1906 = vadd.f32 %v1718, %v1823
      %v1907 = vadd.f32 %v1719, %v1836
      %v1908 = vadd.f32 %v1720, %v1849
      %v1909 = vadd.f32 %v1721, %v1862
      %v1910 = vadd.f32 %v1722, %v1875
      %v1911 = vadd.f32 %v1723, %v1888
      %v1912 = vadd.f32 %v1724, %v1901
      %s1913 = scalar_lea.vmem %s1, 36
      %v1914 = vld [vmem:[%s1913] sm:$0xf]
      %1915 = vrot.lane.b32.xlu0 %v238, 57
      %v1916 = vpop.permute.xlu0 %1915
      %1917 = vrot.lane.b32.xlu0 %v239, 57
      %v1918 = vpop.permute.xlu0 %1917
      %1919 = vrot.lane.b32.xlu0 %v240, 57
      %v1920 = vpop.permute.xlu0 %1919
      %1921 = vrot.lane.b32.xlu0 %v241, 57
      %v1922 = vpop.permute.xlu0 %1921
      %1923 = vrot.lane.b32.xlu0 %v242, 57
      %v1924 = vpop.permute.xlu0 %1923
      %1925 = vrot.lane.b32.xlu0 %v243, 57
      %v1926 = vpop.permute.xlu0 %1925
      %1927 = vrot.lane.b32.xlu0 %v244, 57
      %v1928 = vpop.permute.xlu0 %1927
      %1929 = vrot.lane.b32.xlu0 %v245, 57
      %v1930 = vpop.permute.xlu0 %1929
      %1931 = vrot.lane.b32.xlu0 %v246, 57
      %v1932 = vpop.permute.xlu0 %1931
      %1933 = vrot.lane.b32.xlu0 %v247, 57
      %v1934 = vpop.permute.xlu0 %1933
      %vm1935 = vcmask 465920
      %v1936 = vsel %vm1935, %v1916, %v1918
      %v1937 = vsel %vm1935, %v1918, %v1920
      %v1938 = vsel %vm1935, %v1920, %v1922
      %v1939 = vsel %vm1935, %v1922, %v1924
      %v1940 = vsel %vm1935, %v1924, %v1926
      %v1941 = vsel %vm1935, %v1926, %v1928
      %v1942 = vsel %vm1935, %v1928, %v1930
      %v1943 = vsel %vm1935, %v1930, %v1932
      %v1944 = vsel %vm1935, %v1932, %v1934
      %v1946 = vsel %vm278, %v1914, 0
      %v1949 = vsel %vm282, %v1936, 0
      %v1952 = vsel %vm282, %v1937, 0
      %v1955 = vsel %vm282, %v1938, 0
      %v1958 = vsel %vm282, %v1939, 0
      %v1961 = vsel %vm282, %v1940, 0
      %v1964 = vsel %vm282, %v1941, 0
      %v1967 = vsel %vm282, %v1942, 0
      %v1970 = vsel %vm282, %v1943, 0
      %v1973 = vsel %vm282, %v1944, 0
      %1975 = vmatpush.bf16.msra.mxu0 0
      %1976 = vmatpush.bf16.msra.mxu0 0
      %1977 = vmatpush.bf16.msra.mxu0 0
      %1978 = vmatpush.bf16.msra.mxu0 0
      %1979 = vmatpush.bf16.msra.mxu0 0
      %1980 = vmatpush.bf16.msra.mxu0 0
      %1981 = vmatpush.bf16.msra.mxu0 0
      %1982 = vmatpush.bf16.msra.mxu0 %v1949
      %1983 = vmatmul.bf16.gmra.mxu0 %v1946
      %v1984 = vpop.f32.mrf.mxu0
      %v1985 = vadd.f32 0.0, %v1984
      %v1986 = vpop.f32.mrf.mxu0
      %1987 = vdwg.mxu0
      %1988 = vmatpush.bf16.msra.mxu0 0
      %1989 = vmatpush.bf16.msra.mxu0 0
      %1990 = vmatpush.bf16.msra.mxu0 0
      %1991 = vmatpush.bf16.msra.mxu0 0
      %1992 = vmatpush.bf16.msra.mxu0 0
      %1993 = vmatpush.bf16.msra.mxu0 0
      %1994 = vmatpush.bf16.msra.mxu0 0
      %1995 = vmatpush.bf16.msra.mxu0 %v1952
      %1996 = vmatmul.bf16.gmra.mxu0 %v1946
      %v1997 = vpop.f32.mrf.mxu0
      %v1998 = vadd.f32 0.0, %v1997
      %v1999 = vpop.f32.mrf.mxu0
      %2000 = vdwg.mxu0
      %2001 = vmatpush.bf16.msra.mxu0 0
      %2002 = vmatpush.bf16.msra.mxu0 0
      %2003 = vmatpush.bf16.msra.mxu0 0
      %2004 = vmatpush.bf16.msra.mxu0 0
      %2005 = vmatpush.bf16.msra.mxu0 0
      %2006 = vmatpush.bf16.msra.mxu0 0
      %2007 = vmatpush.bf16.msra.mxu0 0
      %2008 = vmatpush.bf16.msra.mxu0 %v1955
      %2009 = vmatmul.bf16.gmra.mxu0 %v1946
      %v2010 = vpop.f32.mrf.mxu0
      %v2011 = vadd.f32 0.0, %v2010
      %v2012 = vpop.f32.mrf.mxu0
      %2013 = vdwg.mxu0
      %2014 = vmatpush.bf16.msra.mxu0 0
      %2015 = vmatpush.bf16.msra.mxu0 0
      %2016 = vmatpush.bf16.msra.mxu0 0
      %2017 = vmatpush.bf16.msra.mxu0 0
      %2018 = vmatpush.bf16.msra.mxu0 0
      %2019 = vmatpush.bf16.msra.mxu0 0
      %2020 = vmatpush.bf16.msra.mxu0 0
      %2021 = vmatpush.bf16.msra.mxu0 %v1958
      %2022 = vmatmul.bf16.gmra.mxu0 %v1946
      %v2023 = vpop.f32.mrf.mxu0
      %v2024 = vadd.f32 0.0, %v2023
      %v2025 = vpop.f32.mrf.mxu0
      %2026 = vdwg.mxu0
      %2027 = vmatpush.bf16.msra.mxu0 0
      %2028 = vmatpush.bf16.msra.mxu0 0
      %2029 = vmatpush.bf16.msra.mxu0 0
      %2030 = vmatpush.bf16.msra.mxu0 0
      %2031 = vmatpush.bf16.msra.mxu0 0
      %2032 = vmatpush.bf16.msra.mxu0 0
      %2033 = vmatpush.bf16.msra.mxu0 0
      %2034 = vmatpush.bf16.msra.mxu0 %v1961
      %2035 = vmatmul.bf16.gmra.mxu0 %v1946
      %v2036 = vpop.f32.mrf.mxu0
      %v2037 = vadd.f32 0.0, %v2036
      %v2038 = vpop.f32.mrf.mxu0
      %2039 = vdwg.mxu0
      %2040 = vmatpush.bf16.msra.mxu0 0
      %2041 = vmatpush.bf16.msra.mxu0 0
      %2042 = vmatpush.bf16.msra.mxu0 0
      %2043 = vmatpush.bf16.msra.mxu0 0
      %2044 = vmatpush.bf16.msra.mxu0 0
      %2045 = vmatpush.bf16.msra.mxu0 0
      %2046 = vmatpush.bf16.msra.mxu0 0
      %2047 = vmatpush.bf16.msra.mxu0 %v1964
      %2048 = vmatmul.bf16.gmra.mxu0 %v1946
      %v2049 = vpop.f32.mrf.mxu0
      %v2050 = vadd.f32 0.0, %v2049
      %v2051 = vpop.f32.mrf.mxu0
      %2052 = vdwg.mxu0
      %2053 = vmatpush.bf16.msra.mxu0 0
      %2054 = vmatpush.bf16.msra.mxu0 0
      %2055 = vmatpush.bf16.msra.mxu0 0
      %2056 = vmatpush.bf16.msra.mxu0 0
      %2057 = vmatpush.bf16.msra.mxu0 0
      %2058 = vmatpush.bf16.msra.mxu0 0
      %2059 = vmatpush.bf16.msra.mxu0 0
      %2060 = vmatpush.bf16.msra.mxu0 %v1967
      %2061 = vmatmul.bf16.gmra.mxu0 %v1946
      %v2062 = vpop.f32.mrf.mxu0
      %v2063 = vadd.f32 0.0, %v2062
      %v2064 = vpop.f32.mrf.mxu0
      %2065 = vdwg.mxu0
      %2066 = vmatpush.bf16.msra.mxu0 0
      %2067 = vmatpush.bf16.msra.mxu0 0
      %2068 = vmatpush.bf16.msra.mxu0 0
      %2069 = vmatpush.bf16.msra.mxu0 0
      %2070 = vmatpush.bf16.msra.mxu0 0
      %2071 = vmatpush.bf16.msra.mxu0 0
      %2072 = vmatpush.bf16.msra.mxu0 0
      %2073 = vmatpush.bf16.msra.mxu0 %v1970
      %2074 = vmatmul.bf16.gmra.mxu0 %v1946
      %v2075 = vpop.f32.mrf.mxu0
      %v2076 = vadd.f32 0.0, %v2075
      %v2077 = vpop.f32.mrf.mxu0
      %2078 = vdwg.mxu0
      %2079 = vmatpush.bf16.msra.mxu0 0
      %2080 = vmatpush.bf16.msra.mxu0 0
      %2081 = vmatpush.bf16.msra.mxu0 0
      %2082 = vmatpush.bf16.msra.mxu0 0
      %2083 = vmatpush.bf16.msra.mxu0 0
      %2084 = vmatpush.bf16.msra.mxu0 0
      %2085 = vmatpush.bf16.msra.mxu0 0
      %2086 = vmatpush.bf16.msra.mxu0 %v1973
      %2087 = vmatmul.bf16.gmra.mxu0 %v1946
      %v2088 = vpop.f32.mrf.mxu0
      %v2089 = vadd.f32 0.0, %v2088
      %v2090 = vpop.f32.mrf.mxu0
      %2091 = vdwg.mxu0
      %v2092 = vadd.f32 %v1904, %v1985
      %v2093 = vadd.f32 %v1905, %v1998
      %v2094 = vadd.f32 %v1906, %v2011
      %v2095 = vadd.f32 %v1907, %v2024
      %v2096 = vadd.f32 %v1908, %v2037
      %v2097 = vadd.f32 %v1909, %v2050
      %v2098 = vadd.f32 %v1910, %v2063
      %v2099 = vadd.f32 %v1911, %v2076
      %v2100 = vadd.f32 %v1912, %v2089
      %s2101 = scalar_lea.vmem %s1, 40
      %v2102 = vld [vmem:[%s2101] sm:$0xf]
      %2103 = vrot.lane.b32.xlu0 %v238, 56
      %v2104 = vpop.permute.xlu0 %2103
      %2105 = vrot.lane.b32.xlu0 %v239, 56
      %v2106 = vpop.permute.xlu0 %2105
      %2107 = vrot.lane.b32.xlu0 %v240, 56
      %v2108 = vpop.permute.xlu0 %2107
      %2109 = vrot.lane.b32.xlu0 %v241, 56
      %v2110 = vpop.permute.xlu0 %2109
      %2111 = vrot.lane.b32.xlu0 %v242, 56
      %v2112 = vpop.permute.xlu0 %2111
      %2113 = vrot.lane.b32.xlu0 %v243, 56
      %v2114 = vpop.permute.xlu0 %2113
      %2115 = vrot.lane.b32.xlu0 %v244, 56
      %v2116 = vpop.permute.xlu0 %2115
      %2117 = vrot.lane.b32.xlu0 %v245, 56
      %v2118 = vpop.permute.xlu0 %2117
      %2119 = vrot.lane.b32.xlu0 %v246, 56
      %v2120 = vpop.permute.xlu0 %2119
      %2121 = vrot.lane.b32.xlu0 %v247, 56
      %v2122 = vpop.permute.xlu0 %2121
      %vm2123 = vcmask 457728
      %v2124 = vsel %vm2123, %v2104, %v2106
      %v2125 = vsel %vm2123, %v2106, %v2108
      %v2126 = vsel %vm2123, %v2108, %v2110
      %v2127 = vsel %vm2123, %v2110, %v2112
      %v2128 = vsel %vm2123, %v2112, %v2114
      %v2129 = vsel %vm2123, %v2114, %v2116
      %v2130 = vsel %vm2123, %v2116, %v2118
      %v2131 = vsel %vm2123, %v2118, %v2120
      %v2132 = vsel %vm2123, %v2120, %v2122
      %v2134 = vsel %vm278, %v2102, 0
      %v2137 = vsel %vm282, %v2124, 0
      %v2140 = vsel %vm282, %v2125, 0
      %v2143 = vsel %vm282, %v2126, 0
      %v2146 = vsel %vm282, %v2127, 0
      %v2149 = vsel %vm282, %v2128, 0
      %v2152 = vsel %vm282, %v2129, 0
      %v2155 = vsel %vm282, %v2130, 0
      %v2158 = vsel %vm282, %v2131, 0
      %v2161 = vsel %vm282, %v2132, 0
      %2163 = vmatpush.bf16.msra.mxu0 0
      %2164 = vmatpush.bf16.msra.mxu0 0
      %2165 = vmatpush.bf16.msra.mxu0 0
      %2166 = vmatpush.bf16.msra.mxu0 0
      %2167 = vmatpush.bf16.msra.mxu0 0
      %2168 = vmatpush.bf16.msra.mxu0 0
      %2169 = vmatpush.bf16.msra.mxu0 0
      %2170 = vmatpush.bf16.msra.mxu0 %v2137
      %2171 = vmatmul.bf16.gmra.mxu0 %v2134
      %v2172 = vpop.f32.mrf.mxu0
      %v2173 = vadd.f32 0.0, %v2172
      %v2174 = vpop.f32.mrf.mxu0
      %2175 = vdwg.mxu0
      %2176 = vmatpush.bf16.msra.mxu0 0
      %2177 = vmatpush.bf16.msra.mxu0 0
      %2178 = vmatpush.bf16.msra.mxu0 0
      %2179 = vmatpush.bf16.msra.mxu0 0
      %2180 = vmatpush.bf16.msra.mxu0 0
      %2181 = vmatpush.bf16.msra.mxu0 0
      %2182 = vmatpush.bf16.msra.mxu0 0
      %2183 = vmatpush.bf16.msra.mxu0 %v2140
      %2184 = vmatmul.bf16.gmra.mxu0 %v2134
      %v2185 = vpop.f32.mrf.mxu0
      %v2186 = vadd.f32 0.0, %v2185
      %v2187 = vpop.f32.mrf.mxu0
      %2188 = vdwg.mxu0
      %2189 = vmatpush.bf16.msra.mxu0 0
      %2190 = vmatpush.bf16.msra.mxu0 0
      %2191 = vmatpush.bf16.msra.mxu0 0
      %2192 = vmatpush.bf16.msra.mxu0 0
      %2193 = vmatpush.bf16.msra.mxu0 0
      %2194 = vmatpush.bf16.msra.mxu0 0
      %2195 = vmatpush.bf16.msra.mxu0 0
      %2196 = vmatpush.bf16.msra.mxu0 %v2143
      %2197 = vmatmul.bf16.gmra.mxu0 %v2134
      %v2198 = vpop.f32.mrf.mxu0
      %v2199 = vadd.f32 0.0, %v2198
      %v2200 = vpop.f32.mrf.mxu0
      %2201 = vdwg.mxu0
      %2202 = vmatpush.bf16.msra.mxu0 0
      %2203 = vmatpush.bf16.msra.mxu0 0
      %2204 = vmatpush.bf16.msra.mxu0 0
      %2205 = vmatpush.bf16.msra.mxu0 0
      %2206 = vmatpush.bf16.msra.mxu0 0
      %2207 = vmatpush.bf16.msra.mxu0 0
      %2208 = vmatpush.bf16.msra.mxu0 0
      %2209 = vmatpush.bf16.msra.mxu0 %v2146
      %2210 = vmatmul.bf16.gmra.mxu0 %v2134
      %v2211 = vpop.f32.mrf.mxu0
      %v2212 = vadd.f32 0.0, %v2211
      %v2213 = vpop.f32.mrf.mxu0
      %2214 = vdwg.mxu0
      %2215 = vmatpush.bf16.msra.mxu0 0
      %2216 = vmatpush.bf16.msra.mxu0 0
      %2217 = vmatpush.bf16.msra.mxu0 0
      %2218 = vmatpush.bf16.msra.mxu0 0
      %2219 = vmatpush.bf16.msra.mxu0 0
      %2220 = vmatpush.bf16.msra.mxu0 0
      %2221 = vmatpush.bf16.msra.mxu0 0
      %2222 = vmatpush.bf16.msra.mxu0 %v2149
      %2223 = vmatmul.bf16.gmra.mxu0 %v2134
      %v2224 = vpop.f32.mrf.mxu0
      %v2225 = vadd.f32 0.0, %v2224
      %v2226 = vpop.f32.mrf.mxu0
      %2227 = vdwg.mxu0
      %2228 = vmatpush.bf16.msra.mxu0 0
      %2229 = vmatpush.bf16.msra.mxu0 0
      %2230 = vmatpush.bf16.msra.mxu0 0
      %2231 = vmatpush.bf16.msra.mxu0 0
      %2232 = vmatpush.bf16.msra.mxu0 0
      %2233 = vmatpush.bf16.msra.mxu0 0
      %2234 = vmatpush.bf16.msra.mxu0 0
      %2235 = vmatpush.bf16.msra.mxu0 %v2152
      %2236 = vmatmul.bf16.gmra.mxu0 %v2134
      %v2237 = vpop.f32.mrf.mxu0
      %v2238 = vadd.f32 0.0, %v2237
      %v2239 = vpop.f32.mrf.mxu0
      %2240 = vdwg.mxu0
      %2241 = vmatpush.bf16.msra.mxu0 0
      %2242 = vmatpush.bf16.msra.mxu0 0
      %2243 = vmatpush.bf16.msra.mxu0 0
      %2244 = vmatpush.bf16.msra.mxu0 0
      %2245 = vmatpush.bf16.msra.mxu0 0
      %2246 = vmatpush.bf16.msra.mxu0 0
      %2247 = vmatpush.bf16.msra.mxu0 0
      %2248 = vmatpush.bf16.msra.mxu0 %v2155
      %2249 = vmatmul.bf16.gmra.mxu0 %v2134
      %v2250 = vpop.f32.mrf.mxu0
      %v2251 = vadd.f32 0.0, %v2250
      %v2252 = vpop.f32.mrf.mxu0
      %2253 = vdwg.mxu0
      %2254 = vmatpush.bf16.msra.mxu0 0
      %2255 = vmatpush.bf16.msra.mxu0 0
      %2256 = vmatpush.bf16.msra.mxu0 0
      %2257 = vmatpush.bf16.msra.mxu0 0
      %2258 = vmatpush.bf16.msra.mxu0 0
      %2259 = vmatpush.bf16.msra.mxu0 0
      %2260 = vmatpush.bf16.msra.mxu0 0
      %2261 = vmatpush.bf16.msra.mxu0 %v2158
      %2262 = vmatmul.bf16.gmra.mxu0 %v2134
      %v2263 = vpop.f32.mrf.mxu0
      %v2264 = vadd.f32 0.0, %v2263
      %v2265 = vpop.f32.mrf.mxu0
      %2266 = vdwg.mxu0
      %2267 = vmatpush.bf16.msra.mxu0 0
      %2268 = vmatpush.bf16.msra.mxu0 0
      %2269 = vmatpush.bf16.msra.mxu0 0
      %2270 = vmatpush.bf16.msra.mxu0 0
      %2271 = vmatpush.bf16.msra.mxu0 0
      %2272 = vmatpush.bf16.msra.mxu0 0
      %2273 = vmatpush.bf16.msra.mxu0 0
      %2274 = vmatpush.bf16.msra.mxu0 %v2161
      %2275 = vmatmul.bf16.gmra.mxu0 %v2134
      %v2276 = vpop.f32.mrf.mxu0
      %v2277 = vadd.f32 0.0, %v2276
      %v2278 = vpop.f32.mrf.mxu0
      %2279 = vdwg.mxu0
      %v2280 = vadd.f32 %v2092, %v2173
      %v2281 = vadd.f32 %v2093, %v2186
      %v2282 = vadd.f32 %v2094, %v2199
      %v2283 = vadd.f32 %v2095, %v2212
      %v2284 = vadd.f32 %v2096, %v2225
      %v2285 = vadd.f32 %v2097, %v2238
      %v2286 = vadd.f32 %v2098, %v2251
      %v2287 = vadd.f32 %v2099, %v2264
      %v2288 = vadd.f32 %v2100, %v2277
      %s2289 = scalar_lea.vmem %s1, 44
      %v2290 = vld [vmem:[%s2289] sm:$0xf]
      %2291 = vrot.lane.b32.xlu0 %v238, 55
      %v2292 = vpop.permute.xlu0 %2291
      %2293 = vrot.lane.b32.xlu0 %v239, 55
      %v2294 = vpop.permute.xlu0 %2293
      %2295 = vrot.lane.b32.xlu0 %v240, 55
      %v2296 = vpop.permute.xlu0 %2295
      %2297 = vrot.lane.b32.xlu0 %v241, 55
      %v2298 = vpop.permute.xlu0 %2297
      %2299 = vrot.lane.b32.xlu0 %v242, 55
      %v2300 = vpop.permute.xlu0 %2299
      %2301 = vrot.lane.b32.xlu0 %v243, 55
      %v2302 = vpop.permute.xlu0 %2301
      %2303 = vrot.lane.b32.xlu0 %v244, 55
      %v2304 = vpop.permute.xlu0 %2303
      %2305 = vrot.lane.b32.xlu0 %v245, 55
      %v2306 = vpop.permute.xlu0 %2305
      %2307 = vrot.lane.b32.xlu0 %v246, 55
      %v2308 = vpop.permute.xlu0 %2307
      %2309 = vrot.lane.b32.xlu0 %v247, 55
      %v2310 = vpop.permute.xlu0 %2309
      %vm2311 = vcmask 449536
      %v2312 = vsel %vm2311, %v2292, %v2294
      %v2313 = vsel %vm2311, %v2294, %v2296
      %v2314 = vsel %vm2311, %v2296, %v2298
      %v2315 = vsel %vm2311, %v2298, %v2300
      %v2316 = vsel %vm2311, %v2300, %v2302
      %v2317 = vsel %vm2311, %v2302, %v2304
      %v2318 = vsel %vm2311, %v2304, %v2306
      %v2319 = vsel %vm2311, %v2306, %v2308
      %v2320 = vsel %vm2311, %v2308, %v2310
      %v2322 = vsel %vm278, %v2290, 0
      %v2325 = vsel %vm282, %v2312, 0
      %v2328 = vsel %vm282, %v2313, 0
      %v2331 = vsel %vm282, %v2314, 0
      %v2334 = vsel %vm282, %v2315, 0
      %v2337 = vsel %vm282, %v2316, 0
      %v2340 = vsel %vm282, %v2317, 0
      %v2343 = vsel %vm282, %v2318, 0
      %v2346 = vsel %vm282, %v2319, 0
      %v2349 = vsel %vm282, %v2320, 0
      %2351 = vmatpush.bf16.msra.mxu0 0
      %2352 = vmatpush.bf16.msra.mxu0 0
      %2353 = vmatpush.bf16.msra.mxu0 0
      %2354 = vmatpush.bf16.msra.mxu0 0
      %2355 = vmatpush.bf16.msra.mxu0 0
      %2356 = vmatpush.bf16.msra.mxu0 0
      %2357 = vmatpush.bf16.msra.mxu0 0
      %2358 = vmatpush.bf16.msra.mxu0 %v2325
      %2359 = vmatmul.bf16.gmra.mxu0 %v2322
      %v2360 = vpop.f32.mrf.mxu0
      %v2361 = vadd.f32 0.0, %v2360
      %v2362 = vpop.f32.mrf.mxu0
      %2363 = vdwg.mxu0
      %2364 = vmatpush.bf16.msra.mxu0 0
      %2365 = vmatpush.bf16.msra.mxu0 0
      %2366 = vmatpush.bf16.msra.mxu0 0
      %2367 = vmatpush.bf16.msra.mxu0 0
      %2368 = vmatpush.bf16.msra.mxu0 0
      %2369 = vmatpush.bf16.msra.mxu0 0
      %2370 = vmatpush.bf16.msra.mxu0 0
      %2371 = vmatpush.bf16.msra.mxu0 %v2328
      %2372 = vmatmul.bf16.gmra.mxu0 %v2322
      %v2373 = vpop.f32.mrf.mxu0
      %v2374 = vadd.f32 0.0, %v2373
      %v2375 = vpop.f32.mrf.mxu0
      %2376 = vdwg.mxu0
      %2377 = vmatpush.bf16.msra.mxu0 0
      %2378 = vmatpush.bf16.msra.mxu0 0
      %2379 = vmatpush.bf16.msra.mxu0 0
      %2380 = vmatpush.bf16.msra.mxu0 0
      %2381 = vmatpush.bf16.msra.mxu0 0
      %2382 = vmatpush.bf16.msra.mxu0 0
      %2383 = vmatpush.bf16.msra.mxu0 0
      %2384 = vmatpush.bf16.msra.mxu0 %v2331
      %2385 = vmatmul.bf16.gmra.mxu0 %v2322
      %v2386 = vpop.f32.mrf.mxu0
      %v2387 = vadd.f32 0.0, %v2386
      %v2388 = vpop.f32.mrf.mxu0
      %2389 = vdwg.mxu0
      %2390 = vmatpush.bf16.msra.mxu0 0
      %2391 = vmatpush.bf16.msra.mxu0 0
      %2392 = vmatpush.bf16.msra.mxu0 0
      %2393 = vmatpush.bf16.msra.mxu0 0
      %2394 = vmatpush.bf16.msra.mxu0 0
      %2395 = vmatpush.bf16.msra.mxu0 0
      %2396 = vmatpush.bf16.msra.mxu0 0
      %2397 = vmatpush.bf16.msra.mxu0 %v2334
      %2398 = vmatmul.bf16.gmra.mxu0 %v2322
      %v2399 = vpop.f32.mrf.mxu0
      %v2400 = vadd.f32 0.0, %v2399
      %v2401 = vpop.f32.mrf.mxu0
      %2402 = vdwg.mxu0
      %2403 = vmatpush.bf16.msra.mxu0 0
      %2404 = vmatpush.bf16.msra.mxu0 0
      %2405 = vmatpush.bf16.msra.mxu0 0
      %2406 = vmatpush.bf16.msra.mxu0 0
      %2407 = vmatpush.bf16.msra.mxu0 0
      %2408 = vmatpush.bf16.msra.mxu0 0
      %2409 = vmatpush.bf16.msra.mxu0 0
      %2410 = vmatpush.bf16.msra.mxu0 %v2337
      %2411 = vmatmul.bf16.gmra.mxu0 %v2322
      %v2412 = vpop.f32.mrf.mxu0
      %v2413 = vadd.f32 0.0, %v2412
      %v2414 = vpop.f32.mrf.mxu0
      %2415 = vdwg.mxu0
      %2416 = vmatpush.bf16.msra.mxu0 0
      %2417 = vmatpush.bf16.msra.mxu0 0
      %2418 = vmatpush.bf16.msra.mxu0 0
      %2419 = vmatpush.bf16.msra.mxu0 0
      %2420 = vmatpush.bf16.msra.mxu0 0
      %2421 = vmatpush.bf16.msra.mxu0 0
      %2422 = vmatpush.bf16.msra.mxu0 0
      %2423 = vmatpush.bf16.msra.mxu0 %v2340
      %2424 = vmatmul.bf16.gmra.mxu0 %v2322
      %v2425 = vpop.f32.mrf.mxu0
      %v2426 = vadd.f32 0.0, %v2425
      %v2427 = vpop.f32.mrf.mxu0
      %2428 = vdwg.mxu0
      %2429 = vmatpush.bf16.msra.mxu0 0
      %2430 = vmatpush.bf16.msra.mxu0 0
      %2431 = vmatpush.bf16.msra.mxu0 0
      %2432 = vmatpush.bf16.msra.mxu0 0
      %2433 = vmatpush.bf16.msra.mxu0 0
      %2434 = vmatpush.bf16.msra.mxu0 0
      %2435 = vmatpush.bf16.msra.mxu0 0
      %2436 = vmatpush.bf16.msra.mxu0 %v2343
      %2437 = vmatmul.bf16.gmra.mxu0 %v2322
      %v2438 = vpop.f32.mrf.mxu0
      %v2439 = vadd.f32 0.0, %v2438
      %v2440 = vpop.f32.mrf.mxu0
      %2441 = vdwg.mxu0
      %2442 = vmatpush.bf16.msra.mxu0 0
      %2443 = vmatpush.bf16.msra.mxu0 0
      %2444 = vmatpush.bf16.msra.mxu0 0
      %2445 = vmatpush.bf16.msra.mxu0 0
      %2446 = vmatpush.bf16.msra.mxu0 0
      %2447 = vmatpush.bf16.msra.mxu0 0
      %2448 = vmatpush.bf16.msra.mxu0 0
      %2449 = vmatpush.bf16.msra.mxu0 %v2346
      %2450 = vmatmul.bf16.gmra.mxu0 %v2322
      %v2451 = vpop.f32.mrf.mxu0
      %v2452 = vadd.f32 0.0, %v2451
      %v2453 = vpop.f32.mrf.mxu0
      %2454 = vdwg.mxu0
      %2455 = vmatpush.bf16.msra.mxu0 0
      %2456 = vmatpush.bf16.msra.mxu0 0
      %2457 = vmatpush.bf16.msra.mxu0 0
      %2458 = vmatpush.bf16.msra.mxu0 0
      %2459 = vmatpush.bf16.msra.mxu0 0
      %2460 = vmatpush.bf16.msra.mxu0 0
      %2461 = vmatpush.bf16.msra.mxu0 0
      %2462 = vmatpush.bf16.msra.mxu0 %v2349
      %2463 = vmatmul.bf16.gmra.mxu0 %v2322
      %v2464 = vpop.f32.mrf.mxu0
      %v2465 = vadd.f32 0.0, %v2464
      %v2466 = vpop.f32.mrf.mxu0
      %2467 = vdwg.mxu0
      %v2468 = vadd.f32 %v2280, %v2361
      %v2469 = vadd.f32 %v2281, %v2374
      %v2470 = vadd.f32 %v2282, %v2387
      %v2471 = vadd.f32 %v2283, %v2400
      %v2472 = vadd.f32 %v2284, %v2413
      %v2473 = vadd.f32 %v2285, %v2426
      %v2474 = vadd.f32 %v2286, %v2439
      %v2475 = vadd.f32 %v2287, %v2452
      %v2476 = vadd.f32 %v2288, %v2465
      %s2477 = scalar_lea.vmem %s1, 48
      %v2478 = vld [vmem:[%s2477] sm:$0xf]
      %2479 = vrot.lane.b32.xlu0 %v238, 23
      %v2480 = vpop.permute.xlu0 %2479
      %2481 = vrot.lane.b32.xlu0 %v239, 23
      %v2482 = vpop.permute.xlu0 %2481
      %2483 = vrot.lane.b32.xlu0 %v240, 23
      %v2484 = vpop.permute.xlu0 %2483
      %2485 = vrot.lane.b32.xlu0 %v241, 23
      %v2486 = vpop.permute.xlu0 %2485
      %2487 = vrot.lane.b32.xlu0 %v242, 23
      %v2488 = vpop.permute.xlu0 %2487
      %2489 = vrot.lane.b32.xlu0 %v243, 23
      %v2490 = vpop.permute.xlu0 %2489
      %2491 = vrot.lane.b32.xlu0 %v244, 23
      %v2492 = vpop.permute.xlu0 %2491
      %2493 = vrot.lane.b32.xlu0 %v245, 23
      %v2494 = vpop.permute.xlu0 %2493
      %2495 = vrot.lane.b32.xlu0 %v246, 23
      %v2496 = vpop.permute.xlu0 %2495
      %2497 = vrot.lane.b32.xlu0 %v247, 23
      %v2498 = vpop.permute.xlu0 %2497
      %vm2499 = vcmask 187392
      %v2500 = vsel %vm2499, %v2480, %v2482
      %v2501 = vsel %vm2499, %v2482, %v2484
      %v2502 = vsel %vm2499, %v2484, %v2486
      %v2503 = vsel %vm2499, %v2486, %v2488
      %v2504 = vsel %vm2499, %v2488, %v2490
      %v2505 = vsel %vm2499, %v2490, %v2492
      %v2506 = vsel %vm2499, %v2492, %v2494
      %v2507 = vsel %vm2499, %v2494, %v2496
      %v2508 = vsel %vm2499, %v2496, %v2498
      %v2510 = vsel %vm278, %v2478, 0
      %v2513 = vsel %vm282, %v2500, 0
      %v2516 = vsel %vm282, %v2501, 0
      %v2519 = vsel %vm282, %v2502, 0
      %v2522 = vsel %vm282, %v2503, 0
      %v2525 = vsel %vm282, %v2504, 0
      %v2528 = vsel %vm282, %v2505, 0
      %v2531 = vsel %vm282, %v2506, 0
      %v2534 = vsel %vm282, %v2507, 0
      %v2537 = vsel %vm282, %v2508, 0
      %2539 = vmatpush.bf16.msra.mxu0 0
      %2540 = vmatpush.bf16.msra.mxu0 0
      %2541 = vmatpush.bf16.msra.mxu0 0
      %2542 = vmatpush.bf16.msra.mxu0 0
      %2543 = vmatpush.bf16.msra.mxu0 0
      %2544 = vmatpush.bf16.msra.mxu0 0
      %2545 = vmatpush.bf16.msra.mxu0 0
      %2546 = vmatpush.bf16.msra.mxu0 %v2513
      %2547 = vmatmul.bf16.gmra.mxu0 %v2510
      %v2548 = vpop.f32.mrf.mxu0
      %v2549 = vadd.f32 0.0, %v2548
      %v2550 = vpop.f32.mrf.mxu0
      %2551 = vdwg.mxu0
      %2552 = vmatpush.bf16.msra.mxu0 0
      %2553 = vmatpush.bf16.msra.mxu0 0
      %2554 = vmatpush.bf16.msra.mxu0 0
      %2555 = vmatpush.bf16.msra.mxu0 0
      %2556 = vmatpush.bf16.msra.mxu0 0
      %2557 = vmatpush.bf16.msra.mxu0 0
      %2558 = vmatpush.bf16.msra.mxu0 0
      %2559 = vmatpush.bf16.msra.mxu0 %v2516
      %2560 = vmatmul.bf16.gmra.mxu0 %v2510
      %v2561 = vpop.f32.mrf.mxu0
      %v2562 = vadd.f32 0.0, %v2561
      %v2563 = vpop.f32.mrf.mxu0
      %2564 = vdwg.mxu0
      %2565 = vmatpush.bf16.msra.mxu0 0
      %2566 = vmatpush.bf16.msra.mxu0 0
      %2567 = vmatpush.bf16.msra.mxu0 0
      %2568 = vmatpush.bf16.msra.mxu0 0
      %2569 = vmatpush.bf16.msra.mxu0 0
      %2570 = vmatpush.bf16.msra.mxu0 0
      %2571 = vmatpush.bf16.msra.mxu0 0
      %2572 = vmatpush.bf16.msra.mxu0 %v2519
      %2573 = vmatmul.bf16.gmra.mxu0 %v2510
      %v2574 = vpop.f32.mrf.mxu0
      %v2575 = vadd.f32 0.0, %v2574
      %v2576 = vpop.f32.mrf.mxu0
      %2577 = vdwg.mxu0
      %2578 = vmatpush.bf16.msra.mxu0 0
      %2579 = vmatpush.bf16.msra.mxu0 0
      %2580 = vmatpush.bf16.msra.mxu0 0
      %2581 = vmatpush.bf16.msra.mxu0 0
      %2582 = vmatpush.bf16.msra.mxu0 0
      %2583 = vmatpush.bf16.msra.mxu0 0
      %2584 = vmatpush.bf16.msra.mxu0 0
      %2585 = vmatpush.bf16.msra.mxu0 %v2522
      %2586 = vmatmul.bf16.gmra.mxu0 %v2510
      %v2587 = vpop.f32.mrf.mxu0
      %v2588 = vadd.f32 0.0, %v2587
      %v2589 = vpop.f32.mrf.mxu0
      %2590 = vdwg.mxu0
      %2591 = vmatpush.bf16.msra.mxu0 0
      %2592 = vmatpush.bf16.msra.mxu0 0
      %2593 = vmatpush.bf16.msra.mxu0 0
      %2594 = vmatpush.bf16.msra.mxu0 0
      %2595 = vmatpush.bf16.msra.mxu0 0
      %2596 = vmatpush.bf16.msra.mxu0 0
      %2597 = vmatpush.bf16.msra.mxu0 0
      %2598 = vmatpush.bf16.msra.mxu0 %v2525
      %2599 = vmatmul.bf16.gmra.mxu0 %v2510
      %v2600 = vpop.f32.mrf.mxu0
      %v2601 = vadd.f32 0.0, %v2600
      %v2602 = vpop.f32.mrf.mxu0
      %2603 = vdwg.mxu0
      %2604 = vmatpush.bf16.msra.mxu0 0
      %2605 = vmatpush.bf16.msra.mxu0 0
      %2606 = vmatpush.bf16.msra.mxu0 0
      %2607 = vmatpush.bf16.msra.mxu0 0
      %2608 = vmatpush.bf16.msra.mxu0 0
      %2609 = vmatpush.bf16.msra.mxu0 0
      %2610 = vmatpush.bf16.msra.mxu0 0
      %2611 = vmatpush.bf16.msra.mxu0 %v2528
      %2612 = vmatmul.bf16.gmra.mxu0 %v2510
      %v2613 = vpop.f32.mrf.mxu0
      %v2614 = vadd.f32 0.0, %v2613
      %v2615 = vpop.f32.mrf.mxu0
      %2616 = vdwg.mxu0
      %2617 = vmatpush.bf16.msra.mxu0 0
      %2618 = vmatpush.bf16.msra.mxu0 0
      %2619 = vmatpush.bf16.msra.mxu0 0
      %2620 = vmatpush.bf16.msra.mxu0 0
      %2621 = vmatpush.bf16.msra.mxu0 0
      %2622 = vmatpush.bf16.msra.mxu0 0
      %2623 = vmatpush.bf16.msra.mxu0 0
      %2624 = vmatpush.bf16.msra.mxu0 %v2531
      %2625 = vmatmul.bf16.gmra.mxu0 %v2510
      %v2626 = vpop.f32.mrf.mxu0
      %v2627 = vadd.f32 0.0, %v2626
      %v2628 = vpop.f32.mrf.mxu0
      %2629 = vdwg.mxu0
      %2630 = vmatpush.bf16.msra.mxu0 0
      %2631 = vmatpush.bf16.msra.mxu0 0
      %2632 = vmatpush.bf16.msra.mxu0 0
      %2633 = vmatpush.bf16.msra.mxu0 0
      %2634 = vmatpush.bf16.msra.mxu0 0
      %2635 = vmatpush.bf16.msra.mxu0 0
      %2636 = vmatpush.bf16.msra.mxu0 0
      %2637 = vmatpush.bf16.msra.mxu0 %v2534
      %2638 = vmatmul.bf16.gmra.mxu0 %v2510
      %v2639 = vpop.f32.mrf.mxu0
      %v2640 = vadd.f32 0.0, %v2639
      %v2641 = vpop.f32.mrf.mxu0
      %2642 = vdwg.mxu0
      %2643 = vmatpush.bf16.msra.mxu0 0
      %2644 = vmatpush.bf16.msra.mxu0 0
      %2645 = vmatpush.bf16.msra.mxu0 0
      %2646 = vmatpush.bf16.msra.mxu0 0
      %2647 = vmatpush.bf16.msra.mxu0 0
      %2648 = vmatpush.bf16.msra.mxu0 0
      %2649 = vmatpush.bf16.msra.mxu0 0
      %2650 = vmatpush.bf16.msra.mxu0 %v2537
      %2651 = vmatmul.bf16.gmra.mxu0 %v2510
      %v2652 = vpop.f32.mrf.mxu0
      %v2653 = vadd.f32 0.0, %v2652
      %v2654 = vpop.f32.mrf.mxu0
      %2655 = vdwg.mxu0
      %v2656 = vadd.f32 %v2468, %v2549
      %v2657 = vadd.f32 %v2469, %v2562
      %v2658 = vadd.f32 %v2470, %v2575
      %v2659 = vadd.f32 %v2471, %v2588
      %v2660 = vadd.f32 %v2472, %v2601
      %v2661 = vadd.f32 %v2473, %v2614
      %v2662 = vadd.f32 %v2474, %v2627
      %v2663 = vadd.f32 %v2475, %v2640
      %v2664 = vadd.f32 %v2476, %v2653
      %s2665 = scalar_lea.vmem %s1, 52
      %v2666 = vld [vmem:[%s2665] sm:$0xf]
      %2667 = vrot.lane.b32.xlu0 %v238, 22
      %v2668 = vpop.permute.xlu0 %2667
      %2669 = vrot.lane.b32.xlu0 %v239, 22
      %v2670 = vpop.permute.xlu0 %2669
      %2671 = vrot.lane.b32.xlu0 %v240, 22
      %v2672 = vpop.permute.xlu0 %2671
      %2673 = vrot.lane.b32.xlu0 %v241, 22
      %v2674 = vpop.permute.xlu0 %2673
      %2675 = vrot.lane.b32.xlu0 %v242, 22
      %v2676 = vpop.permute.xlu0 %2675
      %2677 = vrot.lane.b32.xlu0 %v243, 22
      %v2678 = vpop.permute.xlu0 %2677
      %2679 = vrot.lane.b32.xlu0 %v244, 22
      %v2680 = vpop.permute.xlu0 %2679
      %2681 = vrot.lane.b32.xlu0 %v245, 22
      %v2682 = vpop.permute.xlu0 %2681
      %2683 = vrot.lane.b32.xlu0 %v246, 22
      %v2684 = vpop.permute.xlu0 %2683
      %2685 = vrot.lane.b32.xlu0 %v247, 22
      %v2686 = vpop.permute.xlu0 %2685
      %vm2687 = vcmask 179200
      %v2688 = vsel %vm2687, %v2668, %v2670
      %v2689 = vsel %vm2687, %v2670, %v2672
      %v2690 = vsel %vm2687, %v2672, %v2674
      %v2691 = vsel %vm2687, %v2674, %v2676
      %v2692 = vsel %vm2687, %v2676, %v2678
      %v2693 = vsel %vm2687, %v2678, %v2680
      %v2694 = vsel %vm2687, %v2680, %v2682
      %v2695 = vsel %vm2687, %v2682, %v2684
      %v2696 = vsel %vm2687, %v2684, %v2686
      %v2698 = vsel %vm278, %v2666, 0
      %v2701 = vsel %vm282, %v2688, 0
      %v2704 = vsel %vm282, %v2689, 0
      %v2707 = vsel %vm282, %v2690, 0
      %v2710 = vsel %vm282, %v2691, 0
      %v2713 = vsel %vm282, %v2692, 0
      %v2716 = vsel %vm282, %v2693, 0
      %v2719 = vsel %vm282, %v2694, 0
      %v2722 = vsel %vm282, %v2695, 0
      %v2725 = vsel %vm282, %v2696, 0
      %2727 = vmatpush.bf16.msra.mxu0 0
      %2728 = vmatpush.bf16.msra.mxu0 0
      %2729 = vmatpush.bf16.msra.mxu0 0
      %2730 = vmatpush.bf16.msra.mxu0 0
      %2731 = vmatpush.bf16.msra.mxu0 0
      %2732 = vmatpush.bf16.msra.mxu0 0
      %2733 = vmatpush.bf16.msra.mxu0 0
      %2734 = vmatpush.bf16.msra.mxu0 %v2701
      %2735 = vmatmul.bf16.gmra.mxu0 %v2698
      %v2736 = vpop.f32.mrf.mxu0
      %v2737 = vadd.f32 0.0, %v2736
      %v2738 = vpop.f32.mrf.mxu0
      %2739 = vdwg.mxu0
      %2740 = vmatpush.bf16.msra.mxu0 0
      %2741 = vmatpush.bf16.msra.mxu0 0
      %2742 = vmatpush.bf16.msra.mxu0 0
      %2743 = vmatpush.bf16.msra.mxu0 0
      %2744 = vmatpush.bf16.msra.mxu0 0
      %2745 = vmatpush.bf16.msra.mxu0 0
      %2746 = vmatpush.bf16.msra.mxu0 0
      %2747 = vmatpush.bf16.msra.mxu0 %v2704
      %2748 = vmatmul.bf16.gmra.mxu0 %v2698
      %v2749 = vpop.f32.mrf.mxu0
      %v2750 = vadd.f32 0.0, %v2749
      %v2751 = vpop.f32.mrf.mxu0
      %2752 = vdwg.mxu0
      %2753 = vmatpush.bf16.msra.mxu0 0
      %2754 = vmatpush.bf16.msra.mxu0 0
      %2755 = vmatpush.bf16.msra.mxu0 0
      %2756 = vmatpush.bf16.msra.mxu0 0
      %2757 = vmatpush.bf16.msra.mxu0 0
      %2758 = vmatpush.bf16.msra.mxu0 0
      %2759 = vmatpush.bf16.msra.mxu0 0
      %2760 = vmatpush.bf16.msra.mxu0 %v2707
      %2761 = vmatmul.bf16.gmra.mxu0 %v2698
      %v2762 = vpop.f32.mrf.mxu0
      %v2763 = vadd.f32 0.0, %v2762
      %v2764 = vpop.f32.mrf.mxu0
      %2765 = vdwg.mxu0
      %2766 = vmatpush.bf16.msra.mxu0 0
      %2767 = vmatpush.bf16.msra.mxu0 0
      %2768 = vmatpush.bf16.msra.mxu0 0
      %2769 = vmatpush.bf16.msra.mxu0 0
      %2770 = vmatpush.bf16.msra.mxu0 0
      %2771 = vmatpush.bf16.msra.mxu0 0
      %2772 = vmatpush.bf16.msra.mxu0 0
      %2773 = vmatpush.bf16.msra.mxu0 %v2710
      %2774 = vmatmul.bf16.gmra.mxu0 %v2698
      %v2775 = vpop.f32.mrf.mxu0
      %v2776 = vadd.f32 0.0, %v2775
      %v2777 = vpop.f32.mrf.mxu0
      %2778 = vdwg.mxu0
      %2779 = vmatpush.bf16.msra.mxu0 0
      %2780 = vmatpush.bf16.msra.mxu0 0
      %2781 = vmatpush.bf16.msra.mxu0 0
      %2782 = vmatpush.bf16.msra.mxu0 0
      %2783 = vmatpush.bf16.msra.mxu0 0
      %2784 = vmatpush.bf16.msra.mxu0 0
      %2785 = vmatpush.bf16.msra.mxu0 0
      %2786 = vmatpush.bf16.msra.mxu0 %v2713
      %2787 = vmatmul.bf16.gmra.mxu0 %v2698
      %v2788 = vpop.f32.mrf.mxu0
      %v2789 = vadd.f32 0.0, %v2788
      %v2790 = vpop.f32.mrf.mxu0
      %2791 = vdwg.mxu0
      %2792 = vmatpush.bf16.msra.mxu0 0
      %2793 = vmatpush.bf16.msra.mxu0 0
      %2794 = vmatpush.bf16.msra.mxu0 0
      %2795 = vmatpush.bf16.msra.mxu0 0
      %2796 = vmatpush.bf16.msra.mxu0 0
      %2797 = vmatpush.bf16.msra.mxu0 0
      %2798 = vmatpush.bf16.msra.mxu0 0
      %2799 = vmatpush.bf16.msra.mxu0 %v2716
      %2800 = vmatmul.bf16.gmra.mxu0 %v2698
      %v2801 = vpop.f32.mrf.mxu0
      %v2802 = vadd.f32 0.0, %v2801
      %v2803 = vpop.f32.mrf.mxu0
      %2804 = vdwg.mxu0
      %2805 = vmatpush.bf16.msra.mxu0 0
      %2806 = vmatpush.bf16.msra.mxu0 0
      %2807 = vmatpush.bf16.msra.mxu0 0
      %2808 = vmatpush.bf16.msra.mxu0 0
      %2809 = vmatpush.bf16.msra.mxu0 0
      %2810 = vmatpush.bf16.msra.mxu0 0
      %2811 = vmatpush.bf16.msra.mxu0 0
      %2812 = vmatpush.bf16.msra.mxu0 %v2719
      %2813 = vmatmul.bf16.gmra.mxu0 %v2698
      %v2814 = vpop.f32.mrf.mxu0
      %v2815 = vadd.f32 0.0, %v2814
      %v2816 = vpop.f32.mrf.mxu0
      %2817 = vdwg.mxu0
      %2818 = vmatpush.bf16.msra.mxu0 0
      %2819 = vmatpush.bf16.msra.mxu0 0
      %2820 = vmatpush.bf16.msra.mxu0 0
      %2821 = vmatpush.bf16.msra.mxu0 0
      %2822 = vmatpush.bf16.msra.mxu0 0
      %2823 = vmatpush.bf16.msra.mxu0 0
      %2824 = vmatpush.bf16.msra.mxu0 0
      %2825 = vmatpush.bf16.msra.mxu0 %v2722
      %2826 = vmatmul.bf16.gmra.mxu0 %v2698
      %v2827 = vpop.f32.mrf.mxu0
      %v2828 = vadd.f32 0.0, %v2827
      %v2829 = vpop.f32.mrf.mxu0
      %2830 = vdwg.mxu0
      %2831 = vmatpush.bf16.msra.mxu0 0
      %2832 = vmatpush.bf16.msra.mxu0 0
      %2833 = vmatpush.bf16.msra.mxu0 0
      %2834 = vmatpush.bf16.msra.mxu0 0
      %2835 = vmatpush.bf16.msra.mxu0 0
      %2836 = vmatpush.bf16.msra.mxu0 0
      %2837 = vmatpush.bf16.msra.mxu0 0
      %2838 = vmatpush.bf16.msra.mxu0 %v2725
      %2839 = vmatmul.bf16.gmra.mxu0 %v2698
      %v2840 = vpop.f32.mrf.mxu0
      %v2841 = vadd.f32 0.0, %v2840
      %v2842 = vpop.f32.mrf.mxu0
      %2843 = vdwg.mxu0
      %v2844 = vadd.f32 %v2656, %v2737
      %v2845 = vadd.f32 %v2657, %v2750
      %v2846 = vadd.f32 %v2658, %v2763
      %v2847 = vadd.f32 %v2659, %v2776
      %v2848 = vadd.f32 %v2660, %v2789
      %v2849 = vadd.f32 %v2661, %v2802
      %v2850 = vadd.f32 %v2662, %v2815
      %v2851 = vadd.f32 %v2663, %v2828
      %v2852 = vadd.f32 %v2664, %v2841
      %s2853 = scalar_lea.vmem %s1, 56
      %v2854 = vld [vmem:[%s2853] sm:$0xf]
      %2855 = vrot.lane.b32.xlu0 %v238, 21
      %v2856 = vpop.permute.xlu0 %2855
      %2857 = vrot.lane.b32.xlu0 %v239, 21
      %v2858 = vpop.permute.xlu0 %2857
      %2859 = vrot.lane.b32.xlu0 %v240, 21
      %v2860 = vpop.permute.xlu0 %2859
      %2861 = vrot.lane.b32.xlu0 %v241, 21
      %v2862 = vpop.permute.xlu0 %2861
      %2863 = vrot.lane.b32.xlu0 %v242, 21
      %v2864 = vpop.permute.xlu0 %2863
      %2865 = vrot.lane.b32.xlu0 %v243, 21
      %v2866 = vpop.permute.xlu0 %2865
      %2867 = vrot.lane.b32.xlu0 %v244, 21
      %v2868 = vpop.permute.xlu0 %2867
      %2869 = vrot.lane.b32.xlu0 %v245, 21
      %v2870 = vpop.permute.xlu0 %2869
      %2871 = vrot.lane.b32.xlu0 %v246, 21
      %v2872 = vpop.permute.xlu0 %2871
      %2873 = vrot.lane.b32.xlu0 %v247, 21
      %v2874 = vpop.permute.xlu0 %2873
      %vm2875 = vcmask 171008
      %v2876 = vsel %vm2875, %v2856, %v2858
      %v2877 = vsel %vm2875, %v2858, %v2860
      %v2878 = vsel %vm2875, %v2860, %v2862
      %v2879 = vsel %vm2875, %v2862, %v2864
      %v2880 = vsel %vm2875, %v2864, %v2866
      %v2881 = vsel %vm2875, %v2866, %v2868
      %v2882 = vsel %vm2875, %v2868, %v2870
      %v2883 = vsel %vm2875, %v2870, %v2872
      %v2884 = vsel %vm2875, %v2872, %v2874
      %v2886 = vsel %vm278, %v2854, 0
      %v2889 = vsel %vm282, %v2876, 0
      %v2892 = vsel %vm282, %v2877, 0
      %v2895 = vsel %vm282, %v2878, 0
      %v2898 = vsel %vm282, %v2879, 0
      %v2901 = vsel %vm282, %v2880, 0
      %v2904 = vsel %vm282, %v2881, 0
      %v2907 = vsel %vm282, %v2882, 0
      %v2910 = vsel %vm282, %v2883, 0
      %v2913 = vsel %vm282, %v2884, 0
      %2915 = vmatpush.bf16.msra.mxu0 0
      %2916 = vmatpush.bf16.msra.mxu0 0
      %2917 = vmatpush.bf16.msra.mxu0 0
      %2918 = vmatpush.bf16.msra.mxu0 0
      %2919 = vmatpush.bf16.msra.mxu0 0
      %2920 = vmatpush.bf16.msra.mxu0 0
      %2921 = vmatpush.bf16.msra.mxu0 0
      %2922 = vmatpush.bf16.msra.mxu0 %v2889
      %2923 = vmatmul.bf16.gmra.mxu0 %v2886
      %v2924 = vpop.f32.mrf.mxu0
      %v2925 = vadd.f32 0.0, %v2924
      %v2926 = vpop.f32.mrf.mxu0
      %2927 = vdwg.mxu0
      %2928 = vmatpush.bf16.msra.mxu0 0
      %2929 = vmatpush.bf16.msra.mxu0 0
      %2930 = vmatpush.bf16.msra.mxu0 0
      %2931 = vmatpush.bf16.msra.mxu0 0
      %2932 = vmatpush.bf16.msra.mxu0 0
      %2933 = vmatpush.bf16.msra.mxu0 0
      %2934 = vmatpush.bf16.msra.mxu0 0
      %2935 = vmatpush.bf16.msra.mxu0 %v2892
      %2936 = vmatmul.bf16.gmra.mxu0 %v2886
      %v2937 = vpop.f32.mrf.mxu0
      %v2938 = vadd.f32 0.0, %v2937
      %v2939 = vpop.f32.mrf.mxu0
      %2940 = vdwg.mxu0
      %2941 = vmatpush.bf16.msra.mxu0 0
      %2942 = vmatpush.bf16.msra.mxu0 0
      %2943 = vmatpush.bf16.msra.mxu0 0
      %2944 = vmatpush.bf16.msra.mxu0 0
      %2945 = vmatpush.bf16.msra.mxu0 0
      %2946 = vmatpush.bf16.msra.mxu0 0
      %2947 = vmatpush.bf16.msra.mxu0 0
      %2948 = vmatpush.bf16.msra.mxu0 %v2895
      %2949 = vmatmul.bf16.gmra.mxu0 %v2886
      %v2950 = vpop.f32.mrf.mxu0
      %v2951 = vadd.f32 0.0, %v2950
      %v2952 = vpop.f32.mrf.mxu0
      %2953 = vdwg.mxu0
      %2954 = vmatpush.bf16.msra.mxu0 0
      %2955 = vmatpush.bf16.msra.mxu0 0
      %2956 = vmatpush.bf16.msra.mxu0 0
      %2957 = vmatpush.bf16.msra.mxu0 0
      %2958 = vmatpush.bf16.msra.mxu0 0
      %2959 = vmatpush.bf16.msra.mxu0 0
      %2960 = vmatpush.bf16.msra.mxu0 0
      %2961 = vmatpush.bf16.msra.mxu0 %v2898
      %2962 = vmatmul.bf16.gmra.mxu0 %v2886
      %v2963 = vpop.f32.mrf.mxu0
      %v2964 = vadd.f32 0.0, %v2963
      %v2965 = vpop.f32.mrf.mxu0
      %2966 = vdwg.mxu0
      %2967 = vmatpush.bf16.msra.mxu0 0
      %2968 = vmatpush.bf16.msra.mxu0 0
      %2969 = vmatpush.bf16.msra.mxu0 0
      %2970 = vmatpush.bf16.msra.mxu0 0
      %2971 = vmatpush.bf16.msra.mxu0 0
      %2972 = vmatpush.bf16.msra.mxu0 0
      %2973 = vmatpush.bf16.msra.mxu0 0
      %2974 = vmatpush.bf16.msra.mxu0 %v2901
      %2975 = vmatmul.bf16.gmra.mxu0 %v2886
      %v2976 = vpop.f32.mrf.mxu0
      %v2977 = vadd.f32 0.0, %v2976
      %v2978 = vpop.f32.mrf.mxu0
      %2979 = vdwg.mxu0
      %2980 = vmatpush.bf16.msra.mxu0 0
      %2981 = vmatpush.bf16.msra.mxu0 0
      %2982 = vmatpush.bf16.msra.mxu0 0
      %2983 = vmatpush.bf16.msra.mxu0 0
      %2984 = vmatpush.bf16.msra.mxu0 0
      %2985 = vmatpush.bf16.msra.mxu0 0
      %2986 = vmatpush.bf16.msra.mxu0 0
      %2987 = vmatpush.bf16.msra.mxu0 %v2904
      %2988 = vmatmul.bf16.gmra.mxu0 %v2886
      %v2989 = vpop.f32.mrf.mxu0
      %v2990 = vadd.f32 0.0, %v2989
      %v2991 = vpop.f32.mrf.mxu0
      %2992 = vdwg.mxu0
      %2993 = vmatpush.bf16.msra.mxu0 0
      %2994 = vmatpush.bf16.msra.mxu0 0
      %2995 = vmatpush.bf16.msra.mxu0 0
      %2996 = vmatpush.bf16.msra.mxu0 0
      %2997 = vmatpush.bf16.msra.mxu0 0
      %2998 = vmatpush.bf16.msra.mxu0 0
      %2999 = vmatpush.bf16.msra.mxu0 0
      %3000 = vmatpush.bf16.msra.mxu0 %v2907
      %3001 = vmatmul.bf16.gmra.mxu0 %v2886
      %v3002 = vpop.f32.mrf.mxu0
      %v3003 = vadd.f32 0.0, %v3002
      %v3004 = vpop.f32.mrf.mxu0
      %3005 = vdwg.mxu0
      %3006 = vmatpush.bf16.msra.mxu0 0
      %3007 = vmatpush.bf16.msra.mxu0 0
      %3008 = vmatpush.bf16.msra.mxu0 0
      %3009 = vmatpush.bf16.msra.mxu0 0
      %3010 = vmatpush.bf16.msra.mxu0 0
      %3011 = vmatpush.bf16.msra.mxu0 0
      %3012 = vmatpush.bf16.msra.mxu0 0
      %3013 = vmatpush.bf16.msra.mxu0 %v2910
      %3014 = vmatmul.bf16.gmra.mxu0 %v2886
      %v3015 = vpop.f32.mrf.mxu0
      %v3016 = vadd.f32 0.0, %v3015
      %v3017 = vpop.f32.mrf.mxu0
      %3018 = vdwg.mxu0
      %3019 = vmatpush.bf16.msra.mxu0 0
      %3020 = vmatpush.bf16.msra.mxu0 0
      %3021 = vmatpush.bf16.msra.mxu0 0
      %3022 = vmatpush.bf16.msra.mxu0 0
      %3023 = vmatpush.bf16.msra.mxu0 0
      %3024 = vmatpush.bf16.msra.mxu0 0
      %3025 = vmatpush.bf16.msra.mxu0 0
      %3026 = vmatpush.bf16.msra.mxu0 %v2913
      %3027 = vmatmul.bf16.gmra.mxu0 %v2886
      %v3028 = vpop.f32.mrf.mxu0
      %v3029 = vadd.f32 0.0, %v3028
      %v3030 = vpop.f32.mrf.mxu0
      %3031 = vdwg.mxu0
      %v3032 = vadd.f32 %v2844, %v2925
      %v3033 = vadd.f32 %v2845, %v2938
      %v3034 = vadd.f32 %v2846, %v2951
      %v3035 = vadd.f32 %v2847, %v2964
      %v3036 = vadd.f32 %v2848, %v2977
      %v3037 = vadd.f32 %v2849, %v2990
      %v3038 = vadd.f32 %v2850, %v3003
      %v3039 = vadd.f32 %v2851, %v3016
      %v3040 = vadd.f32 %v2852, %v3029
      %s3041 = scalar_lea.vmem %s1, 60
      %v3042 = vld [vmem:[%s3041] sm:$0xf]
      %3043 = vrot.lane.b32.xlu0 %v238, 20
      %v3044 = vpop.permute.xlu0 %3043
      %3045 = vrot.lane.b32.xlu0 %v239, 20
      %v3046 = vpop.permute.xlu0 %3045
      %3047 = vrot.lane.b32.xlu0 %v240, 20
      %v3048 = vpop.permute.xlu0 %3047
      %3049 = vrot.lane.b32.xlu0 %v241, 20
      %v3050 = vpop.permute.xlu0 %3049
      %3051 = vrot.lane.b32.xlu0 %v242, 20
      %v3052 = vpop.permute.xlu0 %3051
      %3053 = vrot.lane.b32.xlu0 %v243, 20
      %v3054 = vpop.permute.xlu0 %3053
      %3055 = vrot.lane.b32.xlu0 %v244, 20
      %v3056 = vpop.permute.xlu0 %3055
      %3057 = vrot.lane.b32.xlu0 %v245, 20
      %v3058 = vpop.permute.xlu0 %3057
      %3059 = vrot.lane.b32.xlu0 %v246, 20
      %v3060 = vpop.permute.xlu0 %3059
      %3061 = vrot.lane.b32.xlu0 %v247, 20
      %v3062 = vpop.permute.xlu0 %3061
      %vm3063 = vcmask 162816
      %v3064 = vsel %vm3063, %v3044, %v3046
      %v3065 = vsel %vm3063, %v3046, %v3048
      %v3066 = vsel %vm3063, %v3048, %v3050
      %v3067 = vsel %vm3063, %v3050, %v3052
      %v3068 = vsel %vm3063, %v3052, %v3054
      %v3069 = vsel %vm3063, %v3054, %v3056
      %v3070 = vsel %vm3063, %v3056, %v3058
      %v3071 = vsel %vm3063, %v3058, %v3060
      %v3072 = vsel %vm3063, %v3060, %v3062
      %v3074 = vsel %vm278, %v3042, 0
      %v3077 = vsel %vm282, %v3064, 0
      %v3080 = vsel %vm282, %v3065, 0
      %v3083 = vsel %vm282, %v3066, 0
      %v3086 = vsel %vm282, %v3067, 0
      %v3089 = vsel %vm282, %v3068, 0
      %v3092 = vsel %vm282, %v3069, 0
      %v3095 = vsel %vm282, %v3070, 0
      %v3098 = vsel %vm282, %v3071, 0
      %v3101 = vsel %vm282, %v3072, 0
      %3103 = vmatpush.bf16.msra.mxu0 0
      %3104 = vmatpush.bf16.msra.mxu0 0
      %3105 = vmatpush.bf16.msra.mxu0 0
      %3106 = vmatpush.bf16.msra.mxu0 0
      %3107 = vmatpush.bf16.msra.mxu0 0
      %3108 = vmatpush.bf16.msra.mxu0 0
      %3109 = vmatpush.bf16.msra.mxu0 0
      %3110 = vmatpush.bf16.msra.mxu0 %v3077
      %3111 = vmatmul.bf16.gmra.mxu0 %v3074
      %v3112 = vpop.f32.mrf.mxu0
      %v3113 = vadd.f32 0.0, %v3112
      %v3114 = vpop.f32.mrf.mxu0
      %3115 = vdwg.mxu0
      %3116 = vmatpush.bf16.msra.mxu0 0
      %3117 = vmatpush.bf16.msra.mxu0 0
      %3118 = vmatpush.bf16.msra.mxu0 0
      %3119 = vmatpush.bf16.msra.mxu0 0
      %3120 = vmatpush.bf16.msra.mxu0 0
      %3121 = vmatpush.bf16.msra.mxu0 0
      %3122 = vmatpush.bf16.msra.mxu0 0
      %3123 = vmatpush.bf16.msra.mxu0 %v3080
      %3124 = vmatmul.bf16.gmra.mxu0 %v3074
      %v3125 = vpop.f32.mrf.mxu0
      %v3126 = vadd.f32 0.0, %v3125
      %v3127 = vpop.f32.mrf.mxu0
      %3128 = vdwg.mxu0
      %3129 = vmatpush.bf16.msra.mxu0 0
      %3130 = vmatpush.bf16.msra.mxu0 0
      %3131 = vmatpush.bf16.msra.mxu0 0
      %3132 = vmatpush.bf16.msra.mxu0 0
      %3133 = vmatpush.bf16.msra.mxu0 0
      %3134 = vmatpush.bf16.msra.mxu0 0
      %3135 = vmatpush.bf16.msra.mxu0 0
      %3136 = vmatpush.bf16.msra.mxu0 %v3083
      %3137 = vmatmul.bf16.gmra.mxu0 %v3074
      %v3138 = vpop.f32.mrf.mxu0
      %v3139 = vadd.f32 0.0, %v3138
      %v3140 = vpop.f32.mrf.mxu0
      %3141 = vdwg.mxu0
      %3142 = vmatpush.bf16.msra.mxu0 0
      %3143 = vmatpush.bf16.msra.mxu0 0
      %3144 = vmatpush.bf16.msra.mxu0 0
      %3145 = vmatpush.bf16.msra.mxu0 0
      %3146 = vmatpush.bf16.msra.mxu0 0
      %3147 = vmatpush.bf16.msra.mxu0 0
      %3148 = vmatpush.bf16.msra.mxu0 0
      %3149 = vmatpush.bf16.msra.mxu0 %v3086
      %3150 = vmatmul.bf16.gmra.mxu0 %v3074
      %v3151 = vpop.f32.mrf.mxu0
      %v3152 = vadd.f32 0.0, %v3151
      %v3153 = vpop.f32.mrf.mxu0
      %3154 = vdwg.mxu0
      %3155 = vmatpush.bf16.msra.mxu0 0
      %3156 = vmatpush.bf16.msra.mxu0 0
      %3157 = vmatpush.bf16.msra.mxu0 0
      %3158 = vmatpush.bf16.msra.mxu0 0
      %3159 = vmatpush.bf16.msra.mxu0 0
      %3160 = vmatpush.bf16.msra.mxu0 0
      %3161 = vmatpush.bf16.msra.mxu0 0
      %3162 = vmatpush.bf16.msra.mxu0 %v3089
      %3163 = vmatmul.bf16.gmra.mxu0 %v3074
      %v3164 = vpop.f32.mrf.mxu0
      %v3165 = vadd.f32 0.0, %v3164
      %v3166 = vpop.f32.mrf.mxu0
      %3167 = vdwg.mxu0
      %3168 = vmatpush.bf16.msra.mxu0 0
      %3169 = vmatpush.bf16.msra.mxu0 0
      %3170 = vmatpush.bf16.msra.mxu0 0
      %3171 = vmatpush.bf16.msra.mxu0 0
      %3172 = vmatpush.bf16.msra.mxu0 0
      %3173 = vmatpush.bf16.msra.mxu0 0
      %3174 = vmatpush.bf16.msra.mxu0 0
      %3175 = vmatpush.bf16.msra.mxu0 %v3092
      %3176 = vmatmul.bf16.gmra.mxu0 %v3074
      %v3177 = vpop.f32.mrf.mxu0
      %v3178 = vadd.f32 0.0, %v3177
      %v3179 = vpop.f32.mrf.mxu0
      %3180 = vdwg.mxu0
      %3181 = vmatpush.bf16.msra.mxu0 0
      %3182 = vmatpush.bf16.msra.mxu0 0
      %3183 = vmatpush.bf16.msra.mxu0 0
      %3184 = vmatpush.bf16.msra.mxu0 0
      %3185 = vmatpush.bf16.msra.mxu0 0
      %3186 = vmatpush.bf16.msra.mxu0 0
      %3187 = vmatpush.bf16.msra.mxu0 0
      %3188 = vmatpush.bf16.msra.mxu0 %v3095
      %3189 = vmatmul.bf16.gmra.mxu0 %v3074
      %v3190 = vpop.f32.mrf.mxu0
      %v3191 = vadd.f32 0.0, %v3190
      %v3192 = vpop.f32.mrf.mxu0
      %3193 = vdwg.mxu0
      %3194 = vmatpush.bf16.msra.mxu0 0
      %3195 = vmatpush.bf16.msra.mxu0 0
      %3196 = vmatpush.bf16.msra.mxu0 0
      %3197 = vmatpush.bf16.msra.mxu0 0
      %3198 = vmatpush.bf16.msra.mxu0 0
      %3199 = vmatpush.bf16.msra.mxu0 0
      %3200 = vmatpush.bf16.msra.mxu0 0
      %3201 = vmatpush.bf16.msra.mxu0 %v3098
      %3202 = vmatmul.bf16.gmra.mxu0 %v3074
      %v3203 = vpop.f32.mrf.mxu0
      %v3204 = vadd.f32 0.0, %v3203
      %v3205 = vpop.f32.mrf.mxu0
      %3206 = vdwg.mxu0
      %3207 = vmatpush.bf16.msra.mxu0 0
      %3208 = vmatpush.bf16.msra.mxu0 0
      %3209 = vmatpush.bf16.msra.mxu0 0
      %3210 = vmatpush.bf16.msra.mxu0 0
      %3211 = vmatpush.bf16.msra.mxu0 0
      %3212 = vmatpush.bf16.msra.mxu0 0
      %3213 = vmatpush.bf16.msra.mxu0 0
      %3214 = vmatpush.bf16.msra.mxu0 %v3101
      %3215 = vmatmul.bf16.gmra.mxu0 %v3074
      %v3216 = vpop.f32.mrf.mxu0
      %v3217 = vadd.f32 0.0, %v3216
      %v3218 = vpop.f32.mrf.mxu0
      %3219 = vdwg.mxu0
      %v3220 = vadd.f32 %v3032, %v3113
      %v3221 = vadd.f32 %v3033, %v3126
      %v3222 = vadd.f32 %v3034, %v3139
      %v3223 = vadd.f32 %v3035, %v3152
      %v3224 = vadd.f32 %v3036, %v3165
      %v3225 = vadd.f32 %v3037, %v3178
      %v3226 = vadd.f32 %v3038, %v3191
      %v3227 = vadd.f32 %v3039, %v3204
      %v3228 = vadd.f32 %v3040, %v3217
      %v3229 = vld [vmem:[%s2] sm:$0xff]
      %v3230 = vld [vmem:[%s2 + $0x8] sm:$0x1]
      %v3233 = vperm.slane %v3229, 0
      %v3234 = vperm.slane %v3229, 1
      %v3235 = vperm.slane %v3229, 2
      %v3236 = vperm.slane %v3229, 3
      %v3237 = vperm.slane %v3229, 4
      %v3238 = vperm.slane %v3229, 5
      %v3239 = vperm.slane %v3229, 6
      %v3240 = vperm.slane %v3229, 7
      %v3241 = vperm.slane %v3230, 0
      %v3251 = vmul.f32 %v3220, %v3233
      %v3252 = vmul.f32 %v3221, %v3234
      %v3253 = vmul.f32 %v3222, %v3235
      %v3254 = vmul.f32 %v3223, %v3236
      %v3255 = vmul.f32 %v3224, %v3237
      %v3256 = vmul.f32 %v3225, %v3238
      %v3257 = vmul.f32 %v3226, %v3239
      %v3258 = vmul.f32 %v3227, %v3240
      %v3259 = vmul.f32 %v3228, %v3241
      %3260 = vst [vmem:[%s204] sm:$0xff] %v3251
      %3261 = vst [vmem:[%s204 + $0x8] sm:$0xff] %v3252
      %3262 = vst [vmem:[%s204 + $0x10] sm:$0xff] %v3253
      %3263 = vst [vmem:[%s204 + $0x18] sm:$0xff] %v3254
      %3264 = vst [vmem:[%s204 + $0x20] sm:$0xff] %v3255
      %3265 = vst [vmem:[%s204 + $0x28] sm:$0xff] %v3256
      %3266 = vst [vmem:[%s204 + $0x30] sm:$0xff] %v3257
      %3267 = vst [vmem:[%s204 + $0x38] sm:$0xff] %v3258
      %3268 = vst [vmem:[%s204 + $0x40] sm:$0xff] %v3259
      %v3269 = vadd.f32 %v3251, %v3252
      %v3270 = vadd.f32 %v3269, %v3253
      %v3271 = vadd.f32 %v3270, %v3254
      %v3272 = vadd.f32 %v3271, %v3255
      %v3273 = vadd.f32 %v3272, %v3256
      %v3274 = vadd.f32 %v3273, %v3257
      %v3275 = vadd.f32 %v3274, %v3258
      %v3276 = vadd.f32 %v3275, %v3259
      %3277 = vadd.xlane.f32.xlu0 %v3276
      %v3278 = vpop.xlane.xlu0 %3277
      %vm3279 = vcmask 7168
      %3280 = vst.msk [vmem:[%s208] sm:$0xff] %vm3279, %v3278
      %v3281 = vmul.f32 %v3251, %v3251
      %v3282 = vmul.f32 %v3252, %v3252
      %v3283 = vmul.f32 %v3253, %v3253
      %v3284 = vmul.f32 %v3254, %v3254
      %v3285 = vmul.f32 %v3255, %v3255
      %v3286 = vmul.f32 %v3256, %v3256
      %v3287 = vmul.f32 %v3257, %v3257
      %v3288 = vmul.f32 %v3258, %v3258
      %v3289 = vmul.f32 %v3259, %v3259
      %v3290 = vadd.f32 %v3281, %v3282
      %v3291 = vadd.f32 %v3290, %v3283
      %v3292 = vadd.f32 %v3291, %v3284
      %v3293 = vadd.f32 %v3292, %v3285
      %v3294 = vadd.f32 %v3293, %v3286
      %v3295 = vadd.f32 %v3294, %v3287
      %v3296 = vadd.f32 %v3295, %v3288
      %v3297 = vadd.f32 %v3296, %v3289
      %3298 = vadd.xlane.f32.xlu0 %v3297
      %v3299 = vpop.xlane.xlu0 %3298
      %vm3300 = vcmask 15368
      %3301 = vst.msk [vmem:[%s208] sm:$0xff] %vm3300, %v3299
      %p3302 = scmp.lt.s32.totalorder %s16, 1
      %s3303 = scalar_select %p3302, %s16, 1
      %s3304 = smul.addr %s3303, 9
      %s3305 = smul.addr %s3304, 8
      %s3306 = scalar_lea.vmem %s3, %s3305
      %p3307 = scmp.lt.s32.totalorder %s16, 1
      %s3308 = scalar_select %p3307, %s16, 1
      %s3309 = smul.addr %s3308, 8
      %s3310 = scalar_lea.vmem %s4, %s3309
      // Predicated region
      $region33: #{conv2d_transpose_bn_relu.2} parent=31 // pred_check
        %p3311 = pneg %p102
      $region34: #{conv2d_transpose_bn_relu.2} parent=31 // pred_check_branch
        %3313 = sbr.rel (%p3311) target = $region36
      $region35: #{conv2d_transpose_bn_relu.2} parent=31 // pred_region
        _
      $region36: #{conv2d_transpose_bn_relu.2} parent=31 // pred_fallthru
        _
      // Predicated region
      $region37: #{conv2d_transpose_bn_relu.2} parent=31 // pred_check
        %p3314 = pneg %p128
      $region38: #{conv2d_transpose_bn_relu.2} parent=31 // pred_check_branch
        %3316 = sbr.rel (%p3314) target = $region40
      $region39: #{conv2d_transpose_bn_relu.2} parent=31 // pred_region
        _
      $region40: #{conv2d_transpose_bn_relu.2} parent=31 // pred_fallthru
        _
    $region32: #{conv2d_transpose_bn_relu.2} parent=5 // pred_fallthru
      _
    %p3317 = scmp.le.s32.totalorder 2, %s11
    // Predicated region
    $region41: #{conv2d_transpose_bn_relu.2} parent=5 // pred_check
      %p3318 = pneg %p3317
    $region42: #{conv2d_transpose_bn_relu.2} parent=5 // pred_check_branch
      %3320 = sbr.rel (%p3318) target = $region44
    $region43: #{conv2d_transpose_bn_relu.2} parent=5 // pred_region
      %s3321 = ssub.s32 %s11, 2
      // Predicated region
      $region45: #{conv2d_transpose_bn_relu.2} parent=43 // pred_check
        %p3322 = pneg %p108
      $region46: #{conv2d_transpose_bn_relu.2} parent=43 // pred_check_branch
        %3324 = sbr.rel (%p3322) target = $region48
      $region47: #{conv2d_transpose_bn_relu.2} parent=43 // pred_region
        %p3325 = scmp.lt.s32.totalorder %s17, 1
        %s3326 = scalar_select %p3325, %s17, 1
        %s3327 = smul.addr %s3326, 9
        %s3328 = smul.addr %s3327, 8
        %s3329 = scalar_lea.vmem %s3, %s3328
      $region48: #{conv2d_transpose_bn_relu.2} parent=43 // pred_fallthru
        _
      // Predicated region
      $region49: #{conv2d_transpose_bn_relu.2} parent=43 // pred_check
        %p3330 = pneg %p134
      $region50: #{conv2d_transpose_bn_relu.2} parent=43 // pred_check_branch
        %3332 = sbr.rel (%p3330) target = $region52
      $region51: #{conv2d_transpose_bn_relu.2} parent=43 // pred_region
        %p3333 = scmp.lt.s32.totalorder %s17, 1
        %s3334 = scalar_select %p3333, %s17, 1
        %s3335 = smul.addr %s3334, 8
        %s3336 = scalar_lea.vmem %s4, %s3335
      $region52: #{conv2d_transpose_bn_relu.2} parent=43 // pred_fallthru
        _
    $region44: #{conv2d_transpose_bn_relu.2} parent=5 // pred_fallthru
      _
  $region6: #{conv2d_transpose_bn_relu.2} parent=0 // loop_footer
    %s15 = sadd.s32 1, %s11
  $region7: #{conv2d_transpose_bn_relu.2} parent=0 // loop_footer_branch
    %10 = sbr.rel target = $region3
  $region8: #{conv2d_transpose_bn_relu.2} parent=0 // loop_exit
    _

</llo_original>
